<compile_context>
chip_gen: v5e
topology: v5e:2x2
jax: 0.10.0
libtpu: 0.0.40
codegen_flags: <defaults>
</compile_context>

<pallas_src>
import jax
import jax.numpy as jnp
from jax.experimental import pallas as pl
from jax.experimental.pallas import tpu as pltpu


H_PAD = 128          # hidden size padded to one full lane width
B_SUBLANE = 8        # batch padded to one sublane tile
OUT_LANES = 128      # lane-dense output width (one full vreg)
# packed gate slot -> PyTorch gate block index (PyTorch order is i, f, g, o);
# we pack as (i, f, o, g) so one sigmoid covers a contiguous 3*H_PAD lane slab.
GATE_ORDER = (0, 1, 3, 2)


# ------------------------------------------------------------------
# Kernel factory (static config baked in; recurrence fully unrolled).
# ------------------------------------------------------------------
def _make_kernel(num_layers, batch, input_len, output_len, feat):
    T = input_len + output_len

    def kernel(x_ref, wih0_ref, whh0_ref, b0_ref, wcat_ref, bcat_ref,
               pw_ref, pb_ref, out_ref, x_sc, xw_sc):
        # x_ref    : [B, input_len, F]        f32  raw encoder input
        # wih0_ref : [H_pad, 4*H_pad]         bf16 layer-0 input->gates (packed, transposed)
        # whh0_ref : [H_pad, 4*H_pad]         bf16 layer-0 hidden->gates
        # wcat_ref : [L-1, 2*H_pad, 4*H_pad]  bf16 layers>=1 stacked [W_ih; W_hh]
        # b0_ref   : [1, 4*H_pad]  bcat_ref : [L-1, 1, 4*H_pad]   f32 combined biases
        # pw_ref   : [output_len*H_pad, 128]  f32  block-column projection matrix
        # pb_ref   : [1, 1]                   f32  projection bias (SMEM scalar)
        # out_ref  : [B_pad, 128]             f32  lane-dense projected output
        # x_sc     : [T*B_pad, H_pad]         f32  padded time-major layer-0 input
        # xw_sc    : [T*B_pad, 4*H_pad]       f32  x @ W_ih0 + b0 for all timesteps
        B_pad = out_ref.shape[0]
        H_pad = wih0_ref.shape[0]

        # ---- 1. Build zero-padded, time-major layer-0 input (folds the
        #         wrapper's cat(zeros) + permute(1,0,2) + padding). ----------
        x_sc[...] = jnp.zeros_like(x_sc)
        x_in = x_ref[...]                                     # [B, input_len, F]
        for t in range(input_len):                            # tiny masked stores
            x_sc[t * B_pad:t * B_pad + batch, 0:feat] = x_in[:, t, :]

        # ---- 2. Layer-0 input contribution for ALL timesteps: one MXU matmul.
        xw_sc[...] = (jnp.dot(x_sc[...].astype(jnp.bfloat16), wih0_ref[...],
                              preferred_element_type=jnp.float32)
                      + b0_ref[...])

        # ---- 3. Wavefront-interleaved recurrence (registers only). ---------
        whh0 = whh0_ref[...]                                  # hoisted weight loads
        wcats = [wcat_ref[l] for l in range(num_layers - 1)]
        bcats = [bcat_ref[l] for l in range(num_layers - 1)]

        h = [jnp.zeros((B_pad, H_pad), jnp.float32) for _ in range(num_layers)]
        c = [jnp.zeros((B_pad, H_pad), jnp.float32) for _ in range(num_layers)]
        h_out = []                                            # last layer, last output_len steps

        for s in range(T + num_layers - 1):                   # static wavefront loop
            h_prev = list(h)        # snapshot -> per-step layer chains are independent
            for l in range(num_layers):
                t = s - l
                if not (0 <= t < T):
                    continue
                if l == 0:
                    # input term precomputed; per-step matmul is K=128 h @ W_hh0
                    gates = (xw_sc[t * B_pad:(t + 1) * B_pad, :]
                             + jnp.dot(h_prev[0].astype(jnp.bfloat16), whh0,
                                       preferred_element_type=jnp.float32))
                else:
                    # single K=2*H_pad matmul: concat(h_{l-1}(t), h_l(t-1)) @ [W_ih; W_hh]
                    inp = jnp.concatenate([h_prev[l - 1], h_prev[l]], axis=1)
                    gates = (jnp.dot(inp.astype(jnp.bfloat16), wcats[l - 1],
                                     preferred_element_type=jnp.float32)
                             + bcats[l - 1])

                # Packed gate order (i, f, o, g): one wide sigmoid over i|f|o.
                sig = jax.nn.sigmoid(gates[:, 0:3 * H_pad])
                i_g = sig[:, 0:H_pad]
                f_g = sig[:, H_pad:2 * H_pad]
                o_g = sig[:, 2 * H_pad:3 * H_pad]
                g_g = jnp.tanh(gates[:, 3 * H_pad:4 * H_pad])

                c[l] = f_g * c[l] + i_g * g_g
                h[l] = o_g * jnp.tanh(c[l])

                if l == num_layers - 1 and t >= input_len:
                    h_out.append(h[l])                        # kept in registers

        # ---- 4. Projection epilogue: one lane-dense MXU matmul. ------------
        # out[b, j] = <h_lastlayer(input_len + j)[b, :], proj_w> + proj_b
        # Dropout is identity at inference.
        hcat = jnp.concatenate(h_out, axis=1)                 # [B_pad, output_len*H_pad]
        out_ref[...] = (jnp.dot(hcat, pw_ref[...],
                                preferred_element_type=jnp.float32)
                        + pb_ref[0, 0])                       # single unmasked [8,128] store

    return kernel


# ------------------------------------------------------------------
# Parameter packing (once, in plain JAX, outside the kernel).
# ------------------------------------------------------------------
def pack_params(params, hid_r, num_layers, output_len, h_pad=H_PAD):
    lstm = params["lstm"]

    # Layer 0: separate W_ih (for the whole-sequence precompute) and W_hh.
    l0 = lstm[0]
    w_ih0 = jnp.asarray(l0["w_ih"], jnp.float32)              # [4H, F]
    w_hh0 = jnp.asarray(l0["w_hh"], jnp.float32)              # [4H, H]
    b0 = jnp.asarray(l0["b_ih"], jnp.float32) + jnp.asarray(l0["b_hh"], jnp.float32)
    fin = w_ih0.shape[1]
    assert fin <= h_pad and hid_r <= h_pad

    wih0 = jnp.zeros((h_pad, 4 * h_pad), jnp.float32)
    whh0 = jnp.zeros((h_pad, 4 * h_pad), jnp.float32)
    b0_p = jnp.zeros((1, 4 * h_pad), jnp.float32)
    for slot, g in enumerate(GATE_ORDER):
        blk = slice(g * hid_r, (g + 1) * hid_r)
        col = slice(slot * h_pad, slot * h_pad + hid_r)
        wih0 = wih0.at[:fin, col].set(w_ih0[blk, :].T)
        whh0 = whh0.at[:hid_r, col].set(w_hh0[blk, :].T)
        b0_p = b0_p.at[0, col].set(b0[blk])

    # Layers >= 1: stacked [W_ih; W_hh] so the per-step matmul is K = 2*h_pad.
    n_up = max(num_layers - 1, 1)
    wcat = jnp.zeros((n_up, 2 * h_pad, 4 * h_pad), jnp.float32)
    bcat = jnp.zeros((n_up, 1, 4 * h_pad), jnp.float32)
    for li in range(1, num_layers):
        lay = lstm[li]
        w_ih = jnp.asarray(lay["w_ih"], jnp.float32)          # [4H, H]
        w_hh = jnp.asarray(lay["w_hh"], jnp.float32)          # [4H, H]
        bb = (jnp.asarray(lay["b_ih"], jnp.float32)
              + jnp.asarray(lay["b_hh"], jnp.float32))
        for slot, g in enumerate(GATE_ORDER):
            blk = slice(g * hid_r, (g + 1) * hid_r)
            col = slice(slot * h_pad, slot * h_pad + hid_r)
            wcat = wcat.at[li - 1, 0:hid_r, col].set(w_ih[blk, :].T)
            wcat = wcat.at[li - 1, h_pad:h_pad + hid_r, col].set(w_hh[blk, :].T)
            bcat = bcat.at[li - 1, 0, col].set(bb[blk])

    # Projection: block-column matrix so the epilogue is one
    # [B_pad, output_len*h_pad] x [output_len*h_pad, 128] matmul (col j = time j).
    proj_w = jnp.asarray(params["proj_w"], jnp.float32)       # [1, hid_r]
    proj_b = jnp.asarray(params["proj_b"], jnp.float32)       # [1]
    assert output_len <= OUT_LANES
    pw = jnp.zeros((output_len * h_pad, OUT_LANES), jnp.float32)
    for j in range(output_len):
        pw = pw.at[j * h_pad:j * h_pad + hid_r, j].set(proj_w[0])
    pb = proj_b.reshape(1, 1)

    return (wih0.astype(jnp.bfloat16), whh0.astype(jnp.bfloat16), b0_p,
            wcat.astype(jnp.bfloat16), bcat, pw, pb)


# ------------------------------------------------------------------
# Model wrapper (only remaining wrapper op: the final output slice).
# ------------------------------------------------------------------
def lstm_model_forward(x_enc, params, output_len, hid_r=14):
    """x_enc: [B, input_len, F] -> [B, output_len] (matches LstmModel.forward)."""
    B, input_len, F = x_enc.shape
    num_layers = len(params["lstm"])
    T = input_len + output_len
    b_pad = max(B_SUBLANE, ((B + B_SUBLANE - 1) // B_SUBLANE) * B_SUBLANE)
    assert B <= b_pad and F <= H_PAD and hid_r <= H_PAD

    wih0, whh0, b0, wcat, bcat, pw, pb = pack_params(
        params, hid_r, num_layers, output_len)

    kernel = _make_kernel(num_layers, B, input_len, output_len, F)

    y = pl.pallas_call(
        kernel,
        out_shape=jax.ShapeDtypeStruct((b_pad, OUT_LANES), jnp.float32),
        in_specs=[
            pl.BlockSpec(memory_space=pltpu.MemorySpace.VMEM),   # x_enc (raw)
            pl.BlockSpec(memory_space=pltpu.MemorySpace.VMEM),   # W_ih layer 0
            pl.BlockSpec(memory_space=pltpu.MemorySpace.VMEM),   # W_hh layer 0
            pl.BlockSpec(memory_space=pltpu.MemorySpace.VMEM),   # bias layer 0
            pl.BlockSpec(memory_space=pltpu.MemorySpace.VMEM),   # stacked W layers >= 1
            pl.BlockSpec(memory_space=pltpu.MemorySpace.VMEM),   # bias layers >= 1
            pl.BlockSpec(memory_space=pltpu.MemorySpace.VMEM),   # projection matrix
            pl.BlockSpec(memory_space=pltpu.MemorySpace.SMEM),   # projection bias scalar
        ],
        out_specs=pl.BlockSpec(memory_space=pltpu.MemorySpace.VMEM),
        scratch_shapes=[
            pltpu.VMEM((T * b_pad, H_PAD), jnp.float32),         # padded input sequence
            pltpu.VMEM((T * b_pad, 4 * H_PAD), jnp.float32),     # x @ W_ih0 + b0
        ],
        compiler_params=pltpu.CompilerParams(
            vmem_limit_bytes=4 * 1024 * 1024),                   # ~1 MiB actually live
    )(x_enc.astype(jnp.float32), wih0, whh0, b0, wcat, bcat, pw, pb)

    # Real batch rows / real output-timestep lanes.
    return y[:B, :output_len]                                    # [B, output_len]


# ------------------------------------------------------------------
# Deterministic parameter init mirroring PyTorch's uniform(-1/sqrt(H), 1/sqrt(H)).
# ------------------------------------------------------------------
def init_params(key, in_var, hid_r, num_layers):
    params = {"lstm": [], "proj_w": None, "proj_b": None}
    k = 1.0 / jnp.sqrt(jnp.array(hid_r, jnp.float32))
    for layer in range(num_layers):
        fin = in_var if layer == 0 else hid_r
        key, k1, k2, k3, k4 = jax.random.split(key, 5)
        params["lstm"].append({
            "w_ih": jax.random.uniform(k1, (4 * hid_r, fin), jnp.float32, -k, k),
            "w_hh": jax.random.uniform(k2, (4 * hid_r, hid_r), jnp.float32, -k, k),
            "b_ih": jax.random.uniform(k3, (4 * hid_r,), jnp.float32, -k, k),
            "b_hh": jax.random.uniform(k4, (4 * hid_r,), jnp.float32, -k, k),
        })
    key, k1, k2 = jax.random.split(key, 3)
    params["proj_w"] = jax.random.uniform(k1, (1, hid_r), jnp.float32, -k, k)
    params["proj_b"] = jax.random.uniform(k2, (1,), jnp.float32, -k, k)
    return params


if __name__ == "__main__":
    settings = {"output_len": 4, "in_var": 4, "rnn_layer": 2, "dropout": 0.1}
    batch, input_len = 2, 8
    hid_r = 14

    key = jax.random.PRNGKey(0)
    key, pkey, xkey = jax.random.split(key, 3)
    params = init_params(pkey, settings["in_var"], hid_r, settings["rnn_layer"])
    x_enc = jax.random.normal(xkey, (batch, input_len, settings["in_var"]), jnp.float32)

    out = lstm_model_forward(x_enc, params, settings["output_len"], hid_r=hid_r)
    out = jax.block_until_ready(out)
    assert out.shape == (batch, settings["output_len"]), out.shape
    assert bool(jnp.all(jnp.isfinite(out)))
    print("KERNEL_OK")
</pallas_src>

<mosaic_0001>
module attributes {stable_mosaic.version = 11 : i64} {
  func.func @kernel(%arg0: memref<2x8x4xf32, #tpu.memory_space<vmem>>, %arg1: memref<128x512xbf16, #tpu.memory_space<vmem>>, %arg2: memref<128x512xbf16, #tpu.memory_space<vmem>>, %arg3: memref<1x512xf32, #tpu.memory_space<vmem>>, %arg4: memref<1x256x512xbf16, #tpu.memory_space<vmem>>, %arg5: memref<1x1x512xf32, #tpu.memory_space<vmem>>, %arg6: memref<512x128xf32, #tpu.memory_space<vmem>>, %arg7: memref<1x1xf32, #tpu.memory_space<smem>>, %arg8: memref<8x128xf32, #tpu.memory_space<vmem>>, %arg9: memref<96x128xf32, #tpu.memory_space<vmem>>, %arg10: memref<96x512xf32, #tpu.memory_space<vmem>>) attributes {dimension_semantics = [], scalar_prefetch = 0 : i64, scratch_operands = 2 : i64, tpu.core_type = #tpu.core_type<tc>} {
    %cst = arith.constant 0.000000e+00 : f32
    %0 = vector.broadcast %cst : f32 to vector<96x128xf32>
    %c0 = arith.constant 0 : index
    %c0_0 = arith.constant 0 : index
    %1 = vector.load %arg9[%c0, %c0_0] : memref<96x128xf32, #tpu.memory_space<vmem>>, vector<96x128xf32>
    tpu.vector_store %arg9[%c0, %c0_0], %0 {strides = array<i32>} : memref<96x128xf32, #tpu.memory_space<vmem>>, vector<96x128xf32>,
    %c0_1 = arith.constant 0 : index
    %c0_2 = arith.constant 0 : index
    %c0_3 = arith.constant 0 : index
    %2 = vector.load %arg0[%c0_1, %c0_2, %c0_3] : memref<2x8x4xf32, #tpu.memory_space<vmem>>, vector<2x8x4xf32>
    %3 = vector.extract_strided_slice %2 {offsets = [0, 0, 0], sizes = [2, 1, 4], strides = [1, 1, 1]} : vector<2x8x4xf32> to vector<2x1x4xf32>
    %4 = vector.shape_cast %3 : vector<2x1x4xf32> to vector<2x4xf32>
    %c0_4 = arith.constant 0 : index
    %c0_5 = arith.constant 0 : index
    %5 = vector.load %arg9[%c0_4, %c0_5] : memref<96x128xf32, #tpu.memory_space<vmem>>, vector<2x4xf32>
    tpu.vector_store %arg9[%c0_4, %c0_5], %4 {strides = array<i32>} : memref<96x128xf32, #tpu.memory_space<vmem>>, vector<2x4xf32>,
    %6 = vector.extract_strided_slice %2 {offsets = [0, 1, 0], sizes = [2, 1, 4], strides = [1, 1, 1]} : vector<2x8x4xf32> to vector<2x1x4xf32>
    %7 = vector.shape_cast %6 : vector<2x1x4xf32> to vector<2x4xf32>
    %c8 = arith.constant 8 : index
    %c0_6 = arith.constant 0 : index
    %8 = vector.load %arg9[%c8, %c0_6] : memref<96x128xf32, #tpu.memory_space<vmem>>, vector<2x4xf32>
    tpu.vector_store %arg9[%c8, %c0_6], %7 {strides = array<i32>} : memref<96x128xf32, #tpu.memory_space<vmem>>, vector<2x4xf32>,
    %9 = vector.extract_strided_slice %2 {offsets = [0, 2, 0], sizes = [2, 1, 4], strides = [1, 1, 1]} : vector<2x8x4xf32> to vector<2x1x4xf32>
    %10 = vector.shape_cast %9 : vector<2x1x4xf32> to vector<2x4xf32>
    %c16 = arith.constant 16 : index
    %c0_7 = arith.constant 0 : index
    %11 = vector.load %arg9[%c16, %c0_7] : memref<96x128xf32, #tpu.memory_space<vmem>>, vector<2x4xf32>
    tpu.vector_store %arg9[%c16, %c0_7], %10 {strides = array<i32>} : memref<96x128xf32, #tpu.memory_space<vmem>>, vector<2x4xf32>,
    %12 = vector.extract_strided_slice %2 {offsets = [0, 3, 0], sizes = [2, 1, 4], strides = [1, 1, 1]} : vector<2x8x4xf32> to vector<2x1x4xf32>
    %13 = vector.shape_cast %12 : vector<2x1x4xf32> to vector<2x4xf32>
    %c24 = arith.constant 24 : index
    %c0_8 = arith.constant 0 : index
    %14 = vector.load %arg9[%c24, %c0_8] : memref<96x128xf32, #tpu.memory_space<vmem>>, vector<2x4xf32>
    tpu.vector_store %arg9[%c24, %c0_8], %13 {strides = array<i32>} : memref<96x128xf32, #tpu.memory_space<vmem>>, vector<2x4xf32>,
    %15 = vector.extract_strided_slice %2 {offsets = [0, 4, 0], sizes = [2, 1, 4], strides = [1, 1, 1]} : vector<2x8x4xf32> to vector<2x1x4xf32>
    %16 = vector.shape_cast %15 : vector<2x1x4xf32> to vector<2x4xf32>
    %c32 = arith.constant 32 : index
    %c0_9 = arith.constant 0 : index
    %17 = vector.load %arg9[%c32, %c0_9] : memref<96x128xf32, #tpu.memory_space<vmem>>, vector<2x4xf32>
    tpu.vector_store %arg9[%c32, %c0_9], %16 {strides = array<i32>} : memref<96x128xf32, #tpu.memory_space<vmem>>, vector<2x4xf32>,
    %18 = vector.extract_strided_slice %2 {offsets = [0, 5, 0], sizes = [2, 1, 4], strides = [1, 1, 1]} : vector<2x8x4xf32> to vector<2x1x4xf32>
    %19 = vector.shape_cast %18 : vector<2x1x4xf32> to vector<2x4xf32>
    %c40 = arith.constant 40 : index
    %c0_10 = arith.constant 0 : index
    %20 = vector.load %arg9[%c40, %c0_10] : memref<96x128xf32, #tpu.memory_space<vmem>>, vector<2x4xf32>
    tpu.vector_store %arg9[%c40, %c0_10], %19 {strides = array<i32>} : memref<96x128xf32, #tpu.memory_space<vmem>>, vector<2x4xf32>,
    %21 = vector.extract_strided_slice %2 {offsets = [0, 6, 0], sizes = [2, 1, 4], strides = [1, 1, 1]} : vector<2x8x4xf32> to vector<2x1x4xf32>
    %22 = vector.shape_cast %21 : vector<2x1x4xf32> to vector<2x4xf32>
    %c48 = arith.constant 48 : index
    %c0_11 = arith.constant 0 : index
    %23 = vector.load %arg9[%c48, %c0_11] : memref<96x128xf32, #tpu.memory_space<vmem>>, vector<2x4xf32>
    tpu.vector_store %arg9[%c48, %c0_11], %22 {strides = array<i32>} : memref<96x128xf32, #tpu.memory_space<vmem>>, vector<2x4xf32>,
    %24 = vector.extract_strided_slice %2 {offsets = [0, 7, 0], sizes = [2, 1, 4], strides = [1, 1, 1]} : vector<2x8x4xf32> to vector<2x1x4xf32>
    %25 = vector.shape_cast %24 : vector<2x1x4xf32> to vector<2x4xf32>
    %c56 = arith.constant 56 : index
    %c0_12 = arith.constant 0 : index
    %26 = vector.load %arg9[%c56, %c0_12] : memref<96x128xf32, #tpu.memory_space<vmem>>, vector<2x4xf32>
    tpu.vector_store %arg9[%c56, %c0_12], %25 {strides = array<i32>} : memref<96x128xf32, #tpu.memory_space<vmem>>, vector<2x4xf32>,
    %c0_13 = arith.constant 0 : index
    %c0_14 = arith.constant 0 : index
    %27 = vector.load %arg9[%c0_13, %c0_14] : memref<96x128xf32, #tpu.memory_space<vmem>>, vector<96x128xf32>
    %28 = arith.truncf %27 : vector<96x128xf32> to vector<96x128xbf16>
    %c0_15 = arith.constant 0 : index
    %c0_16 = arith.constant 0 : index
    %29 = vector.load %arg1[%c0_15, %c0_16] : memref<128x512xbf16, #tpu.memory_space<vmem>>, vector<128x512xbf16>
    %cst_17 = arith.constant dense<0.000000e+00> : vector<96x512xf32>
    %30 = tpu.matmul %28, %29, %cst_17 {dimension_numbers = #tpu.dot_dimension_numbers<[1], [0], [0], [1], [0, 0, 1, 1], [], []>} : vector<96x128xbf16>, vector<128x512xbf16>, vector<96x512xf32> -> vector<96x512xf32>
    %c0_18 = arith.constant 0 : index
    %c0_19 = arith.constant 0 : index
    %31 = vector.load %arg3[%c0_18, %c0_19] : memref<1x512xf32, #tpu.memory_space<vmem>>, vector<1x512xf32>
    %32 = vector.broadcast %31 : vector<1x512xf32> to vector<96x512xf32>
    %33 = arith.addf %30, %32 : vector<96x512xf32>
    %c0_20 = arith.constant 0 : index
    %c0_21 = arith.constant 0 : index
    %34 = vector.load %arg10[%c0_20, %c0_21] : memref<96x512xf32, #tpu.memory_space<vmem>>, vector<96x512xf32>
    tpu.vector_store %arg10[%c0_20, %c0_21], %33 {strides = array<i32>} : memref<96x512xf32, #tpu.memory_space<vmem>>, vector<96x512xf32>,
    %c0_22 = arith.constant 0 : index
    %c0_23 = arith.constant 0 : index
    %35 = vector.load %arg2[%c0_22, %c0_23] : memref<128x512xbf16, #tpu.memory_space<vmem>>, vector<128x512xbf16>
    %c0_24 = arith.constant 0 : index
    %c0_25 = arith.constant 0 : index
    %c0_26 = arith.constant 0 : index
    %36 = vector.load %arg4[%c0_24, %c0_25, %c0_26] : memref<1x256x512xbf16, #tpu.memory_space<vmem>>, vector<1x256x512xbf16>
    %37 = vector.shape_cast %36 : vector<1x256x512xbf16> to vector<256x512xbf16>
    %c0_27 = arith.constant 0 : index
    %c0_28 = arith.constant 0 : index
    %c0_29 = arith.constant 0 : index
    %38 = vector.load %arg5[%c0_27, %c0_28, %c0_29] : memref<1x1x512xf32, #tpu.memory_space<vmem>>, vector<1x1x512xf32>
    %39 = vector.shape_cast %38 : vector<1x1x512xf32> to vector<1x512xf32>
    %cst_30 = arith.constant 0.000000e+00 : f32
    %40 = vector.broadcast %cst_30 : f32 to vector<8x128xf32>
    %cst_31 = arith.constant 0.000000e+00 : f32
    %41 = vector.broadcast %cst_31 : f32 to vector<8x128xf32>
    %cst_32 = arith.constant 0.000000e+00 : f32
    %42 = vector.broadcast %cst_32 : f32 to vector<8x128xf32>
    %cst_33 = arith.constant 0.000000e+00 : f32
    %43 = vector.broadcast %cst_33 : f32 to vector<8x128xf32>
    %c0_34 = arith.constant 0 : index
    %c0_35 = arith.constant 0 : index
    %44 = vector.load %arg10[%c0_34, %c0_35] : memref<96x512xf32, #tpu.memory_space<vmem>>, vector<8x512xf32>
    %45 = arith.truncf %40 : vector<8x128xf32> to vector<8x128xbf16>
    %cst_36 = arith.constant dense<0.000000e+00> : vector<8x512xf32>
    %46 = tpu.matmul %45, %35, %cst_36 {dimension_numbers = #tpu.dot_dimension_numbers<[1], [0], [0], [1], [0, 0, 1, 1], [], []>} : vector<8x128xbf16>, vector<128x512xbf16>, vector<8x512xf32> -> vector<8x512xf32>
    %47 = arith.addf %44, %46 : vector<8x512xf32>
    %48 = vector.extract_strided_slice %47 {offsets = [0, 0], sizes = [8, 384], strides = [1, 1]} : vector<8x512xf32> to vector<8x384xf32>
    %49 = arith.negf %48 : vector<8x384xf32>
    %50 = math.exp %49 : vector<8x384xf32>
    %cst_37 = arith.constant 1.000000e+00 : f32
    %51 = vector.broadcast %cst_37 : f32 to vector<8x384xf32>
    %52 = arith.addf %51, %50 : vector<8x384xf32>
    %53 = arith.divf %51, %52 : vector<8x384xf32>
    %54 = vector.extract_strided_slice %53 {offsets = [0, 0], sizes = [8, 128], strides = [1, 1]} : vector<8x384xf32> to vector<8x128xf32>
    %55 = vector.extract_strided_slice %53 {offsets = [0, 128], sizes = [8, 128], strides = [1, 1]} : vector<8x384xf32> to vector<8x128xf32>
    %56 = vector.extract_strided_slice %53 {offsets = [0, 256], sizes = [8, 128], strides = [1, 1]} : vector<8x384xf32> to vector<8x128xf32>
    %57 = vector.extract_strided_slice %47 {offsets = [0, 384], sizes = [8, 128], strides = [1, 1]} : vector<8x512xf32> to vector<8x128xf32>
    %58 = math.tanh %57 : vector<8x128xf32>
    %59 = arith.mulf %55, %42 : vector<8x128xf32>
    %60 = arith.mulf %54, %58 : vector<8x128xf32>
    %61 = arith.addf %59, %60 : vector<8x128xf32>
    %62 = math.tanh %61 : vector<8x128xf32>
    %63 = arith.mulf %56, %62 : vector<8x128xf32>
    %c8_38 = arith.constant 8 : index
    %c0_39 = arith.constant 0 : index
    %64 = vector.load %arg10[%c8_38, %c0_39] : memref<96x512xf32, #tpu.memory_space<vmem>>, vector<8x512xf32>
    %65 = arith.truncf %63 : vector<8x128xf32> to vector<8x128xbf16>
    %cst_40 = arith.constant dense<0.000000e+00> : vector<8x512xf32>
    %66 = tpu.matmul %65, %35, %cst_40 {dimension_numbers = #tpu.dot_dimension_numbers<[1], [0], [0], [1], [0, 0, 1, 1], [], []>} : vector<8x128xbf16>, vector<128x512xbf16>, vector<8x512xf32> -> vector<8x512xf32>
    %67 = arith.addf %64, %66 : vector<8x512xf32>
    %68 = vector.extract_strided_slice %67 {offsets = [0, 0], sizes = [8, 384], strides = [1, 1]} : vector<8x512xf32> to vector<8x384xf32>
    %69 = arith.negf %68 : vector<8x384xf32>
    %70 = math.exp %69 : vector<8x384xf32>
    %cst_41 = arith.constant 1.000000e+00 : f32
    %71 = vector.broadcast %cst_41 : f32 to vector<8x384xf32>
    %72 = arith.addf %71, %70 : vector<8x384xf32>
    %73 = arith.divf %71, %72 : vector<8x384xf32>
    %74 = vector.extract_strided_slice %73 {offsets = [0, 0], sizes = [8, 128], strides = [1, 1]} : vector<8x384xf32> to vector<8x128xf32>
    %75 = vector.extract_strided_slice %73 {offsets = [0, 128], sizes = [8, 128], strides = [1, 1]} : vector<8x384xf32> to vector<8x128xf32>
    %76 = vector.extract_strided_slice %73 {offsets = [0, 256], sizes = [8, 128], strides = [1, 1]} : vector<8x384xf32> to vector<8x128xf32>
    %77 = vector.extract_strided_slice %67 {offsets = [0, 384], sizes = [8, 128], strides = [1, 1]} : vector<8x512xf32> to vector<8x128xf32>
    %78 = math.tanh %77 : vector<8x128xf32>
    %79 = arith.mulf %75, %61 : vector<8x128xf32>
    %80 = arith.mulf %74, %78 : vector<8x128xf32>
    %81 = arith.addf %79, %80 : vector<8x128xf32>
    %82 = math.tanh %81 : vector<8x128xf32>
    %83 = arith.mulf %76, %82 : vector<8x128xf32>
    %84 = tpu.concatenate %63, %41 in 1 : vector<8x128xf32>, vector<8x128xf32> -> vector<8x256xf32>
    %85 = arith.truncf %84 : vector<8x256xf32> to vector<8x256xbf16>
    %cst_42 = arith.constant dense<0.000000e+00> : vector<8x512xf32>
    %86 = tpu.matmul %85, %37, %cst_42 {dimension_numbers = #tpu.dot_dimension_numbers<[1], [0], [0], [1], [0, 0, 1, 1], [], []>} : vector<8x256xbf16>, vector<256x512xbf16>, vector<8x512xf32> -> vector<8x512xf32>
    %87 = vector.broadcast %39 : vector<1x512xf32> to vector<8x512xf32>
    %88 = arith.addf %86, %87 : vector<8x512xf32>
    %89 = vector.extract_strided_slice %88 {offsets = [0, 0], sizes = [8, 384], strides = [1, 1]} : vector<8x512xf32> to vector<8x384xf32>
    %90 = arith.negf %89 : vector<8x384xf32>
    %91 = math.exp %90 : vector<8x384xf32>
    %cst_43 = arith.constant 1.000000e+00 : f32
    %92 = vector.broadcast %cst_43 : f32 to vector<8x384xf32>
    %93 = arith.addf %92, %91 : vector<8x384xf32>
    %94 = arith.divf %92, %93 : vector<8x384xf32>
    %95 = vector.extract_strided_slice %94 {offsets = [0, 0], sizes = [8, 128], strides = [1, 1]} : vector<8x384xf32> to vector<8x128xf32>
    %96 = vector.extract_strided_slice %94 {offsets = [0, 128], sizes = [8, 128], strides = [1, 1]} : vector<8x384xf32> to vector<8x128xf32>
    %97 = vector.extract_strided_slice %94 {offsets = [0, 256], sizes = [8, 128], strides = [1, 1]} : vector<8x384xf32> to vector<8x128xf32>
    %98 = vector.extract_strided_slice %88 {offsets = [0, 384], sizes = [8, 128], strides = [1, 1]} : vector<8x512xf32> to vector<8x128xf32>
    %99 = math.tanh %98 : vector<8x128xf32>
    %100 = arith.mulf %96, %43 : vector<8x128xf32>
    %101 = arith.mulf %95, %99 : vector<8x128xf32>
    %102 = arith.addf %100, %101 : vector<8x128xf32>
    %103 = math.tanh %102 : vector<8x128xf32>
    %104 = arith.mulf %97, %103 : vector<8x128xf32>
    %c16_44 = arith.constant 16 : index
    %c0_45 = arith.constant 0 : index
    %105 = vector.load %arg10[%c16_44, %c0_45] : memref<96x512xf32, #tpu.memory_space<vmem>>, vector<8x512xf32>
    %106 = arith.truncf %83 : vector<8x128xf32> to vector<8x128xbf16>
    %cst_46 = arith.constant dense<0.000000e+00> : vector<8x512xf32>
    %107 = tpu.matmul %106, %35, %cst_46 {dimension_numbers = #tpu.dot_dimension_numbers<[1], [0], [0], [1], [0, 0, 1, 1], [], []>} : vector<8x128xbf16>, vector<128x512xbf16>, vector<8x512xf32> -> vector<8x512xf32>
    %108 = arith.addf %105, %107 : vector<8x512xf32>
    %109 = vector.extract_strided_slice %108 {offsets = [0, 0], sizes = [8, 384], strides = [1, 1]} : vector<8x512xf32> to vector<8x384xf32>
    %110 = arith.negf %109 : vector<8x384xf32>
    %111 = math.exp %110 : vector<8x384xf32>
    %cst_47 = arith.constant 1.000000e+00 : f32
    %112 = vector.broadcast %cst_47 : f32 to vector<8x384xf32>
    %113 = arith.addf %112, %111 : vector<8x384xf32>
    %114 = arith.divf %112, %113 : vector<8x384xf32>
    %115 = vector.extract_strided_slice %114 {offsets = [0, 0], sizes = [8, 128], strides = [1, 1]} : vector<8x384xf32> to vector<8x128xf32>
    %116 = vector.extract_strided_slice %114 {offsets = [0, 128], sizes = [8, 128], strides = [1, 1]} : vector<8x384xf32> to vector<8x128xf32>
    %117 = vector.extract_strided_slice %114 {offsets = [0, 256], sizes = [8, 128], strides = [1, 1]} : vector<8x384xf32> to vector<8x128xf32>
    %118 = vector.extract_strided_slice %108 {offsets = [0, 384], sizes = [8, 128], strides = [1, 1]} : vector<8x512xf32> to vector<8x128xf32>
    %119 = math.tanh %118 : vector<8x128xf32>
    %120 = arith.mulf %116, %81 : vector<8x128xf32>
    %121 = arith.mulf %115, %119 : vector<8x128xf32>
    %122 = arith.addf %120, %121 : vector<8x128xf32>
    %123 = math.tanh %122 : vector<8x128xf32>
    %124 = arith.mulf %117, %123 : vector<8x128xf32>
    %125 = tpu.concatenate %83, %104 in 1 : vector<8x128xf32>, vector<8x128xf32> -> vector<8x256xf32>
    %126 = arith.truncf %125 : vector<8x256xf32> to vector<8x256xbf16>
    %cst_48 = arith.constant dense<0.000000e+00> : vector<8x512xf32>
    %127 = tpu.matmul %126, %37, %cst_48 {dimension_numbers = #tpu.dot_dimension_numbers<[1], [0], [0], [1], [0, 0, 1, 1], [], []>} : vector<8x256xbf16>, vector<256x512xbf16>, vector<8x512xf32> -> vector<8x512xf32>
    %128 = vector.broadcast %39 : vector<1x512xf32> to vector<8x512xf32>
    %129 = arith.addf %127, %128 : vector<8x512xf32>
    %130 = vector.extract_strided_slice %129 {offsets = [0, 0], sizes = [8, 384], strides = [1, 1]} : vector<8x512xf32> to vector<8x384xf32>
    %131 = arith.negf %130 : vector<8x384xf32>
    %132 = math.exp %131 : vector<8x384xf32>
    %cst_49 = arith.constant 1.000000e+00 : f32
    %133 = vector.broadcast %cst_49 : f32 to vector<8x384xf32>
    %134 = arith.addf %133, %132 : vector<8x384xf32>
    %135 = arith.divf %133, %134 : vector<8x384xf32>
    %136 = vector.extract_strided_slice %135 {offsets = [0, 0], sizes = [8, 128], strides = [1, 1]} : vector<8x384xf32> to vector<8x128xf32>
    %137 = vector.extract_strided_slice %135 {offsets = [0, 128], sizes = [8, 128], strides = [1, 1]} : vector<8x384xf32> to vector<8x128xf32>
    %138 = vector.extract_strided_slice %135 {offsets = [0, 256], sizes = [8, 128], strides = [1, 1]} : vector<8x384xf32> to vector<8x128xf32>
    %139 = vector.extract_strided_slice %129 {offsets = [0, 384], sizes = [8, 128], strides = [1, 1]} : vector<8x512xf32> to vector<8x128xf32>
    %140 = math.tanh %139 : vector<8x128xf32>
    %141 = arith.mulf %137, %102 : vector<8x128xf32>
    %142 = arith.mulf %136, %140 : vector<8x128xf32>
    %143 = arith.addf %141, %142 : vector<8x128xf32>
    %144 = math.tanh %143 : vector<8x128xf32>
    %145 = arith.mulf %138, %144 : vector<8x128xf32>
    %c24_50 = arith.constant 24 : index
    %c0_51 = arith.constant 0 : index
    %146 = vector.load %arg10[%c24_50, %c0_51] : memref<96x512xf32, #tpu.memory_space<vmem>>, vector<8x512xf32>
    %147 = arith.truncf %124 : vector<8x128xf32> to vector<8x128xbf16>
    %cst_52 = arith.constant dense<0.000000e+00> : vector<8x512xf32>
    %148 = tpu.matmul %147, %35, %cst_52 {dimension_numbers = #tpu.dot_dimension_numbers<[1], [0], [0], [1], [0, 0, 1, 1], [], []>} : vector<8x128xbf16>, vector<128x512xbf16>, vector<8x512xf32> -> vector<8x512xf32>
    %149 = arith.addf %146, %148 : vector<8x512xf32>
    %150 = vector.extract_strided_slice %149 {offsets = [0, 0], sizes = [8, 384], strides = [1, 1]} : vector<8x512xf32> to vector<8x384xf32>
    %151 = arith.negf %150 : vector<8x384xf32>
    %152 = math.exp %151 : vector<8x384xf32>
    %cst_53 = arith.constant 1.000000e+00 : f32
    %153 = vector.broadcast %cst_53 : f32 to vector<8x384xf32>
    %154 = arith.addf %153, %152 : vector<8x384xf32>
    %155 = arith.divf %153, %154 : vector<8x384xf32>
    %156 = vector.extract_strided_slice %155 {offsets = [0, 0], sizes = [8, 128], strides = [1, 1]} : vector<8x384xf32> to vector<8x128xf32>
    %157 = vector.extract_strided_slice %155 {offsets = [0, 128], sizes = [8, 128], strides = [1, 1]} : vector<8x384xf32> to vector<8x128xf32>
    %158 = vector.extract_strided_slice %155 {offsets = [0, 256], sizes = [8, 128], strides = [1, 1]} : vector<8x384xf32> to vector<8x128xf32>
    %159 = vector.extract_strided_slice %149 {offsets = [0, 384], sizes = [8, 128], strides = [1, 1]} : vector<8x512xf32> to vector<8x128xf32>
    %160 = math.tanh %159 : vector<8x128xf32>
    %161 = arith.mulf %157, %122 : vector<8x128xf32>
    %162 = arith.mulf %156, %160 : vector<8x128xf32>
    %163 = arith.addf %161, %162 : vector<8x128xf32>
    %164 = math.tanh %163 : vector<8x128xf32>
    %165 = arith.mulf %158, %164 : vector<8x128xf32>
    %166 = tpu.concatenate %124, %145 in 1 : vector<8x128xf32>, vector<8x128xf32> -> vector<8x256xf32>
    %167 = arith.truncf %166 : vector<8x256xf32> to vector<8x256xbf16>
    %cst_54 = arith.constant dense<0.000000e+00> : vector<8x512xf32>
    %168 = tpu.matmul %167, %37, %cst_54 {dimension_numbers = #tpu.dot_dimension_numbers<[1], [0], [0], [1], [0, 0, 1, 1], [], []>} : vector<8x256xbf16>, vector<256x512xbf16>, vector<8x512xf32> -> vector<8x512xf32>
    %169 = vector.broadcast %39 : vector<1x512xf32> to vector<8x512xf32>
    %170 = arith.addf %168, %169 : vector<8x512xf32>
    %171 = vector.extract_strided_slice %170 {offsets = [0, 0], sizes = [8, 384], strides = [1, 1]} : vector<8x512xf32> to vector<8x384xf32>
    %172 = arith.negf %171 : vector<8x384xf32>
    %173 = math.exp %172 : vector<8x384xf32>
    %cst_55 = arith.constant 1.000000e+00 : f32
    %174 = vector.broadcast %cst_55 : f32 to vector<8x384xf32>
    %175 = arith.addf %174, %173 : vector<8x384xf32>
    %176 = arith.divf %174, %175 : vector<8x384xf32>
    %177 = vector.extract_strided_slice %176 {offsets = [0, 0], sizes = [8, 128], strides = [1, 1]} : vector<8x384xf32> to vector<8x128xf32>
    %178 = vector.extract_strided_slice %176 {offsets = [0, 128], sizes = [8, 128], strides = [1, 1]} : vector<8x384xf32> to vector<8x128xf32>
    %179 = vector.extract_strided_slice %176 {offsets = [0, 256], sizes = [8, 128], strides = [1, 1]} : vector<8x384xf32> to vector<8x128xf32>
    %180 = vector.extract_strided_slice %170 {offsets = [0, 384], sizes = [8, 128], strides = [1, 1]} : vector<8x512xf32> to vector<8x128xf32>
    %181 = math.tanh %180 : vector<8x128xf32>
    %182 = arith.mulf %178, %143 : vector<8x128xf32>
    %183 = arith.mulf %177, %181 : vector<8x128xf32>
    %184 = arith.addf %182, %183 : vector<8x128xf32>
    %185 = math.tanh %184 : vector<8x128xf32>
    %186 = arith.mulf %179, %185 : vector<8x128xf32>
    %c32_56 = arith.constant 32 : index
    %c0_57 = arith.constant 0 : index
    %187 = vector.load %arg10[%c32_56, %c0_57] : memref<96x512xf32, #tpu.memory_space<vmem>>, vector<8x512xf32>
    %188 = arith.truncf %165 : vector<8x128xf32> to vector<8x128xbf16>
    %cst_58 = arith.constant dense<0.000000e+00> : vector<8x512xf32>
    %189 = tpu.matmul %188, %35, %cst_58 {dimension_numbers = #tpu.dot_dimension_numbers<[1], [0], [0], [1], [0, 0, 1, 1], [], []>} : vector<8x128xbf16>, vector<128x512xbf16>, vector<8x512xf32> -> vector<8x512xf32>
    %190 = arith.addf %187, %189 : vector<8x512xf32>
    %191 = vector.extract_strided_slice %190 {offsets = [0, 0], sizes = [8, 384], strides = [1, 1]} : vector<8x512xf32> to vector<8x384xf32>
    %192 = arith.negf %191 : vector<8x384xf32>
    %193 = math.exp %192 : vector<8x384xf32>
    %cst_59 = arith.constant 1.000000e+00 : f32
    %194 = vector.broadcast %cst_59 : f32 to vector<8x384xf32>
    %195 = arith.addf %194, %193 : vector<8x384xf32>
    %196 = arith.divf %194, %195 : vector<8x384xf32>
    %197 = vector.extract_strided_slice %196 {offsets = [0, 0], sizes = [8, 128], strides = [1, 1]} : vector<8x384xf32> to vector<8x128xf32>
    %198 = vector.extract_strided_slice %196 {offsets = [0, 128], sizes = [8, 128], strides = [1, 1]} : vector<8x384xf32> to vector<8x128xf32>
    %199 = vector.extract_strided_slice %196 {offsets = [0, 256], sizes = [8, 128], strides = [1, 1]} : vector<8x384xf32> to vector<8x128xf32>
    %200 = vector.extract_strided_slice %190 {offsets = [0, 384], sizes = [8, 128], strides = [1, 1]} : vector<8x512xf32> to vector<8x128xf32>
    %201 = math.tanh %200 : vector<8x128xf32>
    %202 = arith.mulf %198, %163 : vector<8x128xf32>
    %203 = arith.mulf %197, %201 : vector<8x128xf32>
    %204 = arith.addf %202, %203 : vector<8x128xf32>
    %205 = math.tanh %204 : vector<8x128xf32>
    %206 = arith.mulf %199, %205 : vector<8x128xf32>
    %207 = tpu.concatenate %165, %186 in 1 : vector<8x128xf32>, vector<8x128xf32> -> vector<8x256xf32>
    %208 = arith.truncf %207 : vector<8x256xf32> to vector<8x256xbf16>
    %cst_60 = arith.constant dense<0.000000e+00> : vector<8x512xf32>
    %209 = tpu.matmul %208, %37, %cst_60 {dimension_numbers = #tpu.dot_dimension_numbers<[1], [0], [0], [1], [0, 0, 1, 1], [], []>} : vector<8x256xbf16>, vector<256x512xbf16>, vector<8x512xf32> -> vector<8x512xf32>
    %210 = vector.broadcast %39 : vector<1x512xf32> to vector<8x512xf32>
    %211 = arith.addf %209, %210 : vector<8x512xf32>
    %212 = vector.extract_strided_slice %211 {offsets = [0, 0], sizes = [8, 384], strides = [1, 1]} : vector<8x512xf32> to vector<8x384xf32>
    %213 = arith.negf %212 : vector<8x384xf32>
    %214 = math.exp %213 : vector<8x384xf32>
    %cst_61 = arith.constant 1.000000e+00 : f32
    %215 = vector.broadcast %cst_61 : f32 to vector<8x384xf32>
    %216 = arith.addf %215, %214 : vector<8x384xf32>
    %217 = arith.divf %215, %216 : vector<8x384xf32>
    %218 = vector.extract_strided_slice %217 {offsets = [0, 0], sizes = [8, 128], strides = [1, 1]} : vector<8x384xf32> to vector<8x128xf32>
    %219 = vector.extract_strided_slice %217 {offsets = [0, 128], sizes = [8, 128], strides = [1, 1]} : vector<8x384xf32> to vector<8x128xf32>
    %220 = vector.extract_strided_slice %217 {offsets = [0, 256], sizes = [8, 128], strides = [1, 1]} : vector<8x384xf32> to vector<8x128xf32>
    %221 = vector.extract_strided_slice %211 {offsets = [0, 384], sizes = [8, 128], strides = [1, 1]} : vector<8x512xf32> to vector<8x128xf32>
    %222 = math.tanh %221 : vector<8x128xf32>
    %223 = arith.mulf %219, %184 : vector<8x128xf32>
    %224 = arith.mulf %218, %222 : vector<8x128xf32>
    %225 = arith.addf %223, %224 : vector<8x128xf32>
    %226 = math.tanh %225 : vector<8x128xf32>
    %227 = arith.mulf %220, %226 : vector<8x128xf32>
    %c40_62 = arith.constant 40 : index
    %c0_63 = arith.constant 0 : index
    %228 = vector.load %arg10[%c40_62, %c0_63] : memref<96x512xf32, #tpu.memory_space<vmem>>, vector<8x512xf32>
    %229 = arith.truncf %206 : vector<8x128xf32> to vector<8x128xbf16>
    %cst_64 = arith.constant dense<0.000000e+00> : vector<8x512xf32>
    %230 = tpu.matmul %229, %35, %cst_64 {dimension_numbers = #tpu.dot_dimension_numbers<[1], [0], [0], [1], [0, 0, 1, 1], [], []>} : vector<8x128xbf16>, vector<128x512xbf16>, vector<8x512xf32> -> vector<8x512xf32>
    %231 = arith.addf %228, %230 : vector<8x512xf32>
    %232 = vector.extract_strided_slice %231 {offsets = [0, 0], sizes = [8, 384], strides = [1, 1]} : vector<8x512xf32> to vector<8x384xf32>
    %233 = arith.negf %232 : vector<8x384xf32>
    %234 = math.exp %233 : vector<8x384xf32>
    %cst_65 = arith.constant 1.000000e+00 : f32
    %235 = vector.broadcast %cst_65 : f32 to vector<8x384xf32>
    %236 = arith.addf %235, %234 : vector<8x384xf32>
    %237 = arith.divf %235, %236 : vector<8x384xf32>
    %238 = vector.extract_strided_slice %237 {offsets = [0, 0], sizes = [8, 128], strides = [1, 1]} : vector<8x384xf32> to vector<8x128xf32>
    %239 = vector.extract_strided_slice %237 {offsets = [0, 128], sizes = [8, 128], strides = [1, 1]} : vector<8x384xf32> to vector<8x128xf32>
    %240 = vector.extract_strided_slice %237 {offsets = [0, 256], sizes = [8, 128], strides = [1, 1]} : vector<8x384xf32> to vector<8x128xf32>
    %241 = vector.extract_strided_slice %231 {offsets = [0, 384], sizes = [8, 128], strides = [1, 1]} : vector<8x512xf32> to vector<8x128xf32>
    %242 = math.tanh %241 : vector<8x128xf32>
    %243 = arith.mulf %239, %204 : vector<8x128xf32>
    %244 = arith.mulf %238, %242 : vector<8x128xf32>
    %245 = arith.addf %243, %244 : vector<8x128xf32>
    %246 = math.tanh %245 : vector<8x128xf32>
    %247 = arith.mulf %240, %246 : vector<8x128xf32>
    %248 = tpu.concatenate %206, %227 in 1 : vector<8x128xf32>, vector<8x128xf32> -> vector<8x256xf32>
    %249 = arith.truncf %248 : vector<8x256xf32> to vector<8x256xbf16>
    %cst_66 = arith.constant dense<0.000000e+00> : vector<8x512xf32>
    %250 = tpu.matmul %249, %37, %cst_66 {dimension_numbers = #tpu.dot_dimension_numbers<[1], [0], [0], [1], [0, 0, 1, 1], [], []>} : vector<8x256xbf16>, vector<256x512xbf16>, vector<8x512xf32> -> vector<8x512xf32>
    %251 = vector.broadcast %39 : vector<1x512xf32> to vector<8x512xf32>
    %252 = arith.addf %250, %251 : vector<8x512xf32>
    %253 = vector.extract_strided_slice %252 {offsets = [0, 0], sizes = [8, 384], strides = [1, 1]} : vector<8x512xf32> to vector<8x384xf32>
    %254 = arith.negf %253 : vector<8x384xf32>
    %255 = math.exp %254 : vector<8x384xf32>
    %cst_67 = arith.constant 1.000000e+00 : f32
    %256 = vector.broadcast %cst_67 : f32 to vector<8x384xf32>
    %257 = arith.addf %256, %255 : vector<8x384xf32>
    %258 = arith.divf %256, %257 : vector<8x384xf32>
    %259 = vector.extract_strided_slice %258 {offsets = [0, 0], sizes = [8, 128], strides = [1, 1]} : vector<8x384xf32> to vector<8x128xf32>
    %260 = vector.extract_strided_slice %258 {offsets = [0, 128], sizes = [8, 128], strides = [1, 1]} : vector<8x384xf32> to vector<8x128xf32>
    %261 = vector.extract_strided_slice %258 {offsets = [0, 256], sizes = [8, 128], strides = [1, 1]} : vector<8x384xf32> to vector<8x128xf32>
    %262 = vector.extract_strided_slice %252 {offsets = [0, 384], sizes = [8, 128], strides = [1, 1]} : vector<8x512xf32> to vector<8x128xf32>
    %263 = math.tanh %262 : vector<8x128xf32>
    %264 = arith.mulf %260, %225 : vector<8x128xf32>
    %265 = arith.mulf %259, %263 : vector<8x128xf32>
    %266 = arith.addf %264, %265 : vector<8x128xf32>
    %267 = math.tanh %266 : vector<8x128xf32>
    %268 = arith.mulf %261, %267 : vector<8x128xf32>
    %c48_68 = arith.constant 48 : index
    %c0_69 = arith.constant 0 : index
    %269 = vector.load %arg10[%c48_68, %c0_69] : memref<96x512xf32, #tpu.memory_space<vmem>>, vector<8x512xf32>
    %270 = arith.truncf %247 : vector<8x128xf32> to vector<8x128xbf16>
    %cst_70 = arith.constant dense<0.000000e+00> : vector<8x512xf32>
    %271 = tpu.matmul %270, %35, %cst_70 {dimension_numbers = #tpu.dot_dimension_numbers<[1], [0], [0], [1], [0, 0, 1, 1], [], []>} : vector<8x128xbf16>, vector<128x512xbf16>, vector<8x512xf32> -> vector<8x512xf32>
    %272 = arith.addf %269, %271 : vector<8x512xf32>
    %273 = vector.extract_strided_slice %272 {offsets = [0, 0], sizes = [8, 384], strides = [1, 1]} : vector<8x512xf32> to vector<8x384xf32>
    %274 = arith.negf %273 : vector<8x384xf32>
    %275 = math.exp %274 : vector<8x384xf32>
    %cst_71 = arith.constant 1.000000e+00 : f32
    %276 = vector.broadcast %cst_71 : f32 to vector<8x384xf32>
    %277 = arith.addf %276, %275 : vector<8x384xf32>
    %278 = arith.divf %276, %277 : vector<8x384xf32>
    %279 = vector.extract_strided_slice %278 {offsets = [0, 0], sizes = [8, 128], strides = [1, 1]} : vector<8x384xf32> to vector<8x128xf32>
    %280 = vector.extract_strided_slice %278 {offsets = [0, 128], sizes = [8, 128], strides = [1, 1]} : vector<8x384xf32> to vector<8x128xf32>
    %281 = vector.extract_strided_slice %278 {offsets = [0, 256], sizes = [8, 128], strides = [1, 1]} : vector<8x384xf32> to vector<8x128xf32>
    %282 = vector.extract_strided_slice %272 {offsets = [0, 384], sizes = [8, 128], strides = [1, 1]} : vector<8x512xf32> to vector<8x128xf32>
    %283 = math.tanh %282 : vector<8x128xf32>
    %284 = arith.mulf %280, %245 : vector<8x128xf32>
    %285 = arith.mulf %279, %283 : vector<8x128xf32>
    %286 = arith.addf %284, %285 : vector<8x128xf32>
    %287 = math.tanh %286 : vector<8x128xf32>
    %288 = arith.mulf %281, %287 : vector<8x128xf32>
    %289 = tpu.concatenate %247, %268 in 1 : vector<8x128xf32>, vector<8x128xf32> -> vector<8x256xf32>
    %290 = arith.truncf %289 : vector<8x256xf32> to vector<8x256xbf16>
    %cst_72 = arith.constant dense<0.000000e+00> : vector<8x512xf32>
    %291 = tpu.matmul %290, %37, %cst_72 {dimension_numbers = #tpu.dot_dimension_numbers<[1], [0], [0], [1], [0, 0, 1, 1], [], []>} : vector<8x256xbf16>, vector<256x512xbf16>, vector<8x512xf32> -> vector<8x512xf32>
    %292 = vector.broadcast %39 : vector<1x512xf32> to vector<8x512xf32>
    %293 = arith.addf %291, %292 : vector<8x512xf32>
    %294 = vector.extract_strided_slice %293 {offsets = [0, 0], sizes = [8, 384], strides = [1, 1]} : vector<8x512xf32> to vector<8x384xf32>
    %295 = arith.negf %294 : vector<8x384xf32>
    %296 = math.exp %295 : vector<8x384xf32>
    %cst_73 = arith.constant 1.000000e+00 : f32
    %297 = vector.broadcast %cst_73 : f32 to vector<8x384xf32>
    %298 = arith.addf %297, %296 : vector<8x384xf32>
    %299 = arith.divf %297, %298 : vector<8x384xf32>
    %300 = vector.extract_strided_slice %299 {offsets = [0, 0], sizes = [8, 128], strides = [1, 1]} : vector<8x384xf32> to vector<8x128xf32>
    %301 = vector.extract_strided_slice %299 {offsets = [0, 128], sizes = [8, 128], strides = [1, 1]} : vector<8x384xf32> to vector<8x128xf32>
    %302 = vector.extract_strided_slice %299 {offsets = [0, 256], sizes = [8, 128], strides = [1, 1]} : vector<8x384xf32> to vector<8x128xf32>
    %303 = vector.extract_strided_slice %293 {offsets = [0, 384], sizes = [8, 128], strides = [1, 1]} : vector<8x512xf32> to vector<8x128xf32>
    %304 = math.tanh %303 : vector<8x128xf32>
    %305 = arith.mulf %301, %266 : vector<8x128xf32>
    %306 = arith.mulf %300, %304 : vector<8x128xf32>
    %307 = arith.addf %305, %306 : vector<8x128xf32>
    %308 = math.tanh %307 : vector<8x128xf32>
    %309 = arith.mulf %302, %308 : vector<8x128xf32>
    %c56_74 = arith.constant 56 : index
    %c0_75 = arith.constant 0 : index
    %310 = vector.load %arg10[%c56_74, %c0_75] : memref<96x512xf32, #tpu.memory_space<vmem>>, vector<8x512xf32>
    %311 = arith.truncf %288 : vector<8x128xf32> to vector<8x128xbf16>
    %cst_76 = arith.constant dense<0.000000e+00> : vector<8x512xf32>
    %312 = tpu.matmul %311, %35, %cst_76 {dimension_numbers = #tpu.dot_dimension_numbers<[1], [0], [0], [1], [0, 0, 1, 1], [], []>} : vector<8x128xbf16>, vector<128x512xbf16>, vector<8x512xf32> -> vector<8x512xf32>
    %313 = arith.addf %310, %312 : vector<8x512xf32>
    %314 = vector.extract_strided_slice %313 {offsets = [0, 0], sizes = [8, 384], strides = [1, 1]} : vector<8x512xf32> to vector<8x384xf32>
    %315 = arith.negf %314 : vector<8x384xf32>
    %316 = math.exp %315 : vector<8x384xf32>
    %cst_77 = arith.constant 1.000000e+00 : f32
    %317 = vector.broadcast %cst_77 : f32 to vector<8x384xf32>
    %318 = arith.addf %317, %316 : vector<8x384xf32>
    %319 = arith.divf %317, %318 : vector<8x384xf32>
    %320 = vector.extract_strided_slice %319 {offsets = [0, 0], sizes = [8, 128], strides = [1, 1]} : vector<8x384xf32> to vector<8x128xf32>
    %321 = vector.extract_strided_slice %319 {offsets = [0, 128], sizes = [8, 128], strides = [1, 1]} : vector<8x384xf32> to vector<8x128xf32>
    %322 = vector.extract_strided_slice %319 {offsets = [0, 256], sizes = [8, 128], strides = [1, 1]} : vector<8x384xf32> to vector<8x128xf32>
    %323 = vector.extract_strided_slice %313 {offsets = [0, 384], sizes = [8, 128], strides = [1, 1]} : vector<8x512xf32> to vector<8x128xf32>
    %324 = math.tanh %323 : vector<8x128xf32>
    %325 = arith.mulf %321, %286 : vector<8x128xf32>
    %326 = arith.mulf %320, %324 : vector<8x128xf32>
    %327 = arith.addf %325, %326 : vector<8x128xf32>
    %328 = math.tanh %327 : vector<8x128xf32>
    %329 = arith.mulf %322, %328 : vector<8x128xf32>
    %330 = tpu.concatenate %288, %309 in 1 : vector<8x128xf32>, vector<8x128xf32> -> vector<8x256xf32>
    %331 = arith.truncf %330 : vector<8x256xf32> to vector<8x256xbf16>
    %cst_78 = arith.constant dense<0.000000e+00> : vector<8x512xf32>
    %332 = tpu.matmul %331, %37, %cst_78 {dimension_numbers = #tpu.dot_dimension_numbers<[1], [0], [0], [1], [0, 0, 1, 1], [], []>} : vector<8x256xbf16>, vector<256x512xbf16>, vector<8x512xf32> -> vector<8x512xf32>
    %333 = vector.broadcast %39 : vector<1x512xf32> to vector<8x512xf32>
    %334 = arith.addf %332, %333 : vector<8x512xf32>
    %335 = vector.extract_strided_slice %334 {offsets = [0, 0], sizes = [8, 384], strides = [1, 1]} : vector<8x512xf32> to vector<8x384xf32>
    %336 = arith.negf %335 : vector<8x384xf32>
    %337 = math.exp %336 : vector<8x384xf32>
    %cst_79 = arith.constant 1.000000e+00 : f32
    %338 = vector.broadcast %cst_79 : f32 to vector<8x384xf32>
    %339 = arith.addf %338, %337 : vector<8x384xf32>
    %340 = arith.divf %338, %339 : vector<8x384xf32>
    %341 = vector.extract_strided_slice %340 {offsets = [0, 0], sizes = [8, 128], strides = [1, 1]} : vector<8x384xf32> to vector<8x128xf32>
    %342 = vector.extract_strided_slice %340 {offsets = [0, 128], sizes = [8, 128], strides = [1, 1]} : vector<8x384xf32> to vector<8x128xf32>
    %343 = vector.extract_strided_slice %340 {offsets = [0, 256], sizes = [8, 128], strides = [1, 1]} : vector<8x384xf32> to vector<8x128xf32>
    %344 = vector.extract_strided_slice %334 {offsets = [0, 384], sizes = [8, 128], strides = [1, 1]} : vector<8x512xf32> to vector<8x128xf32>
    %345 = math.tanh %344 : vector<8x128xf32>
    %346 = arith.mulf %342, %307 : vector<8x128xf32>
    %347 = arith.mulf %341, %345 : vector<8x128xf32>
    %348 = arith.addf %346, %347 : vector<8x128xf32>
    %349 = math.tanh %348 : vector<8x128xf32>
    %350 = arith.mulf %343, %349 : vector<8x128xf32>
    %c64 = arith.constant 64 : index
    %c0_80 = arith.constant 0 : index
    %351 = vector.load %arg10[%c64, %c0_80] : memref<96x512xf32, #tpu.memory_space<vmem>>, vector<8x512xf32>
    %352 = arith.truncf %329 : vector<8x128xf32> to vector<8x128xbf16>
    %cst_81 = arith.constant dense<0.000000e+00> : vector<8x512xf32>
    %353 = tpu.matmul %352, %35, %cst_81 {dimension_numbers = #tpu.dot_dimension_numbers<[1], [0], [0], [1], [0, 0, 1, 1], [], []>} : vector<8x128xbf16>, vector<128x512xbf16>, vector<8x512xf32> -> vector<8x512xf32>
    %354 = arith.addf %351, %353 : vector<8x512xf32>
    %355 = vector.extract_strided_slice %354 {offsets = [0, 0], sizes = [8, 384], strides = [1, 1]} : vector<8x512xf32> to vector<8x384xf32>
    %356 = arith.negf %355 : vector<8x384xf32>
    %357 = math.exp %356 : vector<8x384xf32>
    %cst_82 = arith.constant 1.000000e+00 : f32
    %358 = vector.broadcast %cst_82 : f32 to vector<8x384xf32>
    %359 = arith.addf %358, %357 : vector<8x384xf32>
    %360 = arith.divf %358, %359 : vector<8x384xf32>
    %361 = vector.extract_strided_slice %360 {offsets = [0, 0], sizes = [8, 128], strides = [1, 1]} : vector<8x384xf32> to vector<8x128xf32>
    %362 = vector.extract_strided_slice %360 {offsets = [0, 128], sizes = [8, 128], strides = [1, 1]} : vector<8x384xf32> to vector<8x128xf32>
    %363 = vector.extract_strided_slice %360 {offsets = [0, 256], sizes = [8, 128], strides = [1, 1]} : vector<8x384xf32> to vector<8x128xf32>
    %364 = vector.extract_strided_slice %354 {offsets = [0, 384], sizes = [8, 128], strides = [1, 1]} : vector<8x512xf32> to vector<8x128xf32>
    %365 = math.tanh %364 : vector<8x128xf32>
    %366 = arith.mulf %362, %327 : vector<8x128xf32>
    %367 = arith.mulf %361, %365 : vector<8x128xf32>
    %368 = arith.addf %366, %367 : vector<8x128xf32>
    %369 = math.tanh %368 : vector<8x128xf32>
    %370 = arith.mulf %363, %369 : vector<8x128xf32>
    %371 = tpu.concatenate %329, %350 in 1 : vector<8x128xf32>, vector<8x128xf32> -> vector<8x256xf32>
    %372 = arith.truncf %371 : vector<8x256xf32> to vector<8x256xbf16>
    %cst_83 = arith.constant dense<0.000000e+00> : vector<8x512xf32>
    %373 = tpu.matmul %372, %37, %cst_83 {dimension_numbers = #tpu.dot_dimension_numbers<[1], [0], [0], [1], [0, 0, 1, 1], [], []>} : vector<8x256xbf16>, vector<256x512xbf16>, vector<8x512xf32> -> vector<8x512xf32>
    %374 = vector.broadcast %39 : vector<1x512xf32> to vector<8x512xf32>
    %375 = arith.addf %373, %374 : vector<8x512xf32>
    %376 = vector.extract_strided_slice %375 {offsets = [0, 0], sizes = [8, 384], strides = [1, 1]} : vector<8x512xf32> to vector<8x384xf32>
    %377 = arith.negf %376 : vector<8x384xf32>
    %378 = math.exp %377 : vector<8x384xf32>
    %cst_84 = arith.constant 1.000000e+00 : f32
    %379 = vector.broadcast %cst_84 : f32 to vector<8x384xf32>
    %380 = arith.addf %379, %378 : vector<8x384xf32>
    %381 = arith.divf %379, %380 : vector<8x384xf32>
    %382 = vector.extract_strided_slice %381 {offsets = [0, 0], sizes = [8, 128], strides = [1, 1]} : vector<8x384xf32> to vector<8x128xf32>
    %383 = vector.extract_strided_slice %381 {offsets = [0, 128], sizes = [8, 128], strides = [1, 1]} : vector<8x384xf32> to vector<8x128xf32>
    %384 = vector.extract_strided_slice %381 {offsets = [0, 256], sizes = [8, 128], strides = [1, 1]} : vector<8x384xf32> to vector<8x128xf32>
    %385 = vector.extract_strided_slice %375 {offsets = [0, 384], sizes = [8, 128], strides = [1, 1]} : vector<8x512xf32> to vector<8x128xf32>
    %386 = math.tanh %385 : vector<8x128xf32>
    %387 = arith.mulf %383, %348 : vector<8x128xf32>
    %388 = arith.mulf %382, %386 : vector<8x128xf32>
    %389 = arith.addf %387, %388 : vector<8x128xf32>
    %390 = math.tanh %389 : vector<8x128xf32>
    %391 = arith.mulf %384, %390 : vector<8x128xf32>
    %c72 = arith.constant 72 : index
    %c0_85 = arith.constant 0 : index
    %392 = vector.load %arg10[%c72, %c0_85] : memref<96x512xf32, #tpu.memory_space<vmem>>, vector<8x512xf32>
    %393 = arith.truncf %370 : vector<8x128xf32> to vector<8x128xbf16>
    %cst_86 = arith.constant dense<0.000000e+00> : vector<8x512xf32>
    %394 = tpu.matmul %393, %35, %cst_86 {dimension_numbers = #tpu.dot_dimension_numbers<[1], [0], [0], [1], [0, 0, 1, 1], [], []>} : vector<8x128xbf16>, vector<128x512xbf16>, vector<8x512xf32> -> vector<8x512xf32>
    %395 = arith.addf %392, %394 : vector<8x512xf32>
    %396 = vector.extract_strided_slice %395 {offsets = [0, 0], sizes = [8, 384], strides = [1, 1]} : vector<8x512xf32> to vector<8x384xf32>
    %397 = arith.negf %396 : vector<8x384xf32>
    %398 = math.exp %397 : vector<8x384xf32>
    %cst_87 = arith.constant 1.000000e+00 : f32
    %399 = vector.broadcast %cst_87 : f32 to vector<8x384xf32>
    %400 = arith.addf %399, %398 : vector<8x384xf32>
    %401 = arith.divf %399, %400 : vector<8x384xf32>
    %402 = vector.extract_strided_slice %401 {offsets = [0, 0], sizes = [8, 128], strides = [1, 1]} : vector<8x384xf32> to vector<8x128xf32>
    %403 = vector.extract_strided_slice %401 {offsets = [0, 128], sizes = [8, 128], strides = [1, 1]} : vector<8x384xf32> to vector<8x128xf32>
    %404 = vector.extract_strided_slice %401 {offsets = [0, 256], sizes = [8, 128], strides = [1, 1]} : vector<8x384xf32> to vector<8x128xf32>
    %405 = vector.extract_strided_slice %395 {offsets = [0, 384], sizes = [8, 128], strides = [1, 1]} : vector<8x512xf32> to vector<8x128xf32>
    %406 = math.tanh %405 : vector<8x128xf32>
    %407 = arith.mulf %403, %368 : vector<8x128xf32>
    %408 = arith.mulf %402, %406 : vector<8x128xf32>
    %409 = arith.addf %407, %408 : vector<8x128xf32>
    %410 = math.tanh %409 : vector<8x128xf32>
    %411 = arith.mulf %404, %410 : vector<8x128xf32>
    %412 = tpu.concatenate %370, %391 in 1 : vector<8x128xf32>, vector<8x128xf32> -> vector<8x256xf32>
    %413 = arith.truncf %412 : vector<8x256xf32> to vector<8x256xbf16>
    %cst_88 = arith.constant dense<0.000000e+00> : vector<8x512xf32>
    %414 = tpu.matmul %413, %37, %cst_88 {dimension_numbers = #tpu.dot_dimension_numbers<[1], [0], [0], [1], [0, 0, 1, 1], [], []>} : vector<8x256xbf16>, vector<256x512xbf16>, vector<8x512xf32> -> vector<8x512xf32>
    %415 = vector.broadcast %39 : vector<1x512xf32> to vector<8x512xf32>
    %416 = arith.addf %414, %415 : vector<8x512xf32>
    %417 = vector.extract_strided_slice %416 {offsets = [0, 0], sizes = [8, 384], strides = [1, 1]} : vector<8x512xf32> to vector<8x384xf32>
    %418 = arith.negf %417 : vector<8x384xf32>
    %419 = math.exp %418 : vector<8x384xf32>
    %cst_89 = arith.constant 1.000000e+00 : f32
    %420 = vector.broadcast %cst_89 : f32 to vector<8x384xf32>
    %421 = arith.addf %420, %419 : vector<8x384xf32>
    %422 = arith.divf %420, %421 : vector<8x384xf32>
    %423 = vector.extract_strided_slice %422 {offsets = [0, 0], sizes = [8, 128], strides = [1, 1]} : vector<8x384xf32> to vector<8x128xf32>
    %424 = vector.extract_strided_slice %422 {offsets = [0, 128], sizes = [8, 128], strides = [1, 1]} : vector<8x384xf32> to vector<8x128xf32>
    %425 = vector.extract_strided_slice %422 {offsets = [0, 256], sizes = [8, 128], strides = [1, 1]} : vector<8x384xf32> to vector<8x128xf32>
    %426 = vector.extract_strided_slice %416 {offsets = [0, 384], sizes = [8, 128], strides = [1, 1]} : vector<8x512xf32> to vector<8x128xf32>
    %427 = math.tanh %426 : vector<8x128xf32>
    %428 = arith.mulf %424, %389 : vector<8x128xf32>
    %429 = arith.mulf %423, %427 : vector<8x128xf32>
    %430 = arith.addf %428, %429 : vector<8x128xf32>
    %431 = math.tanh %430 : vector<8x128xf32>
    %432 = arith.mulf %425, %431 : vector<8x128xf32>
    %c80 = arith.constant 80 : index
    %c0_90 = arith.constant 0 : index
    %433 = vector.load %arg10[%c80, %c0_90] : memref<96x512xf32, #tpu.memory_space<vmem>>, vector<8x512xf32>
    %434 = arith.truncf %411 : vector<8x128xf32> to vector<8x128xbf16>
    %cst_91 = arith.constant dense<0.000000e+00> : vector<8x512xf32>
    %435 = tpu.matmul %434, %35, %cst_91 {dimension_numbers = #tpu.dot_dimension_numbers<[1], [0], [0], [1], [0, 0, 1, 1], [], []>} : vector<8x128xbf16>, vector<128x512xbf16>, vector<8x512xf32> -> vector<8x512xf32>
    %436 = arith.addf %433, %435 : vector<8x512xf32>
    %437 = vector.extract_strided_slice %436 {offsets = [0, 0], sizes = [8, 384], strides = [1, 1]} : vector<8x512xf32> to vector<8x384xf32>
    %438 = arith.negf %437 : vector<8x384xf32>
    %439 = math.exp %438 : vector<8x384xf32>
    %cst_92 = arith.constant 1.000000e+00 : f32
    %440 = vector.broadcast %cst_92 : f32 to vector<8x384xf32>
    %441 = arith.addf %440, %439 : vector<8x384xf32>
    %442 = arith.divf %440, %441 : vector<8x384xf32>
    %443 = vector.extract_strided_slice %442 {offsets = [0, 0], sizes = [8, 128], strides = [1, 1]} : vector<8x384xf32> to vector<8x128xf32>
    %444 = vector.extract_strided_slice %442 {offsets = [0, 128], sizes = [8, 128], strides = [1, 1]} : vector<8x384xf32> to vector<8x128xf32>
    %445 = vector.extract_strided_slice %442 {offsets = [0, 256], sizes = [8, 128], strides = [1, 1]} : vector<8x384xf32> to vector<8x128xf32>
    %446 = vector.extract_strided_slice %436 {offsets = [0, 384], sizes = [8, 128], strides = [1, 1]} : vector<8x512xf32> to vector<8x128xf32>
    %447 = math.tanh %446 : vector<8x128xf32>
    %448 = arith.mulf %444, %409 : vector<8x128xf32>
    %449 = arith.mulf %443, %447 : vector<8x128xf32>
    %450 = arith.addf %448, %449 : vector<8x128xf32>
    %451 = math.tanh %450 : vector<8x128xf32>
    %452 = arith.mulf %445, %451 : vector<8x128xf32>
    %453 = tpu.concatenate %411, %432 in 1 : vector<8x128xf32>, vector<8x128xf32> -> vector<8x256xf32>
    %454 = arith.truncf %453 : vector<8x256xf32> to vector<8x256xbf16>
    %cst_93 = arith.constant dense<0.000000e+00> : vector<8x512xf32>
    %455 = tpu.matmul %454, %37, %cst_93 {dimension_numbers = #tpu.dot_dimension_numbers<[1], [0], [0], [1], [0, 0, 1, 1], [], []>} : vector<8x256xbf16>, vector<256x512xbf16>, vector<8x512xf32> -> vector<8x512xf32>
    %456 = vector.broadcast %39 : vector<1x512xf32> to vector<8x512xf32>
    %457 = arith.addf %455, %456 : vector<8x512xf32>
    %458 = vector.extract_strided_slice %457 {offsets = [0, 0], sizes = [8, 384], strides = [1, 1]} : vector<8x512xf32> to vector<8x384xf32>
    %459 = arith.negf %458 : vector<8x384xf32>
    %460 = math.exp %459 : vector<8x384xf32>
    %cst_94 = arith.constant 1.000000e+00 : f32
    %461 = vector.broadcast %cst_94 : f32 to vector<8x384xf32>
    %462 = arith.addf %461, %460 : vector<8x384xf32>
    %463 = arith.divf %461, %462 : vector<8x384xf32>
    %464 = vector.extract_strided_slice %463 {offsets = [0, 0], sizes = [8, 128], strides = [1, 1]} : vector<8x384xf32> to vector<8x128xf32>
    %465 = vector.extract_strided_slice %463 {offsets = [0, 128], sizes = [8, 128], strides = [1, 1]} : vector<8x384xf32> to vector<8x128xf32>
    %466 = vector.extract_strided_slice %463 {offsets = [0, 256], sizes = [8, 128], strides = [1, 1]} : vector<8x384xf32> to vector<8x128xf32>
    %467 = vector.extract_strided_slice %457 {offsets = [0, 384], sizes = [8, 128], strides = [1, 1]} : vector<8x512xf32> to vector<8x128xf32>
    %468 = math.tanh %467 : vector<8x128xf32>
    %469 = arith.mulf %465, %430 : vector<8x128xf32>
    %470 = arith.mulf %464, %468 : vector<8x128xf32>
    %471 = arith.addf %469, %470 : vector<8x128xf32>
    %472 = math.tanh %471 : vector<8x128xf32>
    %473 = arith.mulf %466, %472 : vector<8x128xf32>
    %c88 = arith.constant 88 : index
    %c0_95 = arith.constant 0 : index
    %474 = vector.load %arg10[%c88, %c0_95] : memref<96x512xf32, #tpu.memory_space<vmem>>, vector<8x512xf32>
    %475 = arith.truncf %452 : vector<8x128xf32> to vector<8x128xbf16>
    %cst_96 = arith.constant dense<0.000000e+00> : vector<8x512xf32>
    %476 = tpu.matmul %475, %35, %cst_96 {dimension_numbers = #tpu.dot_dimension_numbers<[1], [0], [0], [1], [0, 0, 1, 1], [], []>} : vector<8x128xbf16>, vector<128x512xbf16>, vector<8x512xf32> -> vector<8x512xf32>
    %477 = arith.addf %474, %476 : vector<8x512xf32>
    %478 = vector.extract_strided_slice %477 {offsets = [0, 0], sizes = [8, 384], strides = [1, 1]} : vector<8x512xf32> to vector<8x384xf32>
    %479 = arith.negf %478 : vector<8x384xf32>
    %480 = math.exp %479 : vector<8x384xf32>
    %cst_97 = arith.constant 1.000000e+00 : f32
    %481 = vector.broadcast %cst_97 : f32 to vector<8x384xf32>
    %482 = arith.addf %481, %480 : vector<8x384xf32>
    %483 = arith.divf %481, %482 : vector<8x384xf32>
    %484 = vector.extract_strided_slice %483 {offsets = [0, 0], sizes = [8, 128], strides = [1, 1]} : vector<8x384xf32> to vector<8x128xf32>
    %485 = vector.extract_strided_slice %483 {offsets = [0, 128], sizes = [8, 128], strides = [1, 1]} : vector<8x384xf32> to vector<8x128xf32>
    %486 = vector.extract_strided_slice %483 {offsets = [0, 256], sizes = [8, 128], strides = [1, 1]} : vector<8x384xf32> to vector<8x128xf32>
    %487 = vector.extract_strided_slice %477 {offsets = [0, 384], sizes = [8, 128], strides = [1, 1]} : vector<8x512xf32> to vector<8x128xf32>
    %488 = math.tanh %487 : vector<8x128xf32>
    %489 = arith.mulf %485, %450 : vector<8x128xf32>
    %490 = arith.mulf %484, %488 : vector<8x128xf32>
    %491 = arith.addf %489, %490 : vector<8x128xf32>
    %492 = math.tanh %491 : vector<8x128xf32>
    %493 = arith.mulf %486, %492 : vector<8x128xf32>
    %494 = tpu.concatenate %452, %473 in 1 : vector<8x128xf32>, vector<8x128xf32> -> vector<8x256xf32>
    %495 = arith.truncf %494 : vector<8x256xf32> to vector<8x256xbf16>
    %cst_98 = arith.constant dense<0.000000e+00> : vector<8x512xf32>
    %496 = tpu.matmul %495, %37, %cst_98 {dimension_numbers = #tpu.dot_dimension_numbers<[1], [0], [0], [1], [0, 0, 1, 1], [], []>} : vector<8x256xbf16>, vector<256x512xbf16>, vector<8x512xf32> -> vector<8x512xf32>
    %497 = vector.broadcast %39 : vector<1x512xf32> to vector<8x512xf32>
    %498 = arith.addf %496, %497 : vector<8x512xf32>
    %499 = vector.extract_strided_slice %498 {offsets = [0, 0], sizes = [8, 384], strides = [1, 1]} : vector<8x512xf32> to vector<8x384xf32>
    %500 = arith.negf %499 : vector<8x384xf32>
    %501 = math.exp %500 : vector<8x384xf32>
    %cst_99 = arith.constant 1.000000e+00 : f32
    %502 = vector.broadcast %cst_99 : f32 to vector<8x384xf32>
    %503 = arith.addf %502, %501 : vector<8x384xf32>
    %504 = arith.divf %502, %503 : vector<8x384xf32>
    %505 = vector.extract_strided_slice %504 {offsets = [0, 0], sizes = [8, 128], strides = [1, 1]} : vector<8x384xf32> to vector<8x128xf32>
    %506 = vector.extract_strided_slice %504 {offsets = [0, 128], sizes = [8, 128], strides = [1, 1]} : vector<8x384xf32> to vector<8x128xf32>
    %507 = vector.extract_strided_slice %504 {offsets = [0, 256], sizes = [8, 128], strides = [1, 1]} : vector<8x384xf32> to vector<8x128xf32>
    %508 = vector.extract_strided_slice %498 {offsets = [0, 384], sizes = [8, 128], strides = [1, 1]} : vector<8x512xf32> to vector<8x128xf32>
    %509 = math.tanh %508 : vector<8x128xf32>
    %510 = arith.mulf %506, %471 : vector<8x128xf32>
    %511 = arith.mulf %505, %509 : vector<8x128xf32>
    %512 = arith.addf %510, %511 : vector<8x128xf32>
    %513 = math.tanh %512 : vector<8x128xf32>
    %514 = arith.mulf %507, %513 : vector<8x128xf32>
    %515 = tpu.concatenate %493, %514 in 1 : vector<8x128xf32>, vector<8x128xf32> -> vector<8x256xf32>
    %516 = arith.truncf %515 : vector<8x256xf32> to vector<8x256xbf16>
    %cst_100 = arith.constant dense<0.000000e+00> : vector<8x512xf32>
    %517 = tpu.matmul %516, %37, %cst_100 {dimension_numbers = #tpu.dot_dimension_numbers<[1], [0], [0], [1], [0, 0, 1, 1], [], []>} : vector<8x256xbf16>, vector<256x512xbf16>, vector<8x512xf32> -> vector<8x512xf32>
    %518 = vector.broadcast %39 : vector<1x512xf32> to vector<8x512xf32>
    %519 = arith.addf %517, %518 : vector<8x512xf32>
    %520 = vector.extract_strided_slice %519 {offsets = [0, 0], sizes = [8, 384], strides = [1, 1]} : vector<8x512xf32> to vector<8x384xf32>
    %521 = arith.negf %520 : vector<8x384xf32>
    %522 = math.exp %521 : vector<8x384xf32>
    %cst_101 = arith.constant 1.000000e+00 : f32
    %523 = vector.broadcast %cst_101 : f32 to vector<8x384xf32>
    %524 = arith.addf %523, %522 : vector<8x384xf32>
    %525 = arith.divf %523, %524 : vector<8x384xf32>
    %526 = vector.extract_strided_slice %525 {offsets = [0, 0], sizes = [8, 128], strides = [1, 1]} : vector<8x384xf32> to vector<8x128xf32>
    %527 = vector.extract_strided_slice %525 {offsets = [0, 128], sizes = [8, 128], strides = [1, 1]} : vector<8x384xf32> to vector<8x128xf32>
    %528 = vector.extract_strided_slice %525 {offsets = [0, 256], sizes = [8, 128], strides = [1, 1]} : vector<8x384xf32> to vector<8x128xf32>
    %529 = vector.extract_strided_slice %519 {offsets = [0, 384], sizes = [8, 128], strides = [1, 1]} : vector<8x512xf32> to vector<8x128xf32>
    %530 = math.tanh %529 : vector<8x128xf32>
    %531 = arith.mulf %527, %512 : vector<8x128xf32>
    %532 = arith.mulf %526, %530 : vector<8x128xf32>
    %533 = arith.addf %531, %532 : vector<8x128xf32>
    %534 = math.tanh %533 : vector<8x128xf32>
    %535 = arith.mulf %528, %534 : vector<8x128xf32>
    %536 = tpu.concatenate %432, %473, %514, %535 in 1 : vector<8x128xf32>, vector<8x128xf32>, vector<8x128xf32>, vector<8x128xf32> -> vector<8x512xf32>
    %c0_102 = arith.constant 0 : index
    %c0_103 = arith.constant 0 : index
    %537 = vector.load %arg6[%c0_102, %c0_103] : memref<512x128xf32, #tpu.memory_space<vmem>>, vector<512x128xf32>
    %cst_104 = arith.constant dense<0.000000e+00> : vector<8x128xf32>
    %538 = tpu.matmul %536, %537, %cst_104 {dimension_numbers = #tpu.dot_dimension_numbers<[1], [0], [0], [1], [0, 0, 1, 1], [], []>} : vector<8x512xf32>, vector<512x128xf32>, vector<8x128xf32> -> vector<8x128xf32>
    %c0_105 = arith.constant 0 : index
    %c0_106 = arith.constant 0 : index
    %539 = memref.load %arg7[%c0_105, %c0_106] : memref<1x1xf32, #tpu.memory_space<smem>>
    %540 = vector.broadcast %539 : f32 to vector<8x128xf32>
    %541 = arith.addf %538, %540 : vector<8x128xf32>
    %c0_107 = arith.constant 0 : index
    %c0_108 = arith.constant 0 : index
    %542 = vector.load %arg8[%c0_107, %c0_108] : memref<8x128xf32, #tpu.memory_space<vmem>>, vector<8x128xf32>
    tpu.vector_store %arg8[%c0_107, %c0_108], %541 {strides = array<i32>} : memref<8x128xf32, #tpu.memory_space<vmem>>, vector<8x128xf32>,
    return
  }
}

</mosaic_0001>

<llo_original>
// kernel: tpu_custom_call.1
$region0: #{tpu_custom_call.1}
  #allocation0 [shape = 'u32[]', space=smem, size = 0x4, offset = 0x4, fixed_abs, tag = 'smem constant byte address 0x4 - core index']
  #allocation1 [shape = 'u32[72,128]{1,0:T(1,128)}', space=vmem, size = 0x9000, scoped, tag = 'internal scratch']
  #allocation2 [shape = 'f32[96,128]{1,0:T(8,128)}', space=vmem, size = 0xc000, scoped, tag = 'scratch operand']
  #allocation3 [shape = 'f32[96,512]{1,0:T(8,128)}', space=vmem, size = 0x30000, scoped, tag = 'scratch operand']
  #allocation4 [shape = 'f32[1,1]{1,0:T(1,128)S(6)}', space=smem, size = 0x200, scoped, tag = 'scoped memory for tpu_custom_call.1']
  %s0 = inlined_call_operand.vmem [shape: f32[2,8,4], index: 0, kind: input, shape index: {}]
  %s1 = inlined_call_operand.hbm [shape: bf16[128,512], index: 1, kind: input, shape index: {}]
  %s2 = inlined_call_operand.hbm [shape: bf16[128,512], index: 2, kind: input, shape index: {}]
  %s3 = inlined_call_operand.vmem [shape: f32[1,512], index: 3, kind: input, shape index: {}]
  %s4 = inlined_call_operand.hbm [shape: bf16[1,256,512], index: 4, kind: input, shape index: {}]
  %s5 = inlined_call_operand.vmem [shape: f32[1,1,512], index: 5, kind: input, shape index: {}]
  %s6 = inlined_call_operand.hbm [shape: f32[512,128], index: 6, kind: input, shape index: {}]
  %s7 = inlined_call_operand.<no memory space> [shape: f32[1,1], index: 7, kind: input, shape index: {}]
  %s8 = inlined_call_operand.hbm [shape: f32[8,128], index: 8, kind: output, shape index: {}]
  %s9 = sld [smem:[#allocation0]]
  $region58: #{tpu_custom_call.1} parent=0
    _
  %s11 = ssub.s32 1, %s9
  %s12 = scalar_select 0, %s11, %s9
  %13 = sst [smem:[#allocation4]] %s7
  $region1: #{tpu_custom_call.1} parent=0
    #allocation5 [shape = 'u8[131072]{0}', space=vmem, size = 0x20000, scoped, tag = 'input window, operand 1, single buffered']
    #allocation6 [shape = 's32[1]{0}', space=sflag, size = 0x4, scoped, tag = 'scoped memory for tpu_custom_call.1']
    #allocation7 [shape = 's32[1]{0}', space=sflag, size = 0x4, scoped, tag = 'scoped memory for tpu_custom_call.1']
    #allocation8 [shape = 'u8[131072]{0}', space=vmem, size = 0x20000, scoped, tag = 'input window, operand 2, single buffered']
    #allocation9 [shape = 's32[1]{0}', space=sflag, size = 0x4, scoped, tag = 'scoped memory for tpu_custom_call.1']
    #allocation10 [shape = 'u8[262144]{0}', space=vmem, size = 0x40000, scoped, tag = 'input window, operand 4, single buffered']
    #allocation11 [shape = 'u8[262144]{0}', space=vmem, size = 0x40000, scoped, tag = 'input window, operand 6, single buffered']
    #allocation12 [shape = 's32[1]{0}', space=sflag, size = 0x4, scoped, tag = 'scoped memory for tpu_custom_call.1']
    #allocation13 [shape = 'u8[4096]{0}', space=vmem, size = 0x1000, scoped, tag = 'output window, operand 0, single buffered']
    %14 = vsyncpa [#allocation6], 0
    %15 = vsyncpa [#allocation9], 0
    %16 = vsyncpa [#allocation12], 0
    %17 = vsyncpa [#allocation7], 0
    // Predicated region
    $region2: #{tpu_custom_call.1} parent=1 // pred_check
      _
    $region3: #{tpu_custom_call.1} parent=1 // pred_check_branch
      %19 = sbr.rel (0) target = $region5
    $region4: #{tpu_custom_call.1} parent=1 // pred_region
      _
    $region5: #{tpu_custom_call.1} parent=1 // pred_fallthru
      _
    // Predicated region
    $region6: #{tpu_custom_call.1} parent=1 // pred_check
      _
    $region7: #{tpu_custom_call.1} parent=1 // pred_check_branch
      %21 = sbr.rel (0) target = $region9
    $region8: #{tpu_custom_call.1} parent=1 // pred_region
      %23 = vsyncadd [#allocation6], 0
      %s24 = sshll.u32 %s1, 4
      %s25 = int_to_ptr.hbm [resolvable:$true] %s24
      %s26 = sshll.u32 [#allocation5], 4
      %s27 = int_to_ptr.vmem [resolvable:$true] %s26
      %32 = dma.hbm_to_vmem [thread:$0]  %s25, 4096, %s27, [#allocation6], 256, 256, 16
    $region9: #{tpu_custom_call.1} parent=1 // pred_fallthru
      _
    // Predicated region
    $region10: #{tpu_custom_call.1} parent=1 // pred_check
      _
    $region11: #{tpu_custom_call.1} parent=1 // pred_check_branch
      %34 = sbr.rel (0) target = $region13
    $region12: #{tpu_custom_call.1} parent=1 // pred_region
      %36 = vsyncadd [#allocation9], 0
      %s37 = sshll.u32 %s2, 4
      %s38 = int_to_ptr.hbm [resolvable:$true] %s37
      %s39 = sshll.u32 [#allocation8], 4
      %s40 = int_to_ptr.vmem [resolvable:$true] %s39
      %45 = dma.hbm_to_vmem [thread:$0]  %s38, 4096, %s40, [#allocation9], 256, 256, 16
    $region13: #{tpu_custom_call.1} parent=1 // pred_fallthru
      _
    // Predicated region
    $region14: #{tpu_custom_call.1} parent=1 // pred_check
      _
    $region15: #{tpu_custom_call.1} parent=1 // pred_check_branch
      %47 = sbr.rel (0) target = $region17
    $region16: #{tpu_custom_call.1} parent=1 // pred_region
      _
    $region17: #{tpu_custom_call.1} parent=1 // pred_fallthru
      _
    // Predicated region
    $region18: #{tpu_custom_call.1} parent=1 // pred_check
      _
    $region19: #{tpu_custom_call.1} parent=1 // pred_check_branch
      %49 = sbr.rel (0) target = $region21
    $region20: #{tpu_custom_call.1} parent=1 // pred_region
      %51 = vsyncadd [#allocation9], 0
      %s52 = sshll.u32 %s4, 4
      %s53 = int_to_ptr.hbm [resolvable:$true] %s52
      %s54 = sshll.u32 [#allocation10], 4
      %s55 = int_to_ptr.vmem [resolvable:$true] %s54
      %60 = dma.hbm_to_vmem [thread:$0]  %s53, 8192, %s55, [#allocation9], 256, 256, 16
    $region21: #{tpu_custom_call.1} parent=1 // pred_fallthru
      _
    // Predicated region
    $region22: #{tpu_custom_call.1} parent=1 // pred_check
      _
    $region23: #{tpu_custom_call.1} parent=1 // pred_check_branch
      %62 = sbr.rel (0) target = $region25
    $region24: #{tpu_custom_call.1} parent=1 // pred_region
      _
    $region25: #{tpu_custom_call.1} parent=1 // pred_fallthru
      _
    // Predicated region
    $region26: #{tpu_custom_call.1} parent=1 // pred_check
      _
    $region27: #{tpu_custom_call.1} parent=1 // pred_check_branch
      %64 = sbr.rel (0) target = $region29
    $region28: #{tpu_custom_call.1} parent=1 // pred_region
      %66 = vsyncadd [#allocation12], 0
      %s67 = sshll.u32 %s6, 4
      %s68 = int_to_ptr.hbm [resolvable:$true] %s67
      %s69 = sshll.u32 [#allocation11], 4
      %s70 = int_to_ptr.vmem [resolvable:$true] %s69
      %75 = dma.hbm_to_vmem [thread:$0]  %s68, 8192, %s70, [#allocation12], 128, 128, 8
    $region29: #{tpu_custom_call.1} parent=1 // pred_fallthru
      _
    // Predicated region
    $region30: #{tpu_custom_call.1} parent=1 // pred_check
      _
    $region31: #{tpu_custom_call.1} parent=1 // pred_check_branch
      %77 = sbr.rel (0) target = $region33
    $region32: #{tpu_custom_call.1} parent=1 // pred_region
      _
    $region33: #{tpu_custom_call.1} parent=1 // pred_fallthru
      _
    // Predicated region
    $region34: #{tpu_custom_call.1} parent=1 // pred_check
      _
    $region35: #{tpu_custom_call.1} parent=1 // pred_check_branch
      %79 = sbr.rel (0) target = $region37
    $region36: #{tpu_custom_call.1} parent=1 // pred_region
      %81 = dma.done [#allocation6], 4096
    $region37: #{tpu_custom_call.1} parent=1 // pred_fallthru
      _
    // Predicated region
    $region38: #{tpu_custom_call.1} parent=1 // pred_check
      _
    $region39: #{tpu_custom_call.1} parent=1 // pred_check_branch
      %83 = sbr.rel (0) target = $region41
    $region40: #{tpu_custom_call.1} parent=1 // pred_region
      %85 = dma.done [#allocation9], 4096
    $region41: #{tpu_custom_call.1} parent=1 // pred_fallthru
      _
    // Predicated region
    $region42: #{tpu_custom_call.1} parent=1 // pred_check
      _
    $region43: #{tpu_custom_call.1} parent=1 // pred_check_branch
      %87 = sbr.rel (0) target = $region45
    $region44: #{tpu_custom_call.1} parent=1 // pred_region
      %89 = dma.done [#allocation9], 8192
    $region45: #{tpu_custom_call.1} parent=1 // pred_fallthru
      _
    // Predicated region
    $region46: #{tpu_custom_call.1} parent=1 // pred_check
      _
    $region47: #{tpu_custom_call.1} parent=1 // pred_check_branch
      %91 = sbr.rel (0) target = $region49
    $region48: #{tpu_custom_call.1} parent=1 // pred_region
      %93 = dma.done [#allocation12], 8192
    $region49: #{tpu_custom_call.1} parent=1 // pred_fallthru
      _
    %95 = vst [vmem:[#allocation2] sm:$0xff] 0.0
    %96 = vst [vmem:[#allocation2 + $0x8] sm:$0xff] 0.0
    %97 = vst [vmem:[#allocation2 + $0x10] sm:$0xff] 0.0
    %98 = vst [vmem:[#allocation2 + $0x18] sm:$0xff] 0.0
    %99 = vst [vmem:[#allocation2 + $0x20] sm:$0xff] 0.0
    %100 = vst [vmem:[#allocation2 + $0x28] sm:$0xff] 0.0
    %101 = vst [vmem:[#allocation2 + $0x30] sm:$0xff] 0.0
    %102 = vst [vmem:[#allocation2 + $0x38] sm:$0xff] 0.0
    %103 = vst [vmem:[#allocation2 + $0x40] sm:$0xff] 0.0
    %104 = vst [vmem:[#allocation2 + $0x48] sm:$0xff] 0.0
    %105 = vst [vmem:[#allocation2 + $0x50] sm:$0xff] 0.0
    %106 = vst [vmem:[#allocation2 + $0x58] sm:$0xff] 0.0
    %v107 = vld [vmem:[%s0] sm:$0xff]
    %v108 = vld [vmem:[%s0 + $0x8] sm:$0xff]
    %v111 = vrot.slane %v108, 7
    %vm112 = vcmask 1041409
    %v113 = vsel %vm112, %v111, %v107
    %vm115 = vcmask 25600
    %116 = vst.msk [vmem:[#allocation2] sm:$0x3] %vm115, %v113
    %vm117 = vcmask 1042434
    %v118 = vsel %vm117, %v111, %v107
    %vm120 = vcmask 26625
    %121 = vst.msk [vmem:[#allocation2 + $0x7] sm:$0x6] %vm120, %v118
    %vm122 = vcmask 1043459
    %v123 = vsel %vm122, %v111, %v107
    %vm125 = vcmask 27650
    %126 = vst.msk [vmem:[#allocation2 + $0xe] sm:$0xc] %vm125, %v123
    %vm127 = vcmask 1044484
    %v128 = vsel %vm127, %v111, %v107
    %vm130 = vcmask 28675
    %131 = vst.msk [vmem:[#allocation2 + $0x15] sm:$0x18] %vm130, %v128
    %vm132 = vcmask 1045509
    %v133 = vsel %vm132, %v111, %v107
    %vm135 = vcmask 29700
    %136 = vst.msk [vmem:[#allocation2 + $0x1c] sm:$0x30] %vm135, %v133
    %vm137 = vcmask 1046534
    %v138 = vsel %vm137, %v111, %v107
    %vm140 = vcmask 30725
    %141 = vst.msk [vmem:[#allocation2 + $0x23] sm:$0x60] %vm140, %v138
    %vm142 = vcmask 1047559
    %v143 = vsel %vm142, %v111, %v107
    %vm145 = vcmask 31750
    %146 = vst.msk [vmem:[#allocation2 + $0x2a] sm:$0xc0] %vm145, %v143
    %vm149 = vcmask 31751
    %150 = vst.msk [vmem:[#allocation2 + $0x31] sm:$0x80] %vm149, %v107
    %vm151 = vcmask 24576
    %152 = vst.msk [vmem:[#allocation2 + $0x39] sm:$0x1] %vm151, %v111
    %v153 = vld [vmem:[#allocation2] sm:$0xff]
    %v154 = vld [vmem:[#allocation2 + $0x8] sm:$0xff]
    %v155 = vld [vmem:[#allocation2 + $0x10] sm:$0xff]
    %v156 = vld [vmem:[#allocation2 + $0x18] sm:$0xff]
    %v157 = vld [vmem:[#allocation2 + $0x20] sm:$0xff]
    %v158 = vld [vmem:[#allocation2 + $0x28] sm:$0xff]
    %v159 = vld [vmem:[#allocation2 + $0x30] sm:$0xff]
    %v160 = vld [vmem:[#allocation2 + $0x38] sm:$0xff]
    %v161 = vld [vmem:[#allocation2 + $0x40] sm:$0xff]
    %v162 = vld [vmem:[#allocation2 + $0x48] sm:$0xff]
    %v163 = vld [vmem:[#allocation2 + $0x50] sm:$0xff]
    %v164 = vld [vmem:[#allocation2 + $0x58] sm:$0xff]
    %v165 = vpack.c.bf16 %v154, %v153
    %v166 = vpack.c.bf16 %v156, %v155
    %v167 = vpack.c.bf16 %v158, %v157
    %v168 = vpack.c.bf16 %v160, %v159
    %v169 = vpack.c.bf16 %v162, %v161
    %v170 = vpack.c.bf16 %v164, %v163
    %v171 = vld [vmem:[#allocation5] sm:$0xff]
    %v172 = vld [vmem:[#allocation5 + $0x8] sm:$0xff]
    %v173 = vld [vmem:[#allocation5 + $0x10] sm:$0xff]
    %v174 = vld [vmem:[#allocation5 + $0x18] sm:$0xff]
    %v175 = vld [vmem:[#allocation5 + $0x20] sm:$0xff]
    %v176 = vld [vmem:[#allocation5 + $0x28] sm:$0xff]
    %v177 = vld [vmem:[#allocation5 + $0x30] sm:$0xff]
    %v178 = vld [vmem:[#allocation5 + $0x38] sm:$0xff]
    %v179 = vld [vmem:[#allocation5 + $0x40] sm:$0xff]
    %v180 = vld [vmem:[#allocation5 + $0x48] sm:$0xff]
    %v181 = vld [vmem:[#allocation5 + $0x50] sm:$0xff]
    %v182 = vld [vmem:[#allocation5 + $0x58] sm:$0xff]
    %v183 = vld [vmem:[#allocation5 + $0x60] sm:$0xff]
    %v184 = vld [vmem:[#allocation5 + $0x68] sm:$0xff]
    %v185 = vld [vmem:[#allocation5 + $0x70] sm:$0xff]
    %v186 = vld [vmem:[#allocation5 + $0x78] sm:$0xff]
    %v187 = vld [vmem:[#allocation5 + $0x80] sm:$0xff]
    %v188 = vld [vmem:[#allocation5 + $0x88] sm:$0xff]
    %v189 = vld [vmem:[#allocation5 + $0x90] sm:$0xff]
    %v190 = vld [vmem:[#allocation5 + $0x98] sm:$0xff]
    %v191 = vld [vmem:[#allocation5 + $0xa0] sm:$0xff]
    %v192 = vld [vmem:[#allocation5 + $0xa8] sm:$0xff]
    %v193 = vld [vmem:[#allocation5 + $0xb0] sm:$0xff]
    %v194 = vld [vmem:[#allocation5 + $0xb8] sm:$0xff]
    %v195 = vld [vmem:[#allocation5 + $0xc0] sm:$0xff]
    %v196 = vld [vmem:[#allocation5 + $0xc8] sm:$0xff]
    %v197 = vld [vmem:[#allocation5 + $0xd0] sm:$0xff]
    %v198 = vld [vmem:[#allocation5 + $0xd8] sm:$0xff]
    %v199 = vld [vmem:[#allocation5 + $0xe0] sm:$0xff]
    %v200 = vld [vmem:[#allocation5 + $0xe8] sm:$0xff]
    %v201 = vld [vmem:[#allocation5 + $0xf0] sm:$0xff]
    %v202 = vld [vmem:[#allocation5 + $0xf8] sm:$0xff]
    %v203 = vld [vmem:[%s3] sm:$0xf]
    %v205 = vperm.slane %v203, 0
    %v206 = vperm.slane %v203, 1
    %v207 = vperm.slane %v203, 2
    %v208 = vperm.slane %v203, 3
    %v245 = vunpack.c.l.b16 %v171
    %v246 = vunpack.c.h.b16 %v171
    %v247 = vunpack.c.l.b16 %v172
    %v248 = vunpack.c.h.b16 %v172
    %v249 = vunpack.c.l.b16 %v173
    %v250 = vunpack.c.h.b16 %v173
    %v251 = vunpack.c.l.b16 %v174
    %v252 = vunpack.c.h.b16 %v174
    %v253 = vunpack.c.l.b16 %v175
    %v254 = vunpack.c.h.b16 %v175
    %v255 = vunpack.c.l.b16 %v176
    %v256 = vunpack.c.h.b16 %v176
    %v257 = vunpack.c.l.b16 %v177
    %v258 = vunpack.c.h.b16 %v177
    %v259 = vunpack.c.l.b16 %v178
    %v260 = vunpack.c.h.b16 %v178
    %v261 = vunpack.c.l.b16 %v179
    %v262 = vunpack.c.h.b16 %v179
    %v263 = vunpack.c.l.b16 %v180
    %v264 = vunpack.c.h.b16 %v180
    %v265 = vunpack.c.l.b16 %v181
    %v266 = vunpack.c.h.b16 %v181
    %v267 = vunpack.c.l.b16 %v182
    %v268 = vunpack.c.h.b16 %v182
    %v269 = vunpack.c.l.b16 %v183
    %v270 = vunpack.c.h.b16 %v183
    %v271 = vunpack.c.l.b16 %v184
    %v272 = vunpack.c.h.b16 %v184
    %v273 = vunpack.c.l.b16 %v185
    %v274 = vunpack.c.h.b16 %v185
    %v275 = vunpack.c.l.b16 %v186
    %v276 = vunpack.c.h.b16 %v186
    %v277 = vunpack.c.l.b16 %v187
    %v278 = vunpack.c.h.b16 %v187
    %v279 = vunpack.c.l.b16 %v188
    %v280 = vunpack.c.h.b16 %v188
    %v281 = vunpack.c.l.b16 %v189
    %v282 = vunpack.c.h.b16 %v189
    %v283 = vunpack.c.l.b16 %v190
    %v284 = vunpack.c.h.b16 %v190
    %v285 = vunpack.c.l.b16 %v191
    %v286 = vunpack.c.h.b16 %v191
    %v287 = vunpack.c.l.b16 %v192
    %v288 = vunpack.c.h.b16 %v192
    %v289 = vunpack.c.l.b16 %v193
    %v290 = vunpack.c.h.b16 %v193
    %v291 = vunpack.c.l.b16 %v194
    %v292 = vunpack.c.h.b16 %v194
    %v293 = vunpack.c.l.b16 %v195
    %v294 = vunpack.c.h.b16 %v195
    %v295 = vunpack.c.l.b16 %v196
    %v296 = vunpack.c.h.b16 %v196
    %v297 = vunpack.c.l.b16 %v197
    %v298 = vunpack.c.h.b16 %v197
    %v299 = vunpack.c.l.b16 %v198
    %v300 = vunpack.c.h.b16 %v198
    %v301 = vunpack.c.l.b16 %v199
    %v302 = vunpack.c.h.b16 %v199
    %v303 = vunpack.c.l.b16 %v200
    %v304 = vunpack.c.h.b16 %v200
    %v305 = vunpack.c.l.b16 %v201
    %v306 = vunpack.c.h.b16 %v201
    %v307 = vunpack.c.l.b16 %v202
    %v308 = vunpack.c.h.b16 %v202
    %v309 = vpack.c.b16 %v249, %v245
    %v310 = vpack.c.b16 %v250, %v246
    %v311 = vpack.c.b16 %v251, %v247
    %v312 = vpack.c.b16 %v252, %v248
    %v313 = vpack.c.b16 %v257, %v253
    %v314 = vpack.c.b16 %v258, %v254
    %v315 = vpack.c.b16 %v259, %v255
    %v316 = vpack.c.b16 %v260, %v256
    %v317 = vpack.c.b16 %v265, %v261
    %v318 = vpack.c.b16 %v266, %v262
    %v319 = vpack.c.b16 %v267, %v263
    %v320 = vpack.c.b16 %v268, %v264
    %v321 = vpack.c.b16 %v273, %v269
    %v322 = vpack.c.b16 %v274, %v270
    %v323 = vpack.c.b16 %v275, %v271
    %v324 = vpack.c.b16 %v276, %v272
    %v325 = vpack.c.b16 %v281, %v277
    %v326 = vpack.c.b16 %v282, %v278
    %v327 = vpack.c.b16 %v283, %v279
    %v328 = vpack.c.b16 %v284, %v280
    %v329 = vpack.c.b16 %v289, %v285
    %v330 = vpack.c.b16 %v290, %v286
    %v331 = vpack.c.b16 %v291, %v287
    %v332 = vpack.c.b16 %v292, %v288
    %v333 = vpack.c.b16 %v297, %v293
    %v334 = vpack.c.b16 %v298, %v294
    %v335 = vpack.c.b16 %v299, %v295
    %v336 = vpack.c.b16 %v300, %v296
    %v337 = vpack.c.b16 %v305, %v301
    %v338 = vpack.c.b16 %v306, %v302
    %v339 = vpack.c.b16 %v307, %v303
    %v340 = vpack.c.b16 %v308, %v304
    %373 = vmatpush.bf16.msra.mxu0 %v337
    %374 = vmatpush.bf16.msra.mxu0 %v333
    %375 = vmatpush.bf16.msra.mxu0 %v329
    %376 = vmatpush.bf16.msra.mxu0 %v325
    %377 = vmatpush.bf16.msra.mxu0 %v321
    %378 = vmatpush.bf16.msra.mxu0 %v317
    %379 = vmatpush.bf16.msra.mxu0 %v313
    %380 = vmatpush.bf16.msra.mxu0 %v309
    %381 = vmatmul.bf16.gmra.mxu0 %v165
    %v382 = vpop.f32.mrf.mxu0
    %v383 = vadd.f32 %v205, %v382
    %v384 = vpop.f32.mrf.mxu0
    %v385 = vadd.f32 %v205, %v384
    %386 = vmatmul.bf16.gmra.mxu0 %v166
    %v387 = vpop.f32.mrf.mxu0
    %v388 = vadd.f32 %v205, %v387
    %v389 = vpop.f32.mrf.mxu0
    %v390 = vadd.f32 %v205, %v389
    %391 = vmatmul.bf16.gmra.mxu0 %v167
    %v392 = vpop.f32.mrf.mxu0
    %v393 = vadd.f32 %v205, %v392
    %v394 = vpop.f32.mrf.mxu0
    %v395 = vadd.f32 %v205, %v394
    %396 = vmatmul.bf16.gmra.mxu0 %v168
    %v397 = vpop.f32.mrf.mxu0
    %v398 = vadd.f32 %v205, %v397
    %v399 = vpop.f32.mrf.mxu0
    %v400 = vadd.f32 %v205, %v399
    %401 = vmatmul.bf16.gmra.mxu0 %v169
    %v402 = vpop.f32.mrf.mxu0
    %v403 = vadd.f32 %v205, %v402
    %v404 = vpop.f32.mrf.mxu0
    %v405 = vadd.f32 %v205, %v404
    %406 = vmatmul.bf16.gmra.mxu0 %v170
    %v407 = vpop.f32.mrf.mxu0
    %v408 = vadd.f32 %v205, %v407
    %v409 = vpop.f32.mrf.mxu0
    %v410 = vadd.f32 %v205, %v409
    %411 = vdwg.mxu0
    %412 = vmatpush.bf16.msra.mxu0 %v338
    %413 = vmatpush.bf16.msra.mxu0 %v334
    %414 = vmatpush.bf16.msra.mxu0 %v330
    %415 = vmatpush.bf16.msra.mxu0 %v326
    %416 = vmatpush.bf16.msra.mxu0 %v322
    %417 = vmatpush.bf16.msra.mxu0 %v318
    %418 = vmatpush.bf16.msra.mxu0 %v314
    %419 = vmatpush.bf16.msra.mxu0 %v310
    %420 = vmatmul.bf16.gmra.mxu0 %v165
    %v421 = vpop.f32.mrf.mxu0
    %v422 = vadd.f32 %v206, %v421
    %v423 = vpop.f32.mrf.mxu0
    %v424 = vadd.f32 %v206, %v423
    %425 = vmatmul.bf16.gmra.mxu0 %v166
    %v426 = vpop.f32.mrf.mxu0
    %v427 = vadd.f32 %v206, %v426
    %v428 = vpop.f32.mrf.mxu0
    %v429 = vadd.f32 %v206, %v428
    %430 = vmatmul.bf16.gmra.mxu0 %v167
    %v431 = vpop.f32.mrf.mxu0
    %v432 = vadd.f32 %v206, %v431
    %v433 = vpop.f32.mrf.mxu0
    %v434 = vadd.f32 %v206, %v433
    %435 = vmatmul.bf16.gmra.mxu0 %v168
    %v436 = vpop.f32.mrf.mxu0
    %v437 = vadd.f32 %v206, %v436
    %v438 = vpop.f32.mrf.mxu0
    %v439 = vadd.f32 %v206, %v438
    %440 = vmatmul.bf16.gmra.mxu0 %v169
    %v441 = vpop.f32.mrf.mxu0
    %v442 = vadd.f32 %v206, %v441
    %v443 = vpop.f32.mrf.mxu0
    %v444 = vadd.f32 %v206, %v443
    %445 = vmatmul.bf16.gmra.mxu0 %v170
    %v446 = vpop.f32.mrf.mxu0
    %v447 = vadd.f32 %v206, %v446
    %v448 = vpop.f32.mrf.mxu0
    %v449 = vadd.f32 %v206, %v448
    %450 = vdwg.mxu0
    %451 = vmatpush.bf16.msra.mxu0 %v339
    %452 = vmatpush.bf16.msra.mxu0 %v335
    %453 = vmatpush.bf16.msra.mxu0 %v331
    %454 = vmatpush.bf16.msra.mxu0 %v327
    %455 = vmatpush.bf16.msra.mxu0 %v323
    %456 = vmatpush.bf16.msra.mxu0 %v319
    %457 = vmatpush.bf16.msra.mxu0 %v315
    %458 = vmatpush.bf16.msra.mxu0 %v311
    %459 = vmatmul.bf16.gmra.mxu0 %v165
    %v460 = vpop.f32.mrf.mxu0
    %v461 = vadd.f32 %v207, %v460
    %v462 = vpop.f32.mrf.mxu0
    %v463 = vadd.f32 %v207, %v462
    %464 = vmatmul.bf16.gmra.mxu0 %v166
    %v465 = vpop.f32.mrf.mxu0
    %v466 = vadd.f32 %v207, %v465
    %v467 = vpop.f32.mrf.mxu0
    %v468 = vadd.f32 %v207, %v467
    %469 = vmatmul.bf16.gmra.mxu0 %v167
    %v470 = vpop.f32.mrf.mxu0
    %v471 = vadd.f32 %v207, %v470
    %v472 = vpop.f32.mrf.mxu0
    %v473 = vadd.f32 %v207, %v472
    %474 = vmatmul.bf16.gmra.mxu0 %v168
    %v475 = vpop.f32.mrf.mxu0
    %v476 = vadd.f32 %v207, %v475
    %v477 = vpop.f32.mrf.mxu0
    %v478 = vadd.f32 %v207, %v477
    %479 = vmatmul.bf16.gmra.mxu0 %v169
    %v480 = vpop.f32.mrf.mxu0
    %v481 = vadd.f32 %v207, %v480
    %v482 = vpop.f32.mrf.mxu0
    %v483 = vadd.f32 %v207, %v482
    %484 = vmatmul.bf16.gmra.mxu0 %v170
    %v485 = vpop.f32.mrf.mxu0
    %v486 = vadd.f32 %v207, %v485
    %v487 = vpop.f32.mrf.mxu0
    %v488 = vadd.f32 %v207, %v487
    %489 = vdwg.mxu0
    %490 = vmatpush.bf16.msra.mxu0 %v340
    %491 = vmatpush.bf16.msra.mxu0 %v336
    %492 = vmatpush.bf16.msra.mxu0 %v332
    %493 = vmatpush.bf16.msra.mxu0 %v328
    %494 = vmatpush.bf16.msra.mxu0 %v324
    %495 = vmatpush.bf16.msra.mxu0 %v320
    %496 = vmatpush.bf16.msra.mxu0 %v316
    %497 = vmatpush.bf16.msra.mxu0 %v312
    %498 = vmatmul.bf16.gmra.mxu0 %v165
    %v499 = vpop.f32.mrf.mxu0
    %v500 = vadd.f32 %v208, %v499
    %v501 = vpop.f32.mrf.mxu0
    %v502 = vadd.f32 %v208, %v501
    %503 = vmatmul.bf16.gmra.mxu0 %v166
    %v504 = vpop.f32.mrf.mxu0
    %v505 = vadd.f32 %v208, %v504
    %v506 = vpop.f32.mrf.mxu0
    %v507 = vadd.f32 %v208, %v506
    %508 = vmatmul.bf16.gmra.mxu0 %v167
    %v509 = vpop.f32.mrf.mxu0
    %v510 = vadd.f32 %v208, %v509
    %v511 = vpop.f32.mrf.mxu0
    %v512 = vadd.f32 %v208, %v511
    %513 = vmatmul.bf16.gmra.mxu0 %v168
    %v514 = vpop.f32.mrf.mxu0
    %v515 = vadd.f32 %v208, %v514
    %v516 = vpop.f32.mrf.mxu0
    %v517 = vadd.f32 %v208, %v516
    %518 = vmatmul.bf16.gmra.mxu0 %v169
    %v519 = vpop.f32.mrf.mxu0
    %v520 = vadd.f32 %v208, %v519
    %v521 = vpop.f32.mrf.mxu0
    %v522 = vadd.f32 %v208, %v521
    %523 = vmatmul.bf16.gmra.mxu0 %v170
    %v524 = vpop.f32.mrf.mxu0
    %v525 = vadd.f32 %v208, %v524
    %v526 = vpop.f32.mrf.mxu0
    %v527 = vadd.f32 %v208, %v526
    %528 = vdwg.mxu0
    %529 = vst [vmem:[#allocation3] sm:$0xff] %v383
    %530 = vst [vmem:[#allocation3 + $0x8] sm:$0xff] %v422
    %531 = vst [vmem:[#allocation3 + $0x10] sm:$0xff] %v461
    %532 = vst [vmem:[#allocation3 + $0x18] sm:$0xff] %v500
    %533 = vst [vmem:[#allocation3 + $0x20] sm:$0xff] %v385
    %534 = vst [vmem:[#allocation3 + $0x28] sm:$0xff] %v424
    %535 = vst [vmem:[#allocation3 + $0x30] sm:$0xff] %v463
    %536 = vst [vmem:[#allocation3 + $0x38] sm:$0xff] %v502
    %537 = vst [vmem:[#allocation3 + $0x40] sm:$0xff] %v388
    %538 = vst [vmem:[#allocation3 + $0x48] sm:$0xff] %v427
    %539 = vst [vmem:[#allocation3 + $0x50] sm:$0xff] %v466
    %540 = vst [vmem:[#allocation3 + $0x58] sm:$0xff] %v505
    %541 = vst [vmem:[#allocation3 + $0x60] sm:$0xff] %v390
    %542 = vst [vmem:[#allocation3 + $0x68] sm:$0xff] %v429
    %543 = vst [vmem:[#allocation3 + $0x70] sm:$0xff] %v468
    %544 = vst [vmem:[#allocation3 + $0x78] sm:$0xff] %v507
    %545 = vst [vmem:[#allocation3 + $0x80] sm:$0xff] %v393
    %546 = vst [vmem:[#allocation3 + $0x88] sm:$0xff] %v432
    %547 = vst [vmem:[#allocation3 + $0x90] sm:$0xff] %v471
    %548 = vst [vmem:[#allocation3 + $0x98] sm:$0xff] %v510
    %549 = vst [vmem:[#allocation3 + $0xa0] sm:$0xff] %v395
    %550 = vst [vmem:[#allocation3 + $0xa8] sm:$0xff] %v434
    %551 = vst [vmem:[#allocation3 + $0xb0] sm:$0xff] %v473
    %552 = vst [vmem:[#allocation3 + $0xb8] sm:$0xff] %v512
    %553 = vst [vmem:[#allocation3 + $0xc0] sm:$0xff] %v398
    %554 = vst [vmem:[#allocation3 + $0xc8] sm:$0xff] %v437
    %555 = vst [vmem:[#allocation3 + $0xd0] sm:$0xff] %v476
    %556 = vst [vmem:[#allocation3 + $0xd8] sm:$0xff] %v515
    %557 = vst [vmem:[#allocation3 + $0xe0] sm:$0xff] %v400
    %558 = vst [vmem:[#allocation3 + $0xe8] sm:$0xff] %v439
    %559 = vst [vmem:[#allocation3 + $0xf0] sm:$0xff] %v478
    %560 = vst [vmem:[#allocation3 + $0xf8] sm:$0xff] %v517
    %561 = vst [vmem:[#allocation3 + $0x100] sm:$0xff] %v403
    %562 = vst [vmem:[#allocation3 + $0x108] sm:$0xff] %v442
    %563 = vst [vmem:[#allocation3 + $0x110] sm:$0xff] %v481
    %564 = vst [vmem:[#allocation3 + $0x118] sm:$0xff] %v520
    %565 = vst [vmem:[#allocation3 + $0x120] sm:$0xff] %v405
    %566 = vst [vmem:[#allocation3 + $0x128] sm:$0xff] %v444
    %567 = vst [vmem:[#allocation3 + $0x130] sm:$0xff] %v483
    %568 = vst [vmem:[#allocation3 + $0x138] sm:$0xff] %v522
    %569 = vst [vmem:[#allocation3 + $0x140] sm:$0xff] %v408
    %570 = vst [vmem:[#allocation3 + $0x148] sm:$0xff] %v447
    %571 = vst [vmem:[#allocation3 + $0x150] sm:$0xff] %v486
    %572 = vst [vmem:[#allocation3 + $0x158] sm:$0xff] %v525
    %573 = vst [vmem:[#allocation3 + $0x160] sm:$0xff] %v410
    %574 = vst [vmem:[#allocation3 + $0x168] sm:$0xff] %v449
    %575 = vst [vmem:[#allocation3 + $0x170] sm:$0xff] %v488
    %576 = vst [vmem:[#allocation3 + $0x178] sm:$0xff] %v527
    %v577 = vld [vmem:[#allocation8] sm:$0xff]
    %v578 = vld [vmem:[#allocation8 + $0x8] sm:$0xff]
    %v579 = vld [vmem:[#allocation8 + $0x10] sm:$0xff]
    %v580 = vld [vmem:[#allocation8 + $0x18] sm:$0xff]
    %v581 = vld [vmem:[#allocation8 + $0x20] sm:$0xff]
    %v582 = vld [vmem:[#allocation8 + $0x28] sm:$0xff]
    %v583 = vld [vmem:[#allocation8 + $0x30] sm:$0xff]
    %v584 = vld [vmem:[#allocation8 + $0x38] sm:$0xff]
    %v585 = vld [vmem:[#allocation8 + $0x40] sm:$0xff]
    %v586 = vld [vmem:[#allocation8 + $0x48] sm:$0xff]
    %v587 = vld [vmem:[#allocation8 + $0x50] sm:$0xff]
    %v588 = vld [vmem:[#allocation8 + $0x58] sm:$0xff]
    %v589 = vld [vmem:[#allocation8 + $0x60] sm:$0xff]
    %v590 = vld [vmem:[#allocation8 + $0x68] sm:$0xff]
    %v591 = vld [vmem:[#allocation8 + $0x70] sm:$0xff]
    %v592 = vld [vmem:[#allocation8 + $0x78] sm:$0xff]
    %v593 = vld [vmem:[#allocation8 + $0x80] sm:$0xff]
    %v594 = vld [vmem:[#allocation8 + $0x88] sm:$0xff]
    %v595 = vld [vmem:[#allocation8 + $0x90] sm:$0xff]
    %v596 = vld [vmem:[#allocation8 + $0x98] sm:$0xff]
    %v597 = vld [vmem:[#allocation8 + $0xa0] sm:$0xff]
    %v598 = vld [vmem:[#allocation8 + $0xa8] sm:$0xff]
    %v599 = vld [vmem:[#allocation8 + $0xb0] sm:$0xff]
    %v600 = vld [vmem:[#allocation8 + $0xb8] sm:$0xff]
    %v601 = vld [vmem:[#allocation8 + $0xc0] sm:$0xff]
    %v602 = vld [vmem:[#allocation8 + $0xc8] sm:$0xff]
    %v603 = vld [vmem:[#allocation8 + $0xd0] sm:$0xff]
    %v604 = vld [vmem:[#allocation8 + $0xd8] sm:$0xff]
    %v605 = vld [vmem:[#allocation8 + $0xe0] sm:$0xff]
    %v606 = vld [vmem:[#allocation8 + $0xe8] sm:$0xff]
    %v607 = vld [vmem:[#allocation8 + $0xf0] sm:$0xff]
    %v608 = vld [vmem:[#allocation8 + $0xf8] sm:$0xff]
    %v609 = vld [vmem:[#allocation10] sm:$0xff]
    %v610 = vld [vmem:[#allocation10 + $0x8] sm:$0xff]
    %v611 = vld [vmem:[#allocation10 + $0x10] sm:$0xff]
    %v612 = vld [vmem:[#allocation10 + $0x18] sm:$0xff]
    %v613 = vld [vmem:[#allocation10 + $0x20] sm:$0xff]
    %v614 = vld [vmem:[#allocation10 + $0x28] sm:$0xff]
    %v615 = vld [vmem:[#allocation10 + $0x30] sm:$0xff]
    %v616 = vld [vmem:[#allocation10 + $0x38] sm:$0xff]
    %v617 = vld [vmem:[#allocation10 + $0x40] sm:$0xff]
    %v618 = vld [vmem:[#allocation10 + $0x48] sm:$0xff]
    %v619 = vld [vmem:[#allocation10 + $0x50] sm:$0xff]
    %v620 = vld [vmem:[#allocation10 + $0x58] sm:$0xff]
    %v621 = vld [vmem:[#allocation10 + $0x60] sm:$0xff]
    %v622 = vld [vmem:[#allocation10 + $0x68] sm:$0xff]
    %v623 = vld [vmem:[#allocation10 + $0x70] sm:$0xff]
    %v624 = vld [vmem:[#allocation10 + $0x78] sm:$0xff]
    %v625 = vld [vmem:[#allocation10 + $0x80] sm:$0xff]
    %v626 = vld [vmem:[#allocation10 + $0x88] sm:$0xff]
    %v627 = vld [vmem:[#allocation10 + $0x90] sm:$0xff]
    %v628 = vld [vmem:[#allocation10 + $0x98] sm:$0xff]
    %v629 = vld [vmem:[#allocation10 + $0xa0] sm:$0xff]
    %v630 = vld [vmem:[#allocation10 + $0xa8] sm:$0xff]
    %v631 = vld [vmem:[#allocation10 + $0xb0] sm:$0xff]
    %v632 = vld [vmem:[#allocation10 + $0xb8] sm:$0xff]
    %v633 = vld [vmem:[#allocation10 + $0xc0] sm:$0xff]
    %v634 = vld [vmem:[#allocation10 + $0xc8] sm:$0xff]
    %v635 = vld [vmem:[#allocation10 + $0xd0] sm:$0xff]
    %v636 = vld [vmem:[#allocation10 + $0xd8] sm:$0xff]
    %v637 = vld [vmem:[#allocation10 + $0xe0] sm:$0xff]
    %v638 = vld [vmem:[#allocation10 + $0xe8] sm:$0xff]
    %v639 = vld [vmem:[#allocation10 + $0xf0] sm:$0xff]
    %v640 = vld [vmem:[#allocation10 + $0xf8] sm:$0xff]
    %v641 = vld [vmem:[#allocation10 + $0x100] sm:$0xff]
    %v642 = vld [vmem:[#allocation10 + $0x108] sm:$0xff]
    %v643 = vld [vmem:[#allocation10 + $0x110] sm:$0xff]
    %v644 = vld [vmem:[#allocation10 + $0x118] sm:$0xff]
    %v645 = vld [vmem:[#allocation10 + $0x120] sm:$0xff]
    %v646 = vld [vmem:[#allocation10 + $0x128] sm:$0xff]
    %v647 = vld [vmem:[#allocation10 + $0x130] sm:$0xff]
    %v648 = vld [vmem:[#allocation10 + $0x138] sm:$0xff]
    %v649 = vld [vmem:[#allocation10 + $0x140] sm:$0xff]
    %v650 = vld [vmem:[#allocation10 + $0x148] sm:$0xff]
    %v651 = vld [vmem:[#allocation10 + $0x150] sm:$0xff]
    %v652 = vld [vmem:[#allocation10 + $0x158] sm:$0xff]
    %v653 = vld [vmem:[#allocation10 + $0x160] sm:$0xff]
    %v654 = vld [vmem:[#allocation10 + $0x168] sm:$0xff]
    %v655 = vld [vmem:[#allocation10 + $0x170] sm:$0xff]
    %v656 = vld [vmem:[#allocation10 + $0x178] sm:$0xff]
    %v657 = vld [vmem:[#allocation10 + $0x180] sm:$0xff]
    %v658 = vld [vmem:[#allocation10 + $0x188] sm:$0xff]
    %v659 = vld [vmem:[#allocation10 + $0x190] sm:$0xff]
    %v660 = vld [vmem:[#allocation10 + $0x198] sm:$0xff]
    %v661 = vld [vmem:[#allocation10 + $0x1a0] sm:$0xff]
    %v662 = vld [vmem:[#allocation10 + $0x1a8] sm:$0xff]
    %v663 = vld [vmem:[#allocation10 + $0x1b0] sm:$0xff]
    %v664 = vld [vmem:[#allocation10 + $0x1b8] sm:$0xff]
    %v665 = vld [vmem:[#allocation10 + $0x1c0] sm:$0xff]
    %v666 = vld [vmem:[#allocation10 + $0x1c8] sm:$0xff]
    %v667 = vld [vmem:[#allocation10 + $0x1d0] sm:$0xff]
    %v668 = vld [vmem:[#allocation10 + $0x1d8] sm:$0xff]
    %v669 = vld [vmem:[#allocation10 + $0x1e0] sm:$0xff]
    %v670 = vld [vmem:[#allocation10 + $0x1e8] sm:$0xff]
    %v671 = vld [vmem:[#allocation10 + $0x1f0] sm:$0xff]
    %v672 = vld [vmem:[#allocation10 + $0x1f8] sm:$0xff]
    %v673 = vld [vmem:[%s5] sm:$0xf]
    %v674 = vld [vmem:[#allocation3] sm:$0xff]
    %v675 = vld [vmem:[#allocation3 + $0x8] sm:$0xff]
    %v676 = vld [vmem:[#allocation3 + $0x10] sm:$0xff]
    %v677 = vld [vmem:[#allocation3 + $0x18] sm:$0xff]
    %v710 = vunpack.c.l.b16 %v577
    %v711 = vunpack.c.h.b16 %v577
    %v712 = vunpack.c.l.b16 %v578
    %v713 = vunpack.c.h.b16 %v578
    %v714 = vunpack.c.l.b16 %v579
    %v715 = vunpack.c.h.b16 %v579
    %v716 = vunpack.c.l.b16 %v580
    %v717 = vunpack.c.h.b16 %v580
    %v718 = vunpack.c.l.b16 %v581
    %v719 = vunpack.c.h.b16 %v581
    %v720 = vunpack.c.l.b16 %v582
    %v721 = vunpack.c.h.b16 %v582
    %v722 = vunpack.c.l.b16 %v583
    %v723 = vunpack.c.h.b16 %v583
    %v724 = vunpack.c.l.b16 %v584
    %v725 = vunpack.c.h.b16 %v584
    %v726 = vunpack.c.l.b16 %v585
    %v727 = vunpack.c.h.b16 %v585
    %v728 = vunpack.c.l.b16 %v586
    %v729 = vunpack.c.h.b16 %v586
    %v730 = vunpack.c.l.b16 %v587
    %v731 = vunpack.c.h.b16 %v587
    %v732 = vunpack.c.l.b16 %v588
    %v733 = vunpack.c.h.b16 %v588
    %v734 = vunpack.c.l.b16 %v589
    %v735 = vunpack.c.h.b16 %v589
    %v736 = vunpack.c.l.b16 %v590
    %v737 = vunpack.c.h.b16 %v590
    %v738 = vunpack.c.l.b16 %v591
    %v739 = vunpack.c.h.b16 %v591
    %v740 = vunpack.c.l.b16 %v592
    %v741 = vunpack.c.h.b16 %v592
    %v742 = vunpack.c.l.b16 %v593
    %v743 = vunpack.c.h.b16 %v593
    %v744 = vunpack.c.l.b16 %v594
    %v745 = vunpack.c.h.b16 %v594
    %v746 = vunpack.c.l.b16 %v595
    %v747 = vunpack.c.h.b16 %v595
    %v748 = vunpack.c.l.b16 %v596
    %v749 = vunpack.c.h.b16 %v596
    %v750 = vunpack.c.l.b16 %v597
    %v751 = vunpack.c.h.b16 %v597
    %v752 = vunpack.c.l.b16 %v598
    %v753 = vunpack.c.h.b16 %v598
    %v754 = vunpack.c.l.b16 %v599
    %v755 = vunpack.c.h.b16 %v599
    %v756 = vunpack.c.l.b16 %v600
    %v757 = vunpack.c.h.b16 %v600
    %v758 = vunpack.c.l.b16 %v601
    %v759 = vunpack.c.h.b16 %v601
    %v760 = vunpack.c.l.b16 %v602
    %v761 = vunpack.c.h.b16 %v602
    %v762 = vunpack.c.l.b16 %v603
    %v763 = vunpack.c.h.b16 %v603
    %v764 = vunpack.c.l.b16 %v604
    %v765 = vunpack.c.h.b16 %v604
    %v766 = vunpack.c.l.b16 %v605
    %v767 = vunpack.c.h.b16 %v605
    %v768 = vunpack.c.l.b16 %v606
    %v769 = vunpack.c.h.b16 %v606
    %v770 = vunpack.c.l.b16 %v607
    %v771 = vunpack.c.h.b16 %v607
    %v772 = vunpack.c.l.b16 %v608
    %v773 = vunpack.c.h.b16 %v608
    %v774 = vpack.c.b16 %v714, %v710
    %v775 = vpack.c.b16 %v715, %v711
    %v776 = vpack.c.b16 %v716, %v712
    %v777 = vpack.c.b16 %v717, %v713
    %v778 = vpack.c.b16 %v722, %v718
    %v779 = vpack.c.b16 %v723, %v719
    %v780 = vpack.c.b16 %v724, %v720
    %v781 = vpack.c.b16 %v725, %v721
    %v782 = vpack.c.b16 %v730, %v726
    %v783 = vpack.c.b16 %v731, %v727
    %v784 = vpack.c.b16 %v732, %v728
    %v785 = vpack.c.b16 %v733, %v729
    %v786 = vpack.c.b16 %v738, %v734
    %v787 = vpack.c.b16 %v739, %v735
    %v788 = vpack.c.b16 %v740, %v736
    %v789 = vpack.c.b16 %v741, %v737
    %v790 = vpack.c.b16 %v746, %v742
    %v791 = vpack.c.b16 %v747, %v743
    %v792 = vpack.c.b16 %v748, %v744
    %v793 = vpack.c.b16 %v749, %v745
    %v794 = vpack.c.b16 %v754, %v750
    %v795 = vpack.c.b16 %v755, %v751
    %v796 = vpack.c.b16 %v756, %v752
    %v797 = vpack.c.b16 %v757, %v753
    %v798 = vpack.c.b16 %v762, %v758
    %v799 = vpack.c.b16 %v763, %v759
    %v800 = vpack.c.b16 %v764, %v760
    %v801 = vpack.c.b16 %v765, %v761
    %v802 = vpack.c.b16 %v770, %v766
    %v803 = vpack.c.b16 %v771, %v767
    %v804 = vpack.c.b16 %v772, %v768
    %v805 = vpack.c.b16 %v773, %v769
    %838 = vmatpush.bf16.msra.mxu0 %v802
    %839 = vmatpush.bf16.msra.mxu0 %v798
    %840 = vmatpush.bf16.msra.mxu0 %v794
    %841 = vmatpush.bf16.msra.mxu0 %v790
    %842 = vmatpush.bf16.msra.mxu0 %v786
    %843 = vmatpush.bf16.msra.mxu0 %v782
    %844 = vmatpush.bf16.msra.mxu0 %v778
    %845 = vmatpush.bf16.msra.mxu0 %v774
    %846 = vmatmul.bf16.gmra.mxu0 0
    %v847 = vpop.f32.mrf.mxu0
    %v848 = vadd.f32 0.0, %v847
    %v849 = vpop.f32.mrf.mxu0
    %850 = vdwg.mxu0
    %851 = vmatpush.bf16.msra.mxu0 %v803
    %852 = vmatpush.bf16.msra.mxu0 %v799
    %853 = vmatpush.bf16.msra.mxu0 %v795
    %854 = vmatpush.bf16.msra.mxu0 %v791
    %855 = vmatpush.bf16.msra.mxu0 %v787
    %856 = vmatpush.bf16.msra.mxu0 %v783
    %857 = vmatpush.bf16.msra.mxu0 %v779
    %858 = vmatpush.bf16.msra.mxu0 %v775
    %859 = vmatmul.bf16.gmra.mxu0 0
    %v860 = vpop.f32.mrf.mxu0
    %v861 = vadd.f32 0.0, %v860
    %v862 = vpop.f32.mrf.mxu0
    %863 = vdwg.mxu0
    %864 = vmatpush.bf16.msra.mxu0 %v804
    %865 = vmatpush.bf16.msra.mxu0 %v800
    %866 = vmatpush.bf16.msra.mxu0 %v796
    %867 = vmatpush.bf16.msra.mxu0 %v792
    %868 = vmatpush.bf16.msra.mxu0 %v788
    %869 = vmatpush.bf16.msra.mxu0 %v784
    %870 = vmatpush.bf16.msra.mxu0 %v780
    %871 = vmatpush.bf16.msra.mxu0 %v776
    %872 = vmatmul.bf16.gmra.mxu0 0
    %v873 = vpop.f32.mrf.mxu0
    %v874 = vadd.f32 0.0, %v873
    %v875 = vpop.f32.mrf.mxu0
    %876 = vdwg.mxu0
    %877 = vmatpush.bf16.msra.mxu0 %v805
    %878 = vmatpush.bf16.msra.mxu0 %v801
    %879 = vmatpush.bf16.msra.mxu0 %v797
    %880 = vmatpush.bf16.msra.mxu0 %v793
    %881 = vmatpush.bf16.msra.mxu0 %v789
    %882 = vmatpush.bf16.msra.mxu0 %v785
    %883 = vmatpush.bf16.msra.mxu0 %v781
    %884 = vmatpush.bf16.msra.mxu0 %v777
    %885 = vmatmul.bf16.gmra.mxu0 0
    %v886 = vpop.f32.mrf.mxu0
    %v887 = vadd.f32 0.0, %v886
    %v888 = vpop.f32.mrf.mxu0
    %889 = vdwg.mxu0
    %v890 = vadd.f32 %v674, %v848
    %v891 = vadd.f32 %v675, %v861
    %v892 = vadd.f32 %v676, %v874
    %v893 = vadd.f32 %v677, %v887
    %v894 = vxor.u32 %v890, 2147483648
    %v895 = vxor.u32 %v891, 2147483648
    %v896 = vxor.u32 %v892, 2147483648
    %v897 = vmul.f32 %v894, 1.442695
    %v898 = vpow.pop %v897
    %v899 = vmul.f32 %v895, 1.442695
    %v900 = vpow.pop %v899
    %v901 = vmul.f32 %v896, 1.442695
    %v902 = vpow.pop %v901
    %v903 = vadd.f32 %v898, 1.0
    %v904 = vadd.f32 %v900, 1.0
    %v905 = vadd.f32 %v902, 1.0
    %v906 = vrcp.pop %v903
    %v907 = vmul.f32 %v903, %v906
    %v908 = vsub.f32 1.0, %v907
    %v909 = vmul.f32 %v906, %v908
    %v910 = vadd.f32 %v906, %v909
    %vm911 = vweird.f32 %v903
    %vm912 = vweird.f32 %v906
    %vm913 = vmor %vm911, %vm912
    %v914 = vsel %vm913, %v906, %v910
    %v915 = vand.u32 2147483647, %v903
    %vm916 = vcmp.eq.f32.partialorder %v915, 8.507059e+37
    %v917 = vand.u32 %v903, 2147483648
    %v918 = vor.u32 1.1754944e-38, %v917
    %v919 = vsel %vm916, %v918, %v914
    %v920 = vmul.f32 1.0, %v919
    %v921 = vrcp.pop %v904
    %v922 = vmul.f32 %v904, %v921
    %v923 = vsub.f32 1.0, %v922
    %v924 = vmul.f32 %v921, %v923
    %v925 = vadd.f32 %v921, %v924
    %vm926 = vweird.f32 %v904
    %vm927 = vweird.f32 %v921
    %vm928 = vmor %vm926, %vm927
    %v929 = vsel %vm928, %v921, %v925
    %v930 = vand.u32 2147483647, %v904
    %vm931 = vcmp.eq.f32.partialorder %v930, 8.507059e+37
    %v932 = vand.u32 %v904, 2147483648
    %v933 = vor.u32 1.1754944e-38, %v932
    %v934 = vsel %vm931, %v933, %v929
    %v935 = vmul.f32 1.0, %v934
    %v936 = vrcp.pop %v905
    %v937 = vmul.f32 %v905, %v936
    %v938 = vsub.f32 1.0, %v937
    %v939 = vmul.f32 %v936, %v938
    %v940 = vadd.f32 %v936, %v939
    %vm941 = vweird.f32 %v905
    %vm942 = vweird.f32 %v936
    %vm943 = vmor %vm941, %vm942
    %v944 = vsel %vm943, %v936, %v940
    %v945 = vand.u32 2147483647, %v905
    %vm946 = vcmp.eq.f32.partialorder %v945, 8.507059e+37
    %v947 = vand.u32 %v905, 2147483648
    %v948 = vor.u32 1.1754944e-38, %v947
    %v949 = vsel %vm946, %v948, %v944
    %v950 = vmul.f32 1.0, %v949
    %v951 = vtanh.pop %v893
    %v952 = vmul.f32 %v935, 0.0
    %v953 = vmul.f32 %v920, %v951
    %v954 = vadd.f32 %v952, %v953
    %v955 = vtanh.pop %v954
    %v956 = vmul.f32 %v950, %v955
    %v957 = vld [vmem:[#allocation3 + $0x20] sm:$0xff]
    %v958 = vld [vmem:[#allocation3 + $0x28] sm:$0xff]
    %v959 = vld [vmem:[#allocation3 + $0x30] sm:$0xff]
    %v960 = vld [vmem:[#allocation3 + $0x38] sm:$0xff]
    %v961 = vpack.c.bf16 %v956, %v956
    %962 = vmatpush.bf16.msra.mxu0 %v802
    %963 = vmatpush.bf16.msra.mxu0 %v798
    %964 = vmatpush.bf16.msra.mxu0 %v794
    %965 = vmatpush.bf16.msra.mxu0 %v790
    %966 = vmatpush.bf16.msra.mxu0 %v786
    %967 = vmatpush.bf16.msra.mxu0 %v782
    %968 = vmatpush.bf16.msra.mxu0 %v778
    %969 = vmatpush.bf16.msra.mxu0 %v774
    %970 = vmatmul.bf16.gmra.mxu0 %v961
    %v971 = vpop.f32.mrf.mxu0
    %v972 = vadd.f32 0.0, %v971
    %v973 = vpop.f32.mrf.mxu0
    %974 = vdwg.mxu0
    %975 = vmatpush.bf16.msra.mxu0 %v803
    %976 = vmatpush.bf16.msra.mxu0 %v799
    %977 = vmatpush.bf16.msra.mxu0 %v795
    %978 = vmatpush.bf16.msra.mxu0 %v791
    %979 = vmatpush.bf16.msra.mxu0 %v787
    %980 = vmatpush.bf16.msra.mxu0 %v783
    %981 = vmatpush.bf16.msra.mxu0 %v779
    %982 = vmatpush.bf16.msra.mxu0 %v775
    %983 = vmatmul.bf16.gmra.mxu0 %v961
    %v984 = vpop.f32.mrf.mxu0
    %v985 = vadd.f32 0.0, %v984
    %v986 = vpop.f32.mrf.mxu0
    %987 = vdwg.mxu0
    %988 = vmatpush.bf16.msra.mxu0 %v804
    %989 = vmatpush.bf16.msra.mxu0 %v800
    %990 = vmatpush.bf16.msra.mxu0 %v796
    %991 = vmatpush.bf16.msra.mxu0 %v792
    %992 = vmatpush.bf16.msra.mxu0 %v788
    %993 = vmatpush.bf16.msra.mxu0 %v784
    %994 = vmatpush.bf16.msra.mxu0 %v780
    %995 = vmatpush.bf16.msra.mxu0 %v776
    %996 = vmatmul.bf16.gmra.mxu0 %v961
    %v997 = vpop.f32.mrf.mxu0
    %v998 = vadd.f32 0.0, %v997
    %v999 = vpop.f32.mrf.mxu0
    %1000 = vdwg.mxu0
    %1001 = vmatpush.bf16.msra.mxu0 %v805
    %1002 = vmatpush.bf16.msra.mxu0 %v801
    %1003 = vmatpush.bf16.msra.mxu0 %v797
    %1004 = vmatpush.bf16.msra.mxu0 %v793
    %1005 = vmatpush.bf16.msra.mxu0 %v789
    %1006 = vmatpush.bf16.msra.mxu0 %v785
    %1007 = vmatpush.bf16.msra.mxu0 %v781
    %1008 = vmatpush.bf16.msra.mxu0 %v777
    %1009 = vmatmul.bf16.gmra.mxu0 %v961
    %v1010 = vpop.f32.mrf.mxu0
    %v1011 = vadd.f32 0.0, %v1010
    %v1012 = vpop.f32.mrf.mxu0
    %1013 = vdwg.mxu0
    %v1014 = vadd.f32 %v957, %v972
    %v1015 = vadd.f32 %v958, %v985
    %v1016 = vadd.f32 %v959, %v998
    %v1017 = vadd.f32 %v960, %v1011
    %v1018 = vxor.u32 %v1014, 2147483648
    %v1019 = vxor.u32 %v1015, 2147483648
    %v1020 = vxor.u32 %v1016, 2147483648
    %v1021 = vmul.f32 %v1018, 1.442695
    %v1022 = vpow.pop %v1021
    %v1023 = vmul.f32 %v1019, 1.442695
    %v1024 = vpow.pop %v1023
    %v1025 = vmul.f32 %v1020, 1.442695
    %v1026 = vpow.pop %v1025
    %v1027 = vadd.f32 %v1022, 1.0
    %v1028 = vadd.f32 %v1024, 1.0
    %v1029 = vadd.f32 %v1026, 1.0
    %v1030 = vrcp.pop %v1027
    %v1031 = vmul.f32 %v1027, %v1030
    %v1032 = vsub.f32 1.0, %v1031
    %v1033 = vmul.f32 %v1030, %v1032
    %v1034 = vadd.f32 %v1030, %v1033
    %vm1035 = vweird.f32 %v1027
    %vm1036 = vweird.f32 %v1030
    %vm1037 = vmor %vm1035, %vm1036
    %v1038 = vsel %vm1037, %v1030, %v1034
    %v1039 = vand.u32 2147483647, %v1027
    %vm1040 = vcmp.eq.f32.partialorder %v1039, 8.507059e+37
    %v1041 = vand.u32 %v1027, 2147483648
    %v1042 = vor.u32 1.1754944e-38, %v1041
    %v1043 = vsel %vm1040, %v1042, %v1038
    %v1044 = vmul.f32 1.0, %v1043
    %v1045 = vrcp.pop %v1028
    %v1046 = vmul.f32 %v1028, %v1045
    %v1047 = vsub.f32 1.0, %v1046
    %v1048 = vmul.f32 %v1045, %v1047
    %v1049 = vadd.f32 %v1045, %v1048
    %vm1050 = vweird.f32 %v1028
    %vm1051 = vweird.f32 %v1045
    %vm1052 = vmor %vm1050, %vm1051
    %v1053 = vsel %vm1052, %v1045, %v1049
    %v1054 = vand.u32 2147483647, %v1028
    %vm1055 = vcmp.eq.f32.partialorder %v1054, 8.507059e+37
    %v1056 = vand.u32 %v1028, 2147483648
    %v1057 = vor.u32 1.1754944e-38, %v1056
    %v1058 = vsel %vm1055, %v1057, %v1053
    %v1059 = vmul.f32 1.0, %v1058
    %v1060 = vrcp.pop %v1029
    %v1061 = vmul.f32 %v1029, %v1060
    %v1062 = vsub.f32 1.0, %v1061
    %v1063 = vmul.f32 %v1060, %v1062
    %v1064 = vadd.f32 %v1060, %v1063
    %vm1065 = vweird.f32 %v1029
    %vm1066 = vweird.f32 %v1060
    %vm1067 = vmor %vm1065, %vm1066
    %v1068 = vsel %vm1067, %v1060, %v1064
    %v1069 = vand.u32 2147483647, %v1029
    %vm1070 = vcmp.eq.f32.partialorder %v1069, 8.507059e+37
    %v1071 = vand.u32 %v1029, 2147483648
    %v1072 = vor.u32 1.1754944e-38, %v1071
    %v1073 = vsel %vm1070, %v1072, %v1068
    %v1074 = vmul.f32 1.0, %v1073
    %v1075 = vtanh.pop %v1017
    %v1076 = vmul.f32 %v1059, %v954
    %v1077 = vmul.f32 %v1044, %v1075
    %v1078 = vadd.f32 %v1076, %v1077
    %v1079 = vtanh.pop %v1078
    %v1080 = vmul.f32 %v1074, %v1079
    %v1081 = vpack.c.bf16 0.0, 0.0
    %v1083 = vperm.slane %v673, 0
    %v1084 = vperm.slane %v673, 1
    %v1085 = vperm.slane %v673, 2
    %v1086 = vperm.slane %v673, 3
    %v1155 = vunpack.c.l.b16 %v609
    %v1156 = vunpack.c.h.b16 %v609
    %v1157 = vunpack.c.l.b16 %v610
    %v1158 = vunpack.c.h.b16 %v610
    %v1159 = vunpack.c.l.b16 %v611
    %v1160 = vunpack.c.h.b16 %v611
    %v1161 = vunpack.c.l.b16 %v612
    %v1162 = vunpack.c.h.b16 %v612
    %v1163 = vunpack.c.l.b16 %v613
    %v1164 = vunpack.c.h.b16 %v613
    %v1165 = vunpack.c.l.b16 %v614
    %v1166 = vunpack.c.h.b16 %v614
    %v1167 = vunpack.c.l.b16 %v615
    %v1168 = vunpack.c.h.b16 %v615
    %v1169 = vunpack.c.l.b16 %v616
    %v1170 = vunpack.c.h.b16 %v616
    %v1171 = vunpack.c.l.b16 %v617
    %v1172 = vunpack.c.h.b16 %v617
    %v1173 = vunpack.c.l.b16 %v618
    %v1174 = vunpack.c.h.b16 %v618
    %v1175 = vunpack.c.l.b16 %v619
    %v1176 = vunpack.c.h.b16 %v619
    %v1177 = vunpack.c.l.b16 %v620
    %v1178 = vunpack.c.h.b16 %v620
    %v1179 = vunpack.c.l.b16 %v621
    %v1180 = vunpack.c.h.b16 %v621
    %v1181 = vunpack.c.l.b16 %v622
    %v1182 = vunpack.c.h.b16 %v622
    %v1183 = vunpack.c.l.b16 %v623
    %v1184 = vunpack.c.h.b16 %v623
    %v1185 = vunpack.c.l.b16 %v624
    %v1186 = vunpack.c.h.b16 %v624
    %v1187 = vunpack.c.l.b16 %v625
    %v1188 = vunpack.c.h.b16 %v625
    %v1189 = vunpack.c.l.b16 %v626
    %v1190 = vunpack.c.h.b16 %v626
    %v1191 = vunpack.c.l.b16 %v627
    %v1192 = vunpack.c.h.b16 %v627
    %v1193 = vunpack.c.l.b16 %v628
    %v1194 = vunpack.c.h.b16 %v628
    %v1195 = vunpack.c.l.b16 %v629
    %v1196 = vunpack.c.h.b16 %v629
    %v1197 = vunpack.c.l.b16 %v630
    %v1198 = vunpack.c.h.b16 %v630
    %v1199 = vunpack.c.l.b16 %v631
    %v1200 = vunpack.c.h.b16 %v631
    %v1201 = vunpack.c.l.b16 %v632
    %v1202 = vunpack.c.h.b16 %v632
    %v1203 = vunpack.c.l.b16 %v633
    %v1204 = vunpack.c.h.b16 %v633
    %v1205 = vunpack.c.l.b16 %v634
    %v1206 = vunpack.c.h.b16 %v634
    %v1207 = vunpack.c.l.b16 %v635
    %v1208 = vunpack.c.h.b16 %v635
    %v1209 = vunpack.c.l.b16 %v636
    %v1210 = vunpack.c.h.b16 %v636
    %v1211 = vunpack.c.l.b16 %v637
    %v1212 = vunpack.c.h.b16 %v637
    %v1213 = vunpack.c.l.b16 %v638
    %v1214 = vunpack.c.h.b16 %v638
    %v1215 = vunpack.c.l.b16 %v639
    %v1216 = vunpack.c.h.b16 %v639
    %v1217 = vunpack.c.l.b16 %v640
    %v1218 = vunpack.c.h.b16 %v640
    %v1219 = vunpack.c.l.b16 %v641
    %v1220 = vunpack.c.h.b16 %v641
    %v1221 = vunpack.c.l.b16 %v642
    %v1222 = vunpack.c.h.b16 %v642
    %v1223 = vunpack.c.l.b16 %v643
    %v1224 = vunpack.c.h.b16 %v643
    %v1225 = vunpack.c.l.b16 %v644
    %v1226 = vunpack.c.h.b16 %v644
    %v1227 = vunpack.c.l.b16 %v645
    %v1228 = vunpack.c.h.b16 %v645
    %v1229 = vunpack.c.l.b16 %v646
    %v1230 = vunpack.c.h.b16 %v646
    %v1231 = vunpack.c.l.b16 %v647
    %v1232 = vunpack.c.h.b16 %v647
    %v1233 = vunpack.c.l.b16 %v648
    %v1234 = vunpack.c.h.b16 %v648
    %v1235 = vunpack.c.l.b16 %v649
    %v1236 = vunpack.c.h.b16 %v649
    %v1237 = vunpack.c.l.b16 %v650
    %v1238 = vunpack.c.h.b16 %v650
    %v1239 = vunpack.c.l.b16 %v651
    %v1240 = vunpack.c.h.b16 %v651
    %v1241 = vunpack.c.l.b16 %v652
    %v1242 = vunpack.c.h.b16 %v652
    %v1243 = vunpack.c.l.b16 %v653
    %v1244 = vunpack.c.h.b16 %v653
    %v1245 = vunpack.c.l.b16 %v654
    %v1246 = vunpack.c.h.b16 %v654
    %v1247 = vunpack.c.l.b16 %v655
    %v1248 = vunpack.c.h.b16 %v655
    %v1249 = vunpack.c.l.b16 %v656
    %v1250 = vunpack.c.h.b16 %v656
    %v1251 = vunpack.c.l.b16 %v657
    %v1252 = vunpack.c.h.b16 %v657
    %v1253 = vunpack.c.l.b16 %v658
    %v1254 = vunpack.c.h.b16 %v658
    %v1255 = vunpack.c.l.b16 %v659
    %v1256 = vunpack.c.h.b16 %v659
    %v1257 = vunpack.c.l.b16 %v660
    %v1258 = vunpack.c.h.b16 %v660
    %v1259 = vunpack.c.l.b16 %v661
    %v1260 = vunpack.c.h.b16 %v661
    %v1261 = vunpack.c.l.b16 %v662
    %v1262 = vunpack.c.h.b16 %v662
    %v1263 = vunpack.c.l.b16 %v663
    %v1264 = vunpack.c.h.b16 %v663
    %v1265 = vunpack.c.l.b16 %v664
    %v1266 = vunpack.c.h.b16 %v664
    %v1267 = vunpack.c.l.b16 %v665
    %v1268 = vunpack.c.h.b16 %v665
    %v1269 = vunpack.c.l.b16 %v666
    %v1270 = vunpack.c.h.b16 %v666
    %v1271 = vunpack.c.l.b16 %v667
    %v1272 = vunpack.c.h.b16 %v667
    %v1273 = vunpack.c.l.b16 %v668
    %v1274 = vunpack.c.h.b16 %v668
    %v1275 = vunpack.c.l.b16 %v669
    %v1276 = vunpack.c.h.b16 %v669
    %v1277 = vunpack.c.l.b16 %v670
    %v1278 = vunpack.c.h.b16 %v670
    %v1279 = vunpack.c.l.b16 %v671
    %v1280 = vunpack.c.h.b16 %v671
    %v1281 = vunpack.c.l.b16 %v672
    %v1282 = vunpack.c.h.b16 %v672
    %v1283 = vpack.c.b16 %v1159, %v1155
    %v1284 = vpack.c.b16 %v1160, %v1156
    %v1285 = vpack.c.b16 %v1161, %v1157
    %v1286 = vpack.c.b16 %v1162, %v1158
    %v1287 = vpack.c.b16 %v1167, %v1163
    %v1288 = vpack.c.b16 %v1168, %v1164
    %v1289 = vpack.c.b16 %v1169, %v1165
    %v1290 = vpack.c.b16 %v1170, %v1166
    %v1291 = vpack.c.b16 %v1175, %v1171
    %v1292 = vpack.c.b16 %v1176, %v1172
    %v1293 = vpack.c.b16 %v1177, %v1173
    %v1294 = vpack.c.b16 %v1178, %v1174
    %v1295 = vpack.c.b16 %v1183, %v1179
    %v1296 = vpack.c.b16 %v1184, %v1180
    %v1297 = vpack.c.b16 %v1185, %v1181
    %v1298 = vpack.c.b16 %v1186, %v1182
    %v1299 = vpack.c.b16 %v1191, %v1187
    %v1300 = vpack.c.b16 %v1192, %v1188
    %v1301 = vpack.c.b16 %v1193, %v1189
    %v1302 = vpack.c.b16 %v1194, %v1190
    %v1303 = vpack.c.b16 %v1199, %v1195
    %v1304 = vpack.c.b16 %v1200, %v1196
    %v1305 = vpack.c.b16 %v1201, %v1197
    %v1306 = vpack.c.b16 %v1202, %v1198
    %v1307 = vpack.c.b16 %v1207, %v1203
    %v1308 = vpack.c.b16 %v1208, %v1204
    %v1309 = vpack.c.b16 %v1209, %v1205
    %v1310 = vpack.c.b16 %v1210, %v1206
    %v1311 = vpack.c.b16 %v1215, %v1211
    %v1312 = vpack.c.b16 %v1216, %v1212
    %v1313 = vpack.c.b16 %v1217, %v1213
    %v1314 = vpack.c.b16 %v1218, %v1214
    %v1315 = vpack.c.b16 %v1223, %v1219
    %v1316 = vpack.c.b16 %v1224, %v1220
    %v1317 = vpack.c.b16 %v1225, %v1221
    %v1318 = vpack.c.b16 %v1226, %v1222
    %v1319 = vpack.c.b16 %v1231, %v1227
    %v1320 = vpack.c.b16 %v1232, %v1228
    %v1321 = vpack.c.b16 %v1233, %v1229
    %v1322 = vpack.c.b16 %v1234, %v1230
    %v1323 = vpack.c.b16 %v1239, %v1235
    %v1324 = vpack.c.b16 %v1240, %v1236
    %v1325 = vpack.c.b16 %v1241, %v1237
    %v1326 = vpack.c.b16 %v1242, %v1238
    %v1327 = vpack.c.b16 %v1247, %v1243
    %v1328 = vpack.c.b16 %v1248, %v1244
    %v1329 = vpack.c.b16 %v1249, %v1245
    %v1330 = vpack.c.b16 %v1250, %v1246
    %v1331 = vpack.c.b16 %v1255, %v1251
    %v1332 = vpack.c.b16 %v1256, %v1252
    %v1333 = vpack.c.b16 %v1257, %v1253
    %v1334 = vpack.c.b16 %v1258, %v1254
    %v1335 = vpack.c.b16 %v1263, %v1259
    %v1336 = vpack.c.b16 %v1264, %v1260
    %v1337 = vpack.c.b16 %v1265, %v1261
    %v1338 = vpack.c.b16 %v1266, %v1262
    %v1339 = vpack.c.b16 %v1271, %v1267
    %v1340 = vpack.c.b16 %v1272, %v1268
    %v1341 = vpack.c.b16 %v1273, %v1269
    %v1342 = vpack.c.b16 %v1274, %v1270
    %v1343 = vpack.c.b16 %v1279, %v1275
    %v1344 = vpack.c.b16 %v1280, %v1276
    %v1345 = vpack.c.b16 %v1281, %v1277
    %v1346 = vpack.c.b16 %v1282, %v1278
    %1411 = vmatpush.bf16.msra.mxu0 %v1311
    %1412 = vmatpush.bf16.msra.mxu0 %v1307
    %1413 = vmatpush.bf16.msra.mxu0 %v1303
    %1414 = vmatpush.bf16.msra.mxu0 %v1299
    %1415 = vmatpush.bf16.msra.mxu0 %v1295
    %1416 = vmatpush.bf16.msra.mxu0 %v1291
    %1417 = vmatpush.bf16.msra.mxu0 %v1287
    %1418 = vmatpush.bf16.msra.mxu0 %v1283
    %1419 = vmatmul.bf16.gmra.mxu0 %v961
    %v1420 = vpop.f32.mrf.mxu0
    %v1421 = vadd.f32 %v1083, %v1420
    %v1422 = vpop.f32.mrf.mxu0
    %1423 = vdwg.mxu0
    %1424 = vmatpush.bf16.msra.mxu0 %v1343
    %1425 = vmatpush.bf16.msra.mxu0 %v1339
    %1426 = vmatpush.bf16.msra.mxu0 %v1335
    %1427 = vmatpush.bf16.msra.mxu0 %v1331
    %1428 = vmatpush.bf16.msra.mxu0 %v1327
    %1429 = vmatpush.bf16.msra.mxu0 %v1323
    %1430 = vmatpush.bf16.msra.mxu0 %v1319
    %1431 = vmatpush.bf16.msra.mxu0 %v1315
    %1432 = vmatmul.bf16.gmra.mxu0 %v1081
    %v1433 = vpop.f32.mrf.mxu0
    %v1434 = vadd.f32 %v1421, %v1433
    %v1435 = vpop.f32.mrf.mxu0
    %1436 = vdwg.mxu0
    %1437 = vmatpush.bf16.msra.mxu0 %v1312
    %1438 = vmatpush.bf16.msra.mxu0 %v1308
    %1439 = vmatpush.bf16.msra.mxu0 %v1304
    %1440 = vmatpush.bf16.msra.mxu0 %v1300
    %1441 = vmatpush.bf16.msra.mxu0 %v1296
    %1442 = vmatpush.bf16.msra.mxu0 %v1292
    %1443 = vmatpush.bf16.msra.mxu0 %v1288
    %1444 = vmatpush.bf16.msra.mxu0 %v1284
    %1445 = vmatmul.bf16.gmra.mxu0 %v961
    %v1446 = vpop.f32.mrf.mxu0
    %v1447 = vadd.f32 %v1084, %v1446
    %v1448 = vpop.f32.mrf.mxu0
    %1449 = vdwg.mxu0
    %1450 = vmatpush.bf16.msra.mxu0 %v1344
    %1451 = vmatpush.bf16.msra.mxu0 %v1340
    %1452 = vmatpush.bf16.msra.mxu0 %v1336
    %1453 = vmatpush.bf16.msra.mxu0 %v1332
    %1454 = vmatpush.bf16.msra.mxu0 %v1328
    %1455 = vmatpush.bf16.msra.mxu0 %v1324
    %1456 = vmatpush.bf16.msra.mxu0 %v1320
    %1457 = vmatpush.bf16.msra.mxu0 %v1316
    %1458 = vmatmul.bf16.gmra.mxu0 %v1081
    %v1459 = vpop.f32.mrf.mxu0
    %v1460 = vadd.f32 %v1447, %v1459
    %v1461 = vpop.f32.mrf.mxu0
    %1462 = vdwg.mxu0
    %1463 = vmatpush.bf16.msra.mxu0 %v1313
    %1464 = vmatpush.bf16.msra.mxu0 %v1309
    %1465 = vmatpush.bf16.msra.mxu0 %v1305
    %1466 = vmatpush.bf16.msra.mxu0 %v1301
    %1467 = vmatpush.bf16.msra.mxu0 %v1297
    %1468 = vmatpush.bf16.msra.mxu0 %v1293
    %1469 = vmatpush.bf16.msra.mxu0 %v1289
    %1470 = vmatpush.bf16.msra.mxu0 %v1285
    %1471 = vmatmul.bf16.gmra.mxu0 %v961
    %v1472 = vpop.f32.mrf.mxu0
    %v1473 = vadd.f32 %v1085, %v1472
    %v1474 = vpop.f32.mrf.mxu0
    %1475 = vdwg.mxu0
    %1476 = vmatpush.bf16.msra.mxu0 %v1345
    %1477 = vmatpush.bf16.msra.mxu0 %v1341
    %1478 = vmatpush.bf16.msra.mxu0 %v1337
    %1479 = vmatpush.bf16.msra.mxu0 %v1333
    %1480 = vmatpush.bf16.msra.mxu0 %v1329
    %1481 = vmatpush.bf16.msra.mxu0 %v1325
    %1482 = vmatpush.bf16.msra.mxu0 %v1321
    %1483 = vmatpush.bf16.msra.mxu0 %v1317
    %1484 = vmatmul.bf16.gmra.mxu0 %v1081
    %v1485 = vpop.f32.mrf.mxu0
    %v1486 = vadd.f32 %v1473, %v1485
    %v1487 = vpop.f32.mrf.mxu0
    %1488 = vdwg.mxu0
    %1489 = vmatpush.bf16.msra.mxu0 %v1314
    %1490 = vmatpush.bf16.msra.mxu0 %v1310
    %1491 = vmatpush.bf16.msra.mxu0 %v1306
    %1492 = vmatpush.bf16.msra.mxu0 %v1302
    %1493 = vmatpush.bf16.msra.mxu0 %v1298
    %1494 = vmatpush.bf16.msra.mxu0 %v1294
    %1495 = vmatpush.bf16.msra.mxu0 %v1290
    %1496 = vmatpush.bf16.msra.mxu0 %v1286
    %1497 = vmatmul.bf16.gmra.mxu0 %v961
    %v1498 = vpop.f32.mrf.mxu0
    %v1499 = vadd.f32 %v1086, %v1498
    %v1500 = vpop.f32.mrf.mxu0
    %1501 = vdwg.mxu0
    %1502 = vmatpush.bf16.msra.mxu0 %v1346
    %1503 = vmatpush.bf16.msra.mxu0 %v1342
    %1504 = vmatpush.bf16.msra.mxu0 %v1338
    %1505 = vmatpush.bf16.msra.mxu0 %v1334
    %1506 = vmatpush.bf16.msra.mxu0 %v1330
    %1507 = vmatpush.bf16.msra.mxu0 %v1326
    %1508 = vmatpush.bf16.msra.mxu0 %v1322
    %1509 = vmatpush.bf16.msra.mxu0 %v1318
    %1510 = vmatmul.bf16.gmra.mxu0 %v1081
    %v1511 = vpop.f32.mrf.mxu0
    %v1512 = vadd.f32 %v1499, %v1511
    %v1513 = vpop.f32.mrf.mxu0
    %1514 = vdwg.mxu0
    %v1515 = vxor.u32 %v1434, 2147483648
    %v1516 = vxor.u32 %v1460, 2147483648
    %v1517 = vxor.u32 %v1486, 2147483648
    %v1518 = vmul.f32 %v1515, 1.442695
    %v1519 = vpow.pop %v1518
    %v1520 = vmul.f32 %v1516, 1.442695
    %v1521 = vpow.pop %v1520
    %v1522 = vmul.f32 %v1517, 1.442695
    %v1523 = vpow.pop %v1522
    %v1524 = vadd.f32 %v1519, 1.0
    %v1525 = vadd.f32 %v1521, 1.0
    %v1526 = vadd.f32 %v1523, 1.0
    %v1527 = vrcp.pop %v1524
    %v1528 = vmul.f32 %v1524, %v1527
    %v1529 = vsub.f32 1.0, %v1528
    %v1530 = vmul.f32 %v1527, %v1529
    %v1531 = vadd.f32 %v1527, %v1530
    %vm1532 = vweird.f32 %v1524
    %vm1533 = vweird.f32 %v1527
    %vm1534 = vmor %vm1532, %vm1533
    %v1535 = vsel %vm1534, %v1527, %v1531
    %v1536 = vand.u32 2147483647, %v1524
    %vm1537 = vcmp.eq.f32.partialorder %v1536, 8.507059e+37
    %v1538 = vand.u32 %v1524, 2147483648
    %v1539 = vor.u32 1.1754944e-38, %v1538
    %v1540 = vsel %vm1537, %v1539, %v1535
    %v1541 = vmul.f32 1.0, %v1540
    %v1542 = vrcp.pop %v1525
    %v1543 = vmul.f32 %v1525, %v1542
    %v1544 = vsub.f32 1.0, %v1543
    %v1545 = vmul.f32 %v1542, %v1544
    %v1546 = vadd.f32 %v1542, %v1545
    %vm1547 = vweird.f32 %v1525
    %vm1548 = vweird.f32 %v1542
    %vm1549 = vmor %vm1547, %vm1548
    %v1550 = vsel %vm1549, %v1542, %v1546
    %v1551 = vand.u32 2147483647, %v1525
    %vm1552 = vcmp.eq.f32.partialorder %v1551, 8.507059e+37
    %v1553 = vand.u32 %v1525, 2147483648
    %v1554 = vor.u32 1.1754944e-38, %v1553
    %v1555 = vsel %vm1552, %v1554, %v1550
    %v1556 = vmul.f32 1.0, %v1555
    %v1557 = vrcp.pop %v1526
    %v1558 = vmul.f32 %v1526, %v1557
    %v1559 = vsub.f32 1.0, %v1558
    %v1560 = vmul.f32 %v1557, %v1559
    %v1561 = vadd.f32 %v1557, %v1560
    %vm1562 = vweird.f32 %v1526
    %vm1563 = vweird.f32 %v1557
    %vm1564 = vmor %vm1562, %vm1563
    %v1565 = vsel %vm1564, %v1557, %v1561
    %v1566 = vand.u32 2147483647, %v1526
    %vm1567 = vcmp.eq.f32.partialorder %v1566, 8.507059e+37
    %v1568 = vand.u32 %v1526, 2147483648
    %v1569 = vor.u32 1.1754944e-38, %v1568
    %v1570 = vsel %vm1567, %v1569, %v1565
    %v1571 = vmul.f32 1.0, %v1570
    %v1572 = vtanh.pop %v1512
    %v1573 = vmul.f32 %v1556, 0.0
    %v1574 = vmul.f32 %v1541, %v1572
    %v1575 = vadd.f32 %v1573, %v1574
    %v1576 = vtanh.pop %v1575
    %v1577 = vmul.f32 %v1571, %v1576
    %v1578 = vld [vmem:[#allocation3 + $0x40] sm:$0xff]
    %v1579 = vld [vmem:[#allocation3 + $0x48] sm:$0xff]
    %v1580 = vld [vmem:[#allocation3 + $0x50] sm:$0xff]
    %v1581 = vld [vmem:[#allocation3 + $0x58] sm:$0xff]
    %v1582 = vpack.c.bf16 %v1080, %v1080
    %1583 = vmatpush.bf16.msra.mxu0 %v802
    %1584 = vmatpush.bf16.msra.mxu0 %v798
    %1585 = vmatpush.bf16.msra.mxu0 %v794
    %1586 = vmatpush.bf16.msra.mxu0 %v790
    %1587 = vmatpush.bf16.msra.mxu0 %v786
    %1588 = vmatpush.bf16.msra.mxu0 %v782
    %1589 = vmatpush.bf16.msra.mxu0 %v778
    %1590 = vmatpush.bf16.msra.mxu0 %v774
    %1591 = vmatmul.bf16.gmra.mxu0 %v1582
    %v1592 = vpop.f32.mrf.mxu0
    %v1593 = vadd.f32 0.0, %v1592
    %v1594 = vpop.f32.mrf.mxu0
    %1595 = vdwg.mxu0
    %1596 = vmatpush.bf16.msra.mxu0 %v803
    %1597 = vmatpush.bf16.msra.mxu0 %v799
    %1598 = vmatpush.bf16.msra.mxu0 %v795
    %1599 = vmatpush.bf16.msra.mxu0 %v791
    %1600 = vmatpush.bf16.msra.mxu0 %v787
    %1601 = vmatpush.bf16.msra.mxu0 %v783
    %1602 = vmatpush.bf16.msra.mxu0 %v779
    %1603 = vmatpush.bf16.msra.mxu0 %v775
    %1604 = vmatmul.bf16.gmra.mxu0 %v1582
    %v1605 = vpop.f32.mrf.mxu0
    %v1606 = vadd.f32 0.0, %v1605
    %v1607 = vpop.f32.mrf.mxu0
    %1608 = vdwg.mxu0
    %1609 = vmatpush.bf16.msra.mxu0 %v804
    %1610 = vmatpush.bf16.msra.mxu0 %v800
    %1611 = vmatpush.bf16.msra.mxu0 %v796
    %1612 = vmatpush.bf16.msra.mxu0 %v792
    %1613 = vmatpush.bf16.msra.mxu0 %v788
    %1614 = vmatpush.bf16.msra.mxu0 %v784
    %1615 = vmatpush.bf16.msra.mxu0 %v780
    %1616 = vmatpush.bf16.msra.mxu0 %v776
    %1617 = vmatmul.bf16.gmra.mxu0 %v1582
    %v1618 = vpop.f32.mrf.mxu0
    %v1619 = vadd.f32 0.0, %v1618
    %v1620 = vpop.f32.mrf.mxu0
    %1621 = vdwg.mxu0
    %1622 = vmatpush.bf16.msra.mxu0 %v805
    %1623 = vmatpush.bf16.msra.mxu0 %v801
    %1624 = vmatpush.bf16.msra.mxu0 %v797
    %1625 = vmatpush.bf16.msra.mxu0 %v793
    %1626 = vmatpush.bf16.msra.mxu0 %v789
    %1627 = vmatpush.bf16.msra.mxu0 %v785
    %1628 = vmatpush.bf16.msra.mxu0 %v781
    %1629 = vmatpush.bf16.msra.mxu0 %v777
    %1630 = vmatmul.bf16.gmra.mxu0 %v1582
    %v1631 = vpop.f32.mrf.mxu0
    %v1632 = vadd.f32 0.0, %v1631
    %v1633 = vpop.f32.mrf.mxu0
    %1634 = vdwg.mxu0
    %v1635 = vadd.f32 %v1578, %v1593
    %v1636 = vadd.f32 %v1579, %v1606
    %v1637 = vadd.f32 %v1580, %v1619
    %v1638 = vadd.f32 %v1581, %v1632
    %v1639 = vxor.u32 %v1635, 2147483648
    %v1640 = vxor.u32 %v1636, 2147483648
    %v1641 = vxor.u32 %v1637, 2147483648
    %v1642 = vmul.f32 %v1639, 1.442695
    %v1643 = vpow.pop %v1642
    %v1644 = vmul.f32 %v1640, 1.442695
    %v1645 = vpow.pop %v1644
    %v1646 = vmul.f32 %v1641, 1.442695
    %v1647 = vpow.pop %v1646
    %v1648 = vadd.f32 %v1643, 1.0
    %v1649 = vadd.f32 %v1645, 1.0
    %v1650 = vadd.f32 %v1647, 1.0
    %v1651 = vrcp.pop %v1648
    %v1652 = vmul.f32 %v1648, %v1651
    %v1653 = vsub.f32 1.0, %v1652
    %v1654 = vmul.f32 %v1651, %v1653
    %v1655 = vadd.f32 %v1651, %v1654
    %vm1656 = vweird.f32 %v1648
    %vm1657 = vweird.f32 %v1651
    %vm1658 = vmor %vm1656, %vm1657
    %v1659 = vsel %vm1658, %v1651, %v1655
    %v1660 = vand.u32 2147483647, %v1648
    %vm1661 = vcmp.eq.f32.partialorder %v1660, 8.507059e+37
    %v1662 = vand.u32 %v1648, 2147483648
    %v1663 = vor.u32 1.1754944e-38, %v1662
    %v1664 = vsel %vm1661, %v1663, %v1659
    %v1665 = vmul.f32 1.0, %v1664
    %v1666 = vrcp.pop %v1649
    %v1667 = vmul.f32 %v1649, %v1666
    %v1668 = vsub.f32 1.0, %v1667
    %v1669 = vmul.f32 %v1666, %v1668
    %v1670 = vadd.f32 %v1666, %v1669
    %vm1671 = vweird.f32 %v1649
    %vm1672 = vweird.f32 %v1666
    %vm1673 = vmor %vm1671, %vm1672
    %v1674 = vsel %vm1673, %v1666, %v1670
    %v1675 = vand.u32 2147483647, %v1649
    %vm1676 = vcmp.eq.f32.partialorder %v1675, 8.507059e+37
    %v1677 = vand.u32 %v1649, 2147483648
    %v1678 = vor.u32 1.1754944e-38, %v1677
    %v1679 = vsel %vm1676, %v1678, %v1674
    %v1680 = vmul.f32 1.0, %v1679
    %v1681 = vrcp.pop %v1650
    %v1682 = vmul.f32 %v1650, %v1681
    %v1683 = vsub.f32 1.0, %v1682
    %v1684 = vmul.f32 %v1681, %v1683
    %v1685 = vadd.f32 %v1681, %v1684
    %vm1686 = vweird.f32 %v1650
    %vm1687 = vweird.f32 %v1681
    %vm1688 = vmor %vm1686, %vm1687
    %v1689 = vsel %vm1688, %v1681, %v1685
    %v1690 = vand.u32 2147483647, %v1650
    %vm1691 = vcmp.eq.f32.partialorder %v1690, 8.507059e+37
    %v1692 = vand.u32 %v1650, 2147483648
    %v1693 = vor.u32 1.1754944e-38, %v1692
    %v1694 = vsel %vm1691, %v1693, %v1689
    %v1695 = vmul.f32 1.0, %v1694
    %v1696 = vtanh.pop %v1638
    %v1697 = vmul.f32 %v1680, %v1078
    %v1698 = vmul.f32 %v1665, %v1696
    %v1699 = vadd.f32 %v1697, %v1698
    %v1700 = vtanh.pop %v1699
    %v1701 = vmul.f32 %v1695, %v1700
    %v1702 = vpack.c.bf16 %v1577, %v1577
    %1703 = vmatpush.bf16.msra.mxu0 %v1311
    %1704 = vmatpush.bf16.msra.mxu0 %v1307
    %1705 = vmatpush.bf16.msra.mxu0 %v1303
    %1706 = vmatpush.bf16.msra.mxu0 %v1299
    %1707 = vmatpush.bf16.msra.mxu0 %v1295
    %1708 = vmatpush.bf16.msra.mxu0 %v1291
    %1709 = vmatpush.bf16.msra.mxu0 %v1287
    %1710 = vmatpush.bf16.msra.mxu0 %v1283
    %1711 = vmatmul.bf16.gmra.mxu0 %v1582
    %v1712 = vpop.f32.mrf.mxu0
    %v1713 = vadd.f32 %v1083, %v1712
    %v1714 = vpop.f32.mrf.mxu0
    %1715 = vdwg.mxu0
    %1716 = vmatpush.bf16.msra.mxu0 %v1343
    %1717 = vmatpush.bf16.msra.mxu0 %v1339
    %1718 = vmatpush.bf16.msra.mxu0 %v1335
    %1719 = vmatpush.bf16.msra.mxu0 %v1331
    %1720 = vmatpush.bf16.msra.mxu0 %v1327
    %1721 = vmatpush.bf16.msra.mxu0 %v1323
    %1722 = vmatpush.bf16.msra.mxu0 %v1319
    %1723 = vmatpush.bf16.msra.mxu0 %v1315
    %1724 = vmatmul.bf16.gmra.mxu0 %v1702
    %v1725 = vpop.f32.mrf.mxu0
    %v1726 = vadd.f32 %v1713, %v1725
    %v1727 = vpop.f32.mrf.mxu0
    %1728 = vdwg.mxu0
    %1729 = vmatpush.bf16.msra.mxu0 %v1312
    %1730 = vmatpush.bf16.msra.mxu0 %v1308
    %1731 = vmatpush.bf16.msra.mxu0 %v1304
    %1732 = vmatpush.bf16.msra.mxu0 %v1300
    %1733 = vmatpush.bf16.msra.mxu0 %v1296
    %1734 = vmatpush.bf16.msra.mxu0 %v1292
    %1735 = vmatpush.bf16.msra.mxu0 %v1288
    %1736 = vmatpush.bf16.msra.mxu0 %v1284
    %1737 = vmatmul.bf16.gmra.mxu0 %v1582
    %v1738 = vpop.f32.mrf.mxu0
    %v1739 = vadd.f32 %v1084, %v1738
    %v1740 = vpop.f32.mrf.mxu0
    %1741 = vdwg.mxu0
    %1742 = vmatpush.bf16.msra.mxu0 %v1344
    %1743 = vmatpush.bf16.msra.mxu0 %v1340
    %1744 = vmatpush.bf16.msra.mxu0 %v1336
    %1745 = vmatpush.bf16.msra.mxu0 %v1332
    %1746 = vmatpush.bf16.msra.mxu0 %v1328
    %1747 = vmatpush.bf16.msra.mxu0 %v1324
    %1748 = vmatpush.bf16.msra.mxu0 %v1320
    %1749 = vmatpush.bf16.msra.mxu0 %v1316
    %1750 = vmatmul.bf16.gmra.mxu0 %v1702
    %v1751 = vpop.f32.mrf.mxu0
    %v1752 = vadd.f32 %v1739, %v1751
    %v1753 = vpop.f32.mrf.mxu0
    %1754 = vdwg.mxu0
    %1755 = vmatpush.bf16.msra.mxu0 %v1313
    %1756 = vmatpush.bf16.msra.mxu0 %v1309
    %1757 = vmatpush.bf16.msra.mxu0 %v1305
    %1758 = vmatpush.bf16.msra.mxu0 %v1301
    %1759 = vmatpush.bf16.msra.mxu0 %v1297
    %1760 = vmatpush.bf16.msra.mxu0 %v1293
    %1761 = vmatpush.bf16.msra.mxu0 %v1289
    %1762 = vmatpush.bf16.msra.mxu0 %v1285
    %1763 = vmatmul.bf16.gmra.mxu0 %v1582
    %v1764 = vpop.f32.mrf.mxu0
    %v1765 = vadd.f32 %v1085, %v1764
    %v1766 = vpop.f32.mrf.mxu0
    %1767 = vdwg.mxu0
    %1768 = vmatpush.bf16.msra.mxu0 %v1345
    %1769 = vmatpush.bf16.msra.mxu0 %v1341
    %1770 = vmatpush.bf16.msra.mxu0 %v1337
    %1771 = vmatpush.bf16.msra.mxu0 %v1333
    %1772 = vmatpush.bf16.msra.mxu0 %v1329
    %1773 = vmatpush.bf16.msra.mxu0 %v1325
    %1774 = vmatpush.bf16.msra.mxu0 %v1321
    %1775 = vmatpush.bf16.msra.mxu0 %v1317
    %1776 = vmatmul.bf16.gmra.mxu0 %v1702
    %v1777 = vpop.f32.mrf.mxu0
    %v1778 = vadd.f32 %v1765, %v1777
    %v1779 = vpop.f32.mrf.mxu0
    %1780 = vdwg.mxu0
    %1781 = vmatpush.bf16.msra.mxu0 %v1314
    %1782 = vmatpush.bf16.msra.mxu0 %v1310
    %1783 = vmatpush.bf16.msra.mxu0 %v1306
    %1784 = vmatpush.bf16.msra.mxu0 %v1302
    %1785 = vmatpush.bf16.msra.mxu0 %v1298
    %1786 = vmatpush.bf16.msra.mxu0 %v1294
    %1787 = vmatpush.bf16.msra.mxu0 %v1290
    %1788 = vmatpush.bf16.msra.mxu0 %v1286
    %1789 = vmatmul.bf16.gmra.mxu0 %v1582
    %v1790 = vpop.f32.mrf.mxu0
    %v1791 = vadd.f32 %v1086, %v1790
    %v1792 = vpop.f32.mrf.mxu0
    %1793 = vdwg.mxu0
    %1794 = vmatpush.bf16.msra.mxu0 %v1346
    %1795 = vmatpush.bf16.msra.mxu0 %v1342
    %1796 = vmatpush.bf16.msra.mxu0 %v1338
    %1797 = vmatpush.bf16.msra.mxu0 %v1334
    %1798 = vmatpush.bf16.msra.mxu0 %v1330
    %1799 = vmatpush.bf16.msra.mxu0 %v1326
    %1800 = vmatpush.bf16.msra.mxu0 %v1322
    %1801 = vmatpush.bf16.msra.mxu0 %v1318
    %1802 = vmatmul.bf16.gmra.mxu0 %v1702
    %v1803 = vpop.f32.mrf.mxu0
    %v1804 = vadd.f32 %v1791, %v1803
    %v1805 = vpop.f32.mrf.mxu0
    %1806 = vdwg.mxu0
    %v1807 = vxor.u32 %v1726, 2147483648
    %v1808 = vxor.u32 %v1752, 2147483648
    %v1809 = vxor.u32 %v1778, 2147483648
    %v1810 = vmul.f32 %v1807, 1.442695
    %v1811 = vpow.pop %v1810
    %v1812 = vmul.f32 %v1808, 1.442695
    %v1813 = vpow.pop %v1812
    %v1814 = vmul.f32 %v1809, 1.442695
    %v1815 = vpow.pop %v1814
    %v1816 = vadd.f32 %v1811, 1.0
    %v1817 = vadd.f32 %v1813, 1.0
    %v1818 = vadd.f32 %v1815, 1.0
    %v1819 = vrcp.pop %v1816
    %v1820 = vmul.f32 %v1816, %v1819
    %v1821 = vsub.f32 1.0, %v1820
    %v1822 = vmul.f32 %v1819, %v1821
    %v1823 = vadd.f32 %v1819, %v1822
    %vm1824 = vweird.f32 %v1816
    %vm1825 = vweird.f32 %v1819
    %vm1826 = vmor %vm1824, %vm1825
    %v1827 = vsel %vm1826, %v1819, %v1823
    %v1828 = vand.u32 2147483647, %v1816
    %vm1829 = vcmp.eq.f32.partialorder %v1828, 8.507059e+37
    %v1830 = vand.u32 %v1816, 2147483648
    %v1831 = vor.u32 1.1754944e-38, %v1830
    %v1832 = vsel %vm1829, %v1831, %v1827
    %v1833 = vmul.f32 1.0, %v1832
    %v1834 = vrcp.pop %v1817
    %v1835 = vmul.f32 %v1817, %v1834
    %v1836 = vsub.f32 1.0, %v1835
    %v1837 = vmul.f32 %v1834, %v1836
    %v1838 = vadd.f32 %v1834, %v1837
    %vm1839 = vweird.f32 %v1817
    %vm1840 = vweird.f32 %v1834
    %vm1841 = vmor %vm1839, %vm1840
    %v1842 = vsel %vm1841, %v1834, %v1838
    %v1843 = vand.u32 2147483647, %v1817
    %vm1844 = vcmp.eq.f32.partialorder %v1843, 8.507059e+37
    %v1845 = vand.u32 %v1817, 2147483648
    %v1846 = vor.u32 1.1754944e-38, %v1845
    %v1847 = vsel %vm1844, %v1846, %v1842
    %v1848 = vmul.f32 1.0, %v1847
    %v1849 = vrcp.pop %v1818
    %v1850 = vmul.f32 %v1818, %v1849
    %v1851 = vsub.f32 1.0, %v1850
    %v1852 = vmul.f32 %v1849, %v1851
    %v1853 = vadd.f32 %v1849, %v1852
    %vm1854 = vweird.f32 %v1818
    %vm1855 = vweird.f32 %v1849
    %vm1856 = vmor %vm1854, %vm1855
    %v1857 = vsel %vm1856, %v1849, %v1853
    %v1858 = vand.u32 2147483647, %v1818
    %vm1859 = vcmp.eq.f32.partialorder %v1858, 8.507059e+37
    %v1860 = vand.u32 %v1818, 2147483648
    %v1861 = vor.u32 1.1754944e-38, %v1860
    %v1862 = vsel %vm1859, %v1861, %v1857
    %v1863 = vmul.f32 1.0, %v1862
    %v1864 = vtanh.pop %v1804
    %v1865 = vmul.f32 %v1848, %v1575
    %v1866 = vmul.f32 %v1833, %v1864
    %v1867 = vadd.f32 %v1865, %v1866
    %v1868 = vtanh.pop %v1867
    %v1869 = vmul.f32 %v1863, %v1868
    %v1870 = vld [vmem:[#allocation3 + $0x60] sm:$0xff]
    %v1871 = vld [vmem:[#allocation3 + $0x68] sm:$0xff]
    %v1872 = vld [vmem:[#allocation3 + $0x70] sm:$0xff]
    %v1873 = vld [vmem:[#allocation3 + $0x78] sm:$0xff]
    %v1874 = vpack.c.bf16 %v1701, %v1701
    %1875 = vmatpush.bf16.msra.mxu0 %v802
    %1876 = vmatpush.bf16.msra.mxu0 %v798
    %1877 = vmatpush.bf16.msra.mxu0 %v794
    %1878 = vmatpush.bf16.msra.mxu0 %v790
    %1879 = vmatpush.bf16.msra.mxu0 %v786
    %1880 = vmatpush.bf16.msra.mxu0 %v782
    %1881 = vmatpush.bf16.msra.mxu0 %v778
    %1882 = vmatpush.bf16.msra.mxu0 %v774
    %1883 = vmatmul.bf16.gmra.mxu0 %v1874
    %v1884 = vpop.f32.mrf.mxu0
    %v1885 = vadd.f32 0.0, %v1884
    %v1886 = vpop.f32.mrf.mxu0
    %1887 = vdwg.mxu0
    %1888 = vmatpush.bf16.msra.mxu0 %v803
    %1889 = vmatpush.bf16.msra.mxu0 %v799
    %1890 = vmatpush.bf16.msra.mxu0 %v795
    %1891 = vmatpush.bf16.msra.mxu0 %v791
    %1892 = vmatpush.bf16.msra.mxu0 %v787
    %1893 = vmatpush.bf16.msra.mxu0 %v783
    %1894 = vmatpush.bf16.msra.mxu0 %v779
    %1895 = vmatpush.bf16.msra.mxu0 %v775
    %1896 = vmatmul.bf16.gmra.mxu0 %v1874
    %v1897 = vpop.f32.mrf.mxu0
    %v1898 = vadd.f32 0.0, %v1897
    %v1899 = vpop.f32.mrf.mxu0
    %1900 = vdwg.mxu0
    %1901 = vmatpush.bf16.msra.mxu0 %v804
    %1902 = vmatpush.bf16.msra.mxu0 %v800
    %1903 = vmatpush.bf16.msra.mxu0 %v796
    %1904 = vmatpush.bf16.msra.mxu0 %v792
    %1905 = vmatpush.bf16.msra.mxu0 %v788
    %1906 = vmatpush.bf16.msra.mxu0 %v784
    %1907 = vmatpush.bf16.msra.mxu0 %v780
    %1908 = vmatpush.bf16.msra.mxu0 %v776
    %1909 = vmatmul.bf16.gmra.mxu0 %v1874
    %v1910 = vpop.f32.mrf.mxu0
    %v1911 = vadd.f32 0.0, %v1910
    %v1912 = vpop.f32.mrf.mxu0
    %1913 = vdwg.mxu0
    %1914 = vmatpush.bf16.msra.mxu0 %v805
    %1915 = vmatpush.bf16.msra.mxu0 %v801
    %1916 = vmatpush.bf16.msra.mxu0 %v797
    %1917 = vmatpush.bf16.msra.mxu0 %v793
    %1918 = vmatpush.bf16.msra.mxu0 %v789
    %1919 = vmatpush.bf16.msra.mxu0 %v785
    %1920 = vmatpush.bf16.msra.mxu0 %v781
    %1921 = vmatpush.bf16.msra.mxu0 %v777
    %1922 = vmatmul.bf16.gmra.mxu0 %v1874
    %v1923 = vpop.f32.mrf.mxu0
    %v1924 = vadd.f32 0.0, %v1923
    %v1925 = vpop.f32.mrf.mxu0
    %1926 = vdwg.mxu0
    %v1927 = vadd.f32 %v1870, %v1885
    %v1928 = vadd.f32 %v1871, %v1898
    %v1929 = vadd.f32 %v1872, %v1911
    %v1930 = vadd.f32 %v1873, %v1924
    %v1931 = vxor.u32 %v1927, 2147483648
    %v1932 = vxor.u32 %v1928, 2147483648
    %v1933 = vxor.u32 %v1929, 2147483648
    %v1934 = vmul.f32 %v1931, 1.442695
    %v1935 = vpow.pop %v1934
    %v1936 = vmul.f32 %v1932, 1.442695
    %v1937 = vpow.pop %v1936
    %v1938 = vmul.f32 %v1933, 1.442695
    %v1939 = vpow.pop %v1938
    %v1940 = vadd.f32 %v1935, 1.0
    %v1941 = vadd.f32 %v1937, 1.0
    %v1942 = vadd.f32 %v1939, 1.0
    %v1943 = vrcp.pop %v1940
    %v1944 = vmul.f32 %v1940, %v1943
    %v1945 = vsub.f32 1.0, %v1944
    %v1946 = vmul.f32 %v1943, %v1945
    %v1947 = vadd.f32 %v1943, %v1946
    %vm1948 = vweird.f32 %v1940
    %vm1949 = vweird.f32 %v1943
    %vm1950 = vmor %vm1948, %vm1949
    %v1951 = vsel %vm1950, %v1943, %v1947
    %v1952 = vand.u32 2147483647, %v1940
    %vm1953 = vcmp.eq.f32.partialorder %v1952, 8.507059e+37
    %v1954 = vand.u32 %v1940, 2147483648
    %v1955 = vor.u32 1.1754944e-38, %v1954
    %v1956 = vsel %vm1953, %v1955, %v1951
    %v1957 = vmul.f32 1.0, %v1956
    %v1958 = vrcp.pop %v1941
    %v1959 = vmul.f32 %v1941, %v1958
    %v1960 = vsub.f32 1.0, %v1959
    %v1961 = vmul.f32 %v1958, %v1960
    %v1962 = vadd.f32 %v1958, %v1961
    %vm1963 = vweird.f32 %v1941
    %vm1964 = vweird.f32 %v1958
    %vm1965 = vmor %vm1963, %vm1964
    %v1966 = vsel %vm1965, %v1958, %v1962
    %v1967 = vand.u32 2147483647, %v1941
    %vm1968 = vcmp.eq.f32.partialorder %v1967, 8.507059e+37
    %v1969 = vand.u32 %v1941, 2147483648
    %v1970 = vor.u32 1.1754944e-38, %v1969
    %v1971 = vsel %vm1968, %v1970, %v1966
    %v1972 = vmul.f32 1.0, %v1971
    %v1973 = vrcp.pop %v1942
    %v1974 = vmul.f32 %v1942, %v1973
    %v1975 = vsub.f32 1.0, %v1974
    %v1976 = vmul.f32 %v1973, %v1975
    %v1977 = vadd.f32 %v1973, %v1976
    %vm1978 = vweird.f32 %v1942
    %vm1979 = vweird.f32 %v1973
    %vm1980 = vmor %vm1978, %vm1979
    %v1981 = vsel %vm1980, %v1973, %v1977
    %v1982 = vand.u32 2147483647, %v1942
    %vm1983 = vcmp.eq.f32.partialorder %v1982, 8.507059e+37
    %v1984 = vand.u32 %v1942, 2147483648
    %v1985 = vor.u32 1.1754944e-38, %v1984
    %v1986 = vsel %vm1983, %v1985, %v1981
    %v1987 = vmul.f32 1.0, %v1986
    %v1988 = vtanh.pop %v1930
    %v1989 = vmul.f32 %v1972, %v1699
    %v1990 = vmul.f32 %v1957, %v1988
    %v1991 = vadd.f32 %v1989, %v1990
    %v1992 = vtanh.pop %v1991
    %v1993 = vmul.f32 %v1987, %v1992
    %v1994 = vpack.c.bf16 %v1869, %v1869
    %1995 = vmatpush.bf16.msra.mxu0 %v1311
    %1996 = vmatpush.bf16.msra.mxu0 %v1307
    %1997 = vmatpush.bf16.msra.mxu0 %v1303
    %1998 = vmatpush.bf16.msra.mxu0 %v1299
    %1999 = vmatpush.bf16.msra.mxu0 %v1295
    %2000 = vmatpush.bf16.msra.mxu0 %v1291
    %2001 = vmatpush.bf16.msra.mxu0 %v1287
    %2002 = vmatpush.bf16.msra.mxu0 %v1283
    %2003 = vmatmul.bf16.gmra.mxu0 %v1874
    %v2004 = vpop.f32.mrf.mxu0
    %v2005 = vadd.f32 %v1083, %v2004
    %v2006 = vpop.f32.mrf.mxu0
    %2007 = vdwg.mxu0
    %2008 = vmatpush.bf16.msra.mxu0 %v1343
    %2009 = vmatpush.bf16.msra.mxu0 %v1339
    %2010 = vmatpush.bf16.msra.mxu0 %v1335
    %2011 = vmatpush.bf16.msra.mxu0 %v1331
    %2012 = vmatpush.bf16.msra.mxu0 %v1327
    %2013 = vmatpush.bf16.msra.mxu0 %v1323
    %2014 = vmatpush.bf16.msra.mxu0 %v1319
    %2015 = vmatpush.bf16.msra.mxu0 %v1315
    %2016 = vmatmul.bf16.gmra.mxu0 %v1994
    %v2017 = vpop.f32.mrf.mxu0
    %v2018 = vadd.f32 %v2005, %v2017
    %v2019 = vpop.f32.mrf.mxu0
    %2020 = vdwg.mxu0
    %2021 = vmatpush.bf16.msra.mxu0 %v1312
    %2022 = vmatpush.bf16.msra.mxu0 %v1308
    %2023 = vmatpush.bf16.msra.mxu0 %v1304
    %2024 = vmatpush.bf16.msra.mxu0 %v1300
    %2025 = vmatpush.bf16.msra.mxu0 %v1296
    %2026 = vmatpush.bf16.msra.mxu0 %v1292
    %2027 = vmatpush.bf16.msra.mxu0 %v1288
    %2028 = vmatpush.bf16.msra.mxu0 %v1284
    %2029 = vmatmul.bf16.gmra.mxu0 %v1874
    %v2030 = vpop.f32.mrf.mxu0
    %v2031 = vadd.f32 %v1084, %v2030
    %v2032 = vpop.f32.mrf.mxu0
    %2033 = vdwg.mxu0
    %2034 = vmatpush.bf16.msra.mxu0 %v1344
    %2035 = vmatpush.bf16.msra.mxu0 %v1340
    %2036 = vmatpush.bf16.msra.mxu0 %v1336
    %2037 = vmatpush.bf16.msra.mxu0 %v1332
    %2038 = vmatpush.bf16.msra.mxu0 %v1328
    %2039 = vmatpush.bf16.msra.mxu0 %v1324
    %2040 = vmatpush.bf16.msra.mxu0 %v1320
    %2041 = vmatpush.bf16.msra.mxu0 %v1316
    %2042 = vmatmul.bf16.gmra.mxu0 %v1994
    %v2043 = vpop.f32.mrf.mxu0
    %v2044 = vadd.f32 %v2031, %v2043
    %v2045 = vpop.f32.mrf.mxu0
    %2046 = vdwg.mxu0
    %2047 = vmatpush.bf16.msra.mxu0 %v1313
    %2048 = vmatpush.bf16.msra.mxu0 %v1309
    %2049 = vmatpush.bf16.msra.mxu0 %v1305
    %2050 = vmatpush.bf16.msra.mxu0 %v1301
    %2051 = vmatpush.bf16.msra.mxu0 %v1297
    %2052 = vmatpush.bf16.msra.mxu0 %v1293
    %2053 = vmatpush.bf16.msra.mxu0 %v1289
    %2054 = vmatpush.bf16.msra.mxu0 %v1285
    %2055 = vmatmul.bf16.gmra.mxu0 %v1874
    %v2056 = vpop.f32.mrf.mxu0
    %v2057 = vadd.f32 %v1085, %v2056
    %v2058 = vpop.f32.mrf.mxu0
    %2059 = vdwg.mxu0
    %2060 = vmatpush.bf16.msra.mxu0 %v1345
    %2061 = vmatpush.bf16.msra.mxu0 %v1341
    %2062 = vmatpush.bf16.msra.mxu0 %v1337
    %2063 = vmatpush.bf16.msra.mxu0 %v1333
    %2064 = vmatpush.bf16.msra.mxu0 %v1329
    %2065 = vmatpush.bf16.msra.mxu0 %v1325
    %2066 = vmatpush.bf16.msra.mxu0 %v1321
    %2067 = vmatpush.bf16.msra.mxu0 %v1317
    %2068 = vmatmul.bf16.gmra.mxu0 %v1994
    %v2069 = vpop.f32.mrf.mxu0
    %v2070 = vadd.f32 %v2057, %v2069
    %v2071 = vpop.f32.mrf.mxu0
    %2072 = vdwg.mxu0
    %2073 = vmatpush.bf16.msra.mxu0 %v1314
    %2074 = vmatpush.bf16.msra.mxu0 %v1310
    %2075 = vmatpush.bf16.msra.mxu0 %v1306
    %2076 = vmatpush.bf16.msra.mxu0 %v1302
    %2077 = vmatpush.bf16.msra.mxu0 %v1298
    %2078 = vmatpush.bf16.msra.mxu0 %v1294
    %2079 = vmatpush.bf16.msra.mxu0 %v1290
    %2080 = vmatpush.bf16.msra.mxu0 %v1286
    %2081 = vmatmul.bf16.gmra.mxu0 %v1874
    %v2082 = vpop.f32.mrf.mxu0
    %v2083 = vadd.f32 %v1086, %v2082
    %v2084 = vpop.f32.mrf.mxu0
    %2085 = vdwg.mxu0
    %2086 = vmatpush.bf16.msra.mxu0 %v1346
    %2087 = vmatpush.bf16.msra.mxu0 %v1342
    %2088 = vmatpush.bf16.msra.mxu0 %v1338
    %2089 = vmatpush.bf16.msra.mxu0 %v1334
    %2090 = vmatpush.bf16.msra.mxu0 %v1330
    %2091 = vmatpush.bf16.msra.mxu0 %v1326
    %2092 = vmatpush.bf16.msra.mxu0 %v1322
    %2093 = vmatpush.bf16.msra.mxu0 %v1318
    %2094 = vmatmul.bf16.gmra.mxu0 %v1994
    %v2095 = vpop.f32.mrf.mxu0
    %v2096 = vadd.f32 %v2083, %v2095
    %v2097 = vpop.f32.mrf.mxu0
    %2098 = vdwg.mxu0
    %v2099 = vxor.u32 %v2018, 2147483648
    %v2100 = vxor.u32 %v2044, 2147483648
    %v2101 = vxor.u32 %v2070, 2147483648
    %v2102 = vmul.f32 %v2099, 1.442695
    %v2103 = vpow.pop %v2102
    %v2104 = vmul.f32 %v2100, 1.442695
    %v2105 = vpow.pop %v2104
    %v2106 = vmul.f32 %v2101, 1.442695
    %v2107 = vpow.pop %v2106
    %v2108 = vadd.f32 %v2103, 1.0
    %v2109 = vadd.f32 %v2105, 1.0
    %v2110 = vadd.f32 %v2107, 1.0
    %v2111 = vrcp.pop %v2108
    %v2112 = vmul.f32 %v2108, %v2111
    %v2113 = vsub.f32 1.0, %v2112
    %v2114 = vmul.f32 %v2111, %v2113
    %v2115 = vadd.f32 %v2111, %v2114
    %vm2116 = vweird.f32 %v2108
    %vm2117 = vweird.f32 %v2111
    %vm2118 = vmor %vm2116, %vm2117
    %v2119 = vsel %vm2118, %v2111, %v2115
    %v2120 = vand.u32 2147483647, %v2108
    %vm2121 = vcmp.eq.f32.partialorder %v2120, 8.507059e+37
    %v2122 = vand.u32 %v2108, 2147483648
    %v2123 = vor.u32 1.1754944e-38, %v2122
    %v2124 = vsel %vm2121, %v2123, %v2119
    %v2125 = vmul.f32 1.0, %v2124
    %v2126 = vrcp.pop %v2109
    %v2127 = vmul.f32 %v2109, %v2126
    %v2128 = vsub.f32 1.0, %v2127
    %v2129 = vmul.f32 %v2126, %v2128
    %v2130 = vadd.f32 %v2126, %v2129
    %vm2131 = vweird.f32 %v2109
    %vm2132 = vweird.f32 %v2126
    %vm2133 = vmor %vm2131, %vm2132
    %v2134 = vsel %vm2133, %v2126, %v2130
    %v2135 = vand.u32 2147483647, %v2109
    %vm2136 = vcmp.eq.f32.partialorder %v2135, 8.507059e+37
    %v2137 = vand.u32 %v2109, 2147483648
    %v2138 = vor.u32 1.1754944e-38, %v2137
    %v2139 = vsel %vm2136, %v2138, %v2134
    %v2140 = vmul.f32 1.0, %v2139
    %v2141 = vrcp.pop %v2110
    %v2142 = vmul.f32 %v2110, %v2141
    %v2143 = vsub.f32 1.0, %v2142
    %v2144 = vmul.f32 %v2141, %v2143
    %v2145 = vadd.f32 %v2141, %v2144
    %vm2146 = vweird.f32 %v2110
    %vm2147 = vweird.f32 %v2141
    %vm2148 = vmor %vm2146, %vm2147
    %v2149 = vsel %vm2148, %v2141, %v2145
    %v2150 = vand.u32 2147483647, %v2110
    %vm2151 = vcmp.eq.f32.partialorder %v2150, 8.507059e+37
    %v2152 = vand.u32 %v2110, 2147483648
    %v2153 = vor.u32 1.1754944e-38, %v2152
    %v2154 = vsel %vm2151, %v2153, %v2149
    %v2155 = vmul.f32 1.0, %v2154
    %v2156 = vtanh.pop %v2096
    %v2157 = vmul.f32 %v2140, %v1867
    %v2158 = vmul.f32 %v2125, %v2156
    %v2159 = vadd.f32 %v2157, %v2158
    %v2160 = vtanh.pop %v2159
    %v2161 = vmul.f32 %v2155, %v2160
    %v2162 = vld [vmem:[#allocation3 + $0x80] sm:$0xff]
    %v2163 = vld [vmem:[#allocation3 + $0x88] sm:$0xff]
    %v2164 = vld [vmem:[#allocation3 + $0x90] sm:$0xff]
    %v2165 = vld [vmem:[#allocation3 + $0x98] sm:$0xff]
    %v2166 = vpack.c.bf16 %v1993, %v1993
    %2167 = vmatpush.bf16.msra.mxu0 %v802
    %2168 = vmatpush.bf16.msra.mxu0 %v798
    %2169 = vmatpush.bf16.msra.mxu0 %v794
    %2170 = vmatpush.bf16.msra.mxu0 %v790
    %2171 = vmatpush.bf16.msra.mxu0 %v786
    %2172 = vmatpush.bf16.msra.mxu0 %v782
    %2173 = vmatpush.bf16.msra.mxu0 %v778
    %2174 = vmatpush.bf16.msra.mxu0 %v774
    %2175 = vmatmul.bf16.gmra.mxu0 %v2166
    %v2176 = vpop.f32.mrf.mxu0
    %v2177 = vadd.f32 0.0, %v2176
    %v2178 = vpop.f32.mrf.mxu0
    %2179 = vdwg.mxu0
    %2180 = vmatpush.bf16.msra.mxu0 %v803
    %2181 = vmatpush.bf16.msra.mxu0 %v799
    %2182 = vmatpush.bf16.msra.mxu0 %v795
    %2183 = vmatpush.bf16.msra.mxu0 %v791
    %2184 = vmatpush.bf16.msra.mxu0 %v787
    %2185 = vmatpush.bf16.msra.mxu0 %v783
    %2186 = vmatpush.bf16.msra.mxu0 %v779
    %2187 = vmatpush.bf16.msra.mxu0 %v775
    %2188 = vmatmul.bf16.gmra.mxu0 %v2166
    %v2189 = vpop.f32.mrf.mxu0
    %v2190 = vadd.f32 0.0, %v2189
    %v2191 = vpop.f32.mrf.mxu0
    %2192 = vdwg.mxu0
    %2193 = vmatpush.bf16.msra.mxu0 %v804
    %2194 = vmatpush.bf16.msra.mxu0 %v800
    %2195 = vmatpush.bf16.msra.mxu0 %v796
    %2196 = vmatpush.bf16.msra.mxu0 %v792
    %2197 = vmatpush.bf16.msra.mxu0 %v788
    %2198 = vmatpush.bf16.msra.mxu0 %v784
    %2199 = vmatpush.bf16.msra.mxu0 %v780
    %2200 = vmatpush.bf16.msra.mxu0 %v776
    %2201 = vmatmul.bf16.gmra.mxu0 %v2166
    %v2202 = vpop.f32.mrf.mxu0
    %v2203 = vadd.f32 0.0, %v2202
    %v2204 = vpop.f32.mrf.mxu0
    %2205 = vdwg.mxu0
    %2206 = vmatpush.bf16.msra.mxu0 %v805
    %2207 = vmatpush.bf16.msra.mxu0 %v801
    %2208 = vmatpush.bf16.msra.mxu0 %v797
    %2209 = vmatpush.bf16.msra.mxu0 %v793
    %2210 = vmatpush.bf16.msra.mxu0 %v789
    %2211 = vmatpush.bf16.msra.mxu0 %v785
    %2212 = vmatpush.bf16.msra.mxu0 %v781
    %2213 = vmatpush.bf16.msra.mxu0 %v777
    %2214 = vmatmul.bf16.gmra.mxu0 %v2166
    %v2215 = vpop.f32.mrf.mxu0
    %v2216 = vadd.f32 0.0, %v2215
    %v2217 = vpop.f32.mrf.mxu0
    %2218 = vdwg.mxu0
    %v2219 = vadd.f32 %v2162, %v2177
    %v2220 = vadd.f32 %v2163, %v2190
    %v2221 = vadd.f32 %v2164, %v2203
    %v2222 = vadd.f32 %v2165, %v2216
    %v2223 = vxor.u32 %v2219, 2147483648
    %v2224 = vxor.u32 %v2220, 2147483648
    %v2225 = vxor.u32 %v2221, 2147483648
    %v2226 = vmul.f32 %v2223, 1.442695
    %v2227 = vpow.pop %v2226
    %v2228 = vmul.f32 %v2224, 1.442695
    %v2229 = vpow.pop %v2228
    %v2230 = vmul.f32 %v2225, 1.442695
    %v2231 = vpow.pop %v2230
    %v2232 = vadd.f32 %v2227, 1.0
    %v2233 = vadd.f32 %v2229, 1.0
    %v2234 = vadd.f32 %v2231, 1.0
    %v2235 = vrcp.pop %v2232
    %v2236 = vmul.f32 %v2232, %v2235
    %v2237 = vsub.f32 1.0, %v2236
    %v2238 = vmul.f32 %v2235, %v2237
    %v2239 = vadd.f32 %v2235, %v2238
    %vm2240 = vweird.f32 %v2232
    %vm2241 = vweird.f32 %v2235
    %vm2242 = vmor %vm2240, %vm2241
    %v2243 = vsel %vm2242, %v2235, %v2239
    %v2244 = vand.u32 2147483647, %v2232
    %vm2245 = vcmp.eq.f32.partialorder %v2244, 8.507059e+37
    %v2246 = vand.u32 %v2232, 2147483648
    %v2247 = vor.u32 1.1754944e-38, %v2246
    %v2248 = vsel %vm2245, %v2247, %v2243
    %v2249 = vmul.f32 1.0, %v2248
    %v2250 = vrcp.pop %v2233
    %v2251 = vmul.f32 %v2233, %v2250
    %v2252 = vsub.f32 1.0, %v2251
    %v2253 = vmul.f32 %v2250, %v2252
    %v2254 = vadd.f32 %v2250, %v2253
    %vm2255 = vweird.f32 %v2233
    %vm2256 = vweird.f32 %v2250
    %vm2257 = vmor %vm2255, %vm2256
    %v2258 = vsel %vm2257, %v2250, %v2254
    %v2259 = vand.u32 2147483647, %v2233
    %vm2260 = vcmp.eq.f32.partialorder %v2259, 8.507059e+37
    %v2261 = vand.u32 %v2233, 2147483648
    %v2262 = vor.u32 1.1754944e-38, %v2261
    %v2263 = vsel %vm2260, %v2262, %v2258
    %v2264 = vmul.f32 1.0, %v2263
    %v2265 = vrcp.pop %v2234
    %v2266 = vmul.f32 %v2234, %v2265
    %v2267 = vsub.f32 1.0, %v2266
    %v2268 = vmul.f32 %v2265, %v2267
    %v2269 = vadd.f32 %v2265, %v2268
    %vm2270 = vweird.f32 %v2234
    %vm2271 = vweird.f32 %v2265
    %vm2272 = vmor %vm2270, %vm2271
    %v2273 = vsel %vm2272, %v2265, %v2269
    %v2274 = vand.u32 2147483647, %v2234
    %vm2275 = vcmp.eq.f32.partialorder %v2274, 8.507059e+37
    %v2276 = vand.u32 %v2234, 2147483648
    %v2277 = vor.u32 1.1754944e-38, %v2276
    %v2278 = vsel %vm2275, %v2277, %v2273
    %v2279 = vmul.f32 1.0, %v2278
    %v2280 = vtanh.pop %v2222
    %v2281 = vmul.f32 %v2264, %v1991
    %v2282 = vmul.f32 %v2249, %v2280
    %v2283 = vadd.f32 %v2281, %v2282
    %v2284 = vtanh.pop %v2283
    %v2285 = vmul.f32 %v2279, %v2284
    %v2286 = vpack.c.bf16 %v2161, %v2161
    %2287 = vmatpush.bf16.msra.mxu0 %v1311
    %2288 = vmatpush.bf16.msra.mxu0 %v1307
    %2289 = vmatpush.bf16.msra.mxu0 %v1303
    %2290 = vmatpush.bf16.msra.mxu0 %v1299
    %2291 = vmatpush.bf16.msra.mxu0 %v1295
    %2292 = vmatpush.bf16.msra.mxu0 %v1291
    %2293 = vmatpush.bf16.msra.mxu0 %v1287
    %2294 = vmatpush.bf16.msra.mxu0 %v1283
    %2295 = vmatmul.bf16.gmra.mxu0 %v2166
    %v2296 = vpop.f32.mrf.mxu0
    %v2297 = vadd.f32 %v1083, %v2296
    %v2298 = vpop.f32.mrf.mxu0
    %2299 = vdwg.mxu0
    %2300 = vmatpush.bf16.msra.mxu0 %v1343
    %2301 = vmatpush.bf16.msra.mxu0 %v1339
    %2302 = vmatpush.bf16.msra.mxu0 %v1335
    %2303 = vmatpush.bf16.msra.mxu0 %v1331
    %2304 = vmatpush.bf16.msra.mxu0 %v1327
    %2305 = vmatpush.bf16.msra.mxu0 %v1323
    %2306 = vmatpush.bf16.msra.mxu0 %v1319
    %2307 = vmatpush.bf16.msra.mxu0 %v1315
    %2308 = vmatmul.bf16.gmra.mxu0 %v2286
    %v2309 = vpop.f32.mrf.mxu0
    %v2310 = vadd.f32 %v2297, %v2309
    %v2311 = vpop.f32.mrf.mxu0
    %2312 = vdwg.mxu0
    %2313 = vmatpush.bf16.msra.mxu0 %v1312
    %2314 = vmatpush.bf16.msra.mxu0 %v1308
    %2315 = vmatpush.bf16.msra.mxu0 %v1304
    %2316 = vmatpush.bf16.msra.mxu0 %v1300
    %2317 = vmatpush.bf16.msra.mxu0 %v1296
    %2318 = vmatpush.bf16.msra.mxu0 %v1292
    %2319 = vmatpush.bf16.msra.mxu0 %v1288
    %2320 = vmatpush.bf16.msra.mxu0 %v1284
    %2321 = vmatmul.bf16.gmra.mxu0 %v2166
    %v2322 = vpop.f32.mrf.mxu0
    %v2323 = vadd.f32 %v1084, %v2322
    %v2324 = vpop.f32.mrf.mxu0
    %2325 = vdwg.mxu0
    %2326 = vmatpush.bf16.msra.mxu0 %v1344
    %2327 = vmatpush.bf16.msra.mxu0 %v1340
    %2328 = vmatpush.bf16.msra.mxu0 %v1336
    %2329 = vmatpush.bf16.msra.mxu0 %v1332
    %2330 = vmatpush.bf16.msra.mxu0 %v1328
    %2331 = vmatpush.bf16.msra.mxu0 %v1324
    %2332 = vmatpush.bf16.msra.mxu0 %v1320
    %2333 = vmatpush.bf16.msra.mxu0 %v1316
    %2334 = vmatmul.bf16.gmra.mxu0 %v2286
    %v2335 = vpop.f32.mrf.mxu0
    %v2336 = vadd.f32 %v2323, %v2335
    %v2337 = vpop.f32.mrf.mxu0
    %2338 = vdwg.mxu0
    %2339 = vmatpush.bf16.msra.mxu0 %v1313
    %2340 = vmatpush.bf16.msra.mxu0 %v1309
    %2341 = vmatpush.bf16.msra.mxu0 %v1305
    %2342 = vmatpush.bf16.msra.mxu0 %v1301
    %2343 = vmatpush.bf16.msra.mxu0 %v1297
    %2344 = vmatpush.bf16.msra.mxu0 %v1293
    %2345 = vmatpush.bf16.msra.mxu0 %v1289
    %2346 = vmatpush.bf16.msra.mxu0 %v1285
    %2347 = vmatmul.bf16.gmra.mxu0 %v2166
    %v2348 = vpop.f32.mrf.mxu0
    %v2349 = vadd.f32 %v1085, %v2348
    %v2350 = vpop.f32.mrf.mxu0
    %2351 = vdwg.mxu0
    %2352 = vmatpush.bf16.msra.mxu0 %v1345
    %2353 = vmatpush.bf16.msra.mxu0 %v1341
    %2354 = vmatpush.bf16.msra.mxu0 %v1337
    %2355 = vmatpush.bf16.msra.mxu0 %v1333
    %2356 = vmatpush.bf16.msra.mxu0 %v1329
    %2357 = vmatpush.bf16.msra.mxu0 %v1325
    %2358 = vmatpush.bf16.msra.mxu0 %v1321
    %2359 = vmatpush.bf16.msra.mxu0 %v1317
    %2360 = vmatmul.bf16.gmra.mxu0 %v2286
    %v2361 = vpop.f32.mrf.mxu0
    %v2362 = vadd.f32 %v2349, %v2361
    %v2363 = vpop.f32.mrf.mxu0
    %2364 = vdwg.mxu0
    %2365 = vmatpush.bf16.msra.mxu0 %v1314
    %2366 = vmatpush.bf16.msra.mxu0 %v1310
    %2367 = vmatpush.bf16.msra.mxu0 %v1306
    %2368 = vmatpush.bf16.msra.mxu0 %v1302
    %2369 = vmatpush.bf16.msra.mxu0 %v1298
    %2370 = vmatpush.bf16.msra.mxu0 %v1294
    %2371 = vmatpush.bf16.msra.mxu0 %v1290
    %2372 = vmatpush.bf16.msra.mxu0 %v1286
    %2373 = vmatmul.bf16.gmra.mxu0 %v2166
    %v2374 = vpop.f32.mrf.mxu0
    %v2375 = vadd.f32 %v1086, %v2374
    %v2376 = vpop.f32.mrf.mxu0
    %2377 = vdwg.mxu0
    %2378 = vmatpush.bf16.msra.mxu0 %v1346
    %2379 = vmatpush.bf16.msra.mxu0 %v1342
    %2380 = vmatpush.bf16.msra.mxu0 %v1338
    %2381 = vmatpush.bf16.msra.mxu0 %v1334
    %2382 = vmatpush.bf16.msra.mxu0 %v1330
    %2383 = vmatpush.bf16.msra.mxu0 %v1326
    %2384 = vmatpush.bf16.msra.mxu0 %v1322
    %2385 = vmatpush.bf16.msra.mxu0 %v1318
    %2386 = vmatmul.bf16.gmra.mxu0 %v2286
    %v2387 = vpop.f32.mrf.mxu0
    %v2388 = vadd.f32 %v2375, %v2387
    %v2389 = vpop.f32.mrf.mxu0
    %2390 = vdwg.mxu0
    %v2391 = vxor.u32 %v2310, 2147483648
    %v2392 = vxor.u32 %v2336, 2147483648
    %v2393 = vxor.u32 %v2362, 2147483648
    %v2394 = vmul.f32 %v2391, 1.442695
    %v2395 = vpow.pop %v2394
    %v2396 = vmul.f32 %v2392, 1.442695
    %v2397 = vpow.pop %v2396
    %v2398 = vmul.f32 %v2393, 1.442695
    %v2399 = vpow.pop %v2398
    %v2400 = vadd.f32 %v2395, 1.0
    %v2401 = vadd.f32 %v2397, 1.0
    %v2402 = vadd.f32 %v2399, 1.0
    %v2403 = vrcp.pop %v2400
    %v2404 = vmul.f32 %v2400, %v2403
    %v2405 = vsub.f32 1.0, %v2404
    %v2406 = vmul.f32 %v2403, %v2405
    %v2407 = vadd.f32 %v2403, %v2406
    %vm2408 = vweird.f32 %v2400
    %vm2409 = vweird.f32 %v2403
    %vm2410 = vmor %vm2408, %vm2409
    %v2411 = vsel %vm2410, %v2403, %v2407
    %v2412 = vand.u32 2147483647, %v2400
    %vm2413 = vcmp.eq.f32.partialorder %v2412, 8.507059e+37
    %v2414 = vand.u32 %v2400, 2147483648
    %v2415 = vor.u32 1.1754944e-38, %v2414
    %v2416 = vsel %vm2413, %v2415, %v2411
    %v2417 = vmul.f32 1.0, %v2416
    %v2418 = vrcp.pop %v2401
    %v2419 = vmul.f32 %v2401, %v2418
    %v2420 = vsub.f32 1.0, %v2419
    %v2421 = vmul.f32 %v2418, %v2420
    %v2422 = vadd.f32 %v2418, %v2421
    %vm2423 = vweird.f32 %v2401
    %vm2424 = vweird.f32 %v2418
    %vm2425 = vmor %vm2423, %vm2424
    %v2426 = vsel %vm2425, %v2418, %v2422
    %v2427 = vand.u32 2147483647, %v2401
    %vm2428 = vcmp.eq.f32.partialorder %v2427, 8.507059e+37
    %v2429 = vand.u32 %v2401, 2147483648
    %v2430 = vor.u32 1.1754944e-38, %v2429
    %v2431 = vsel %vm2428, %v2430, %v2426
    %v2432 = vmul.f32 1.0, %v2431
    %v2433 = vrcp.pop %v2402
    %v2434 = vmul.f32 %v2402, %v2433
    %v2435 = vsub.f32 1.0, %v2434
    %v2436 = vmul.f32 %v2433, %v2435
    %v2437 = vadd.f32 %v2433, %v2436
    %vm2438 = vweird.f32 %v2402
    %vm2439 = vweird.f32 %v2433
    %vm2440 = vmor %vm2438, %vm2439
    %v2441 = vsel %vm2440, %v2433, %v2437
    %v2442 = vand.u32 2147483647, %v2402
    %vm2443 = vcmp.eq.f32.partialorder %v2442, 8.507059e+37
    %v2444 = vand.u32 %v2402, 2147483648
    %v2445 = vor.u32 1.1754944e-38, %v2444
    %v2446 = vsel %vm2443, %v2445, %v2441
    %v2447 = vmul.f32 1.0, %v2446
    %v2448 = vtanh.pop %v2388
    %v2449 = vmul.f32 %v2432, %v2159
    %v2450 = vmul.f32 %v2417, %v2448
    %v2451 = vadd.f32 %v2449, %v2450
    %v2452 = vtanh.pop %v2451
    %v2453 = vmul.f32 %v2447, %v2452
    %v2454 = vld [vmem:[#allocation3 + $0xa0] sm:$0xff]
    %v2455 = vld [vmem:[#allocation3 + $0xa8] sm:$0xff]
    %v2456 = vld [vmem:[#allocation3 + $0xb0] sm:$0xff]
    %v2457 = vld [vmem:[#allocation3 + $0xb8] sm:$0xff]
    %v2458 = vpack.c.bf16 %v2285, %v2285
    %2459 = vmatpush.bf16.msra.mxu0 %v802
    %2460 = vmatpush.bf16.msra.mxu0 %v798
    %2461 = vmatpush.bf16.msra.mxu0 %v794
    %2462 = vmatpush.bf16.msra.mxu0 %v790
    %2463 = vmatpush.bf16.msra.mxu0 %v786
    %2464 = vmatpush.bf16.msra.mxu0 %v782
    %2465 = vmatpush.bf16.msra.mxu0 %v778
    %2466 = vmatpush.bf16.msra.mxu0 %v774
    %2467 = vmatmul.bf16.gmra.mxu0 %v2458
    %v2468 = vpop.f32.mrf.mxu0
    %v2469 = vadd.f32 0.0, %v2468
    %v2470 = vpop.f32.mrf.mxu0
    %2471 = vdwg.mxu0
    %2472 = vmatpush.bf16.msra.mxu0 %v803
    %2473 = vmatpush.bf16.msra.mxu0 %v799
    %2474 = vmatpush.bf16.msra.mxu0 %v795
    %2475 = vmatpush.bf16.msra.mxu0 %v791
    %2476 = vmatpush.bf16.msra.mxu0 %v787
    %2477 = vmatpush.bf16.msra.mxu0 %v783
    %2478 = vmatpush.bf16.msra.mxu0 %v779
    %2479 = vmatpush.bf16.msra.mxu0 %v775
    %2480 = vmatmul.bf16.gmra.mxu0 %v2458
    %v2481 = vpop.f32.mrf.mxu0
    %v2482 = vadd.f32 0.0, %v2481
    %v2483 = vpop.f32.mrf.mxu0
    %2484 = vdwg.mxu0
    %2485 = vmatpush.bf16.msra.mxu0 %v804
    %2486 = vmatpush.bf16.msra.mxu0 %v800
    %2487 = vmatpush.bf16.msra.mxu0 %v796
    %2488 = vmatpush.bf16.msra.mxu0 %v792
    %2489 = vmatpush.bf16.msra.mxu0 %v788
    %2490 = vmatpush.bf16.msra.mxu0 %v784
    %2491 = vmatpush.bf16.msra.mxu0 %v780
    %2492 = vmatpush.bf16.msra.mxu0 %v776
    %2493 = vmatmul.bf16.gmra.mxu0 %v2458
    %v2494 = vpop.f32.mrf.mxu0
    %v2495 = vadd.f32 0.0, %v2494
    %v2496 = vpop.f32.mrf.mxu0
    %2497 = vdwg.mxu0
    %2498 = vmatpush.bf16.msra.mxu0 %v805
    %2499 = vmatpush.bf16.msra.mxu0 %v801
    %2500 = vmatpush.bf16.msra.mxu0 %v797
    %2501 = vmatpush.bf16.msra.mxu0 %v793
    %2502 = vmatpush.bf16.msra.mxu0 %v789
    %2503 = vmatpush.bf16.msra.mxu0 %v785
    %2504 = vmatpush.bf16.msra.mxu0 %v781
    %2505 = vmatpush.bf16.msra.mxu0 %v777
    %2506 = vmatmul.bf16.gmra.mxu0 %v2458
    %v2507 = vpop.f32.mrf.mxu0
    %v2508 = vadd.f32 0.0, %v2507
    %v2509 = vpop.f32.mrf.mxu0
    %2510 = vdwg.mxu0
    %v2511 = vadd.f32 %v2454, %v2469
    %v2512 = vadd.f32 %v2455, %v2482
    %v2513 = vadd.f32 %v2456, %v2495
    %v2514 = vadd.f32 %v2457, %v2508
    %v2515 = vxor.u32 %v2511, 2147483648
    %v2516 = vxor.u32 %v2512, 2147483648
    %v2517 = vxor.u32 %v2513, 2147483648
    %v2518 = vmul.f32 %v2515, 1.442695
    %v2519 = vpow.pop %v2518
    %v2520 = vmul.f32 %v2516, 1.442695
    %v2521 = vpow.pop %v2520
    %v2522 = vmul.f32 %v2517, 1.442695
    %v2523 = vpow.pop %v2522
    %v2524 = vadd.f32 %v2519, 1.0
    %v2525 = vadd.f32 %v2521, 1.0
    %v2526 = vadd.f32 %v2523, 1.0
    %v2527 = vrcp.pop %v2524
    %v2528 = vmul.f32 %v2524, %v2527
    %v2529 = vsub.f32 1.0, %v2528
    %v2530 = vmul.f32 %v2527, %v2529
    %v2531 = vadd.f32 %v2527, %v2530
    %vm2532 = vweird.f32 %v2524
    %vm2533 = vweird.f32 %v2527
    %vm2534 = vmor %vm2532, %vm2533
    %v2535 = vsel %vm2534, %v2527, %v2531
    %v2536 = vand.u32 2147483647, %v2524
    %vm2537 = vcmp.eq.f32.partialorder %v2536, 8.507059e+37
    %v2538 = vand.u32 %v2524, 2147483648
    %v2539 = vor.u32 1.1754944e-38, %v2538
    %v2540 = vsel %vm2537, %v2539, %v2535
    %v2541 = vmul.f32 1.0, %v2540
    %v2542 = vrcp.pop %v2525
    %v2543 = vmul.f32 %v2525, %v2542
    %v2544 = vsub.f32 1.0, %v2543
    %v2545 = vmul.f32 %v2542, %v2544
    %v2546 = vadd.f32 %v2542, %v2545
    %vm2547 = vweird.f32 %v2525
    %vm2548 = vweird.f32 %v2542
    %vm2549 = vmor %vm2547, %vm2548
    %v2550 = vsel %vm2549, %v2542, %v2546
    %v2551 = vand.u32 2147483647, %v2525
    %vm2552 = vcmp.eq.f32.partialorder %v2551, 8.507059e+37
    %v2553 = vand.u32 %v2525, 2147483648
    %v2554 = vor.u32 1.1754944e-38, %v2553
    %v2555 = vsel %vm2552, %v2554, %v2550
    %v2556 = vmul.f32 1.0, %v2555
    %v2557 = vrcp.pop %v2526
    %v2558 = vmul.f32 %v2526, %v2557
    %v2559 = vsub.f32 1.0, %v2558
    %v2560 = vmul.f32 %v2557, %v2559
    %v2561 = vadd.f32 %v2557, %v2560
    %vm2562 = vweird.f32 %v2526
    %vm2563 = vweird.f32 %v2557
    %vm2564 = vmor %vm2562, %vm2563
    %v2565 = vsel %vm2564, %v2557, %v2561
    %v2566 = vand.u32 2147483647, %v2526
    %vm2567 = vcmp.eq.f32.partialorder %v2566, 8.507059e+37
    %v2568 = vand.u32 %v2526, 2147483648
    %v2569 = vor.u32 1.1754944e-38, %v2568
    %v2570 = vsel %vm2567, %v2569, %v2565
    %v2571 = vmul.f32 1.0, %v2570
    %v2572 = vtanh.pop %v2514
    %v2573 = vmul.f32 %v2556, %v2283
    %v2574 = vmul.f32 %v2541, %v2572
    %v2575 = vadd.f32 %v2573, %v2574
    %v2576 = vtanh.pop %v2575
    %v2577 = vmul.f32 %v2571, %v2576
    %v2578 = vpack.c.bf16 %v2453, %v2453
    %2579 = vmatpush.bf16.msra.mxu0 %v1311
    %2580 = vmatpush.bf16.msra.mxu0 %v1307
    %2581 = vmatpush.bf16.msra.mxu0 %v1303
    %2582 = vmatpush.bf16.msra.mxu0 %v1299
    %2583 = vmatpush.bf16.msra.mxu0 %v1295
    %2584 = vmatpush.bf16.msra.mxu0 %v1291
    %2585 = vmatpush.bf16.msra.mxu0 %v1287
    %2586 = vmatpush.bf16.msra.mxu0 %v1283
    %2587 = vmatmul.bf16.gmra.mxu0 %v2458
    %v2588 = vpop.f32.mrf.mxu0
    %v2589 = vadd.f32 %v1083, %v2588
    %v2590 = vpop.f32.mrf.mxu0
    %2591 = vdwg.mxu0
    %2592 = vmatpush.bf16.msra.mxu0 %v1343
    %2593 = vmatpush.bf16.msra.mxu0 %v1339
    %2594 = vmatpush.bf16.msra.mxu0 %v1335
    %2595 = vmatpush.bf16.msra.mxu0 %v1331
    %2596 = vmatpush.bf16.msra.mxu0 %v1327
    %2597 = vmatpush.bf16.msra.mxu0 %v1323
    %2598 = vmatpush.bf16.msra.mxu0 %v1319
    %2599 = vmatpush.bf16.msra.mxu0 %v1315
    %2600 = vmatmul.bf16.gmra.mxu0 %v2578
    %v2601 = vpop.f32.mrf.mxu0
    %v2602 = vadd.f32 %v2589, %v2601
    %v2603 = vpop.f32.mrf.mxu0
    %2604 = vdwg.mxu0
    %2605 = vmatpush.bf16.msra.mxu0 %v1312
    %2606 = vmatpush.bf16.msra.mxu0 %v1308
    %2607 = vmatpush.bf16.msra.mxu0 %v1304
    %2608 = vmatpush.bf16.msra.mxu0 %v1300
    %2609 = vmatpush.bf16.msra.mxu0 %v1296
    %2610 = vmatpush.bf16.msra.mxu0 %v1292
    %2611 = vmatpush.bf16.msra.mxu0 %v1288
    %2612 = vmatpush.bf16.msra.mxu0 %v1284
    %2613 = vmatmul.bf16.gmra.mxu0 %v2458
    %v2614 = vpop.f32.mrf.mxu0
    %v2615 = vadd.f32 %v1084, %v2614
    %v2616 = vpop.f32.mrf.mxu0
    %2617 = vdwg.mxu0
    %2618 = vmatpush.bf16.msra.mxu0 %v1344
    %2619 = vmatpush.bf16.msra.mxu0 %v1340
    %2620 = vmatpush.bf16.msra.mxu0 %v1336
    %2621 = vmatpush.bf16.msra.mxu0 %v1332
    %2622 = vmatpush.bf16.msra.mxu0 %v1328
    %2623 = vmatpush.bf16.msra.mxu0 %v1324
    %2624 = vmatpush.bf16.msra.mxu0 %v1320
    %2625 = vmatpush.bf16.msra.mxu0 %v1316
    %2626 = vmatmul.bf16.gmra.mxu0 %v2578
    %v2627 = vpop.f32.mrf.mxu0
    %v2628 = vadd.f32 %v2615, %v2627
    %v2629 = vpop.f32.mrf.mxu0
    %2630 = vdwg.mxu0
    %2631 = vmatpush.bf16.msra.mxu0 %v1313
    %2632 = vmatpush.bf16.msra.mxu0 %v1309
    %2633 = vmatpush.bf16.msra.mxu0 %v1305
    %2634 = vmatpush.bf16.msra.mxu0 %v1301
    %2635 = vmatpush.bf16.msra.mxu0 %v1297
    %2636 = vmatpush.bf16.msra.mxu0 %v1293
    %2637 = vmatpush.bf16.msra.mxu0 %v1289
    %2638 = vmatpush.bf16.msra.mxu0 %v1285
    %2639 = vmatmul.bf16.gmra.mxu0 %v2458
    %v2640 = vpop.f32.mrf.mxu0
    %v2641 = vadd.f32 %v1085, %v2640
    %v2642 = vpop.f32.mrf.mxu0
    %2643 = vdwg.mxu0
    %2644 = vmatpush.bf16.msra.mxu0 %v1345
    %2645 = vmatpush.bf16.msra.mxu0 %v1341
    %2646 = vmatpush.bf16.msra.mxu0 %v1337
    %2647 = vmatpush.bf16.msra.mxu0 %v1333
    %2648 = vmatpush.bf16.msra.mxu0 %v1329
    %2649 = vmatpush.bf16.msra.mxu0 %v1325
    %2650 = vmatpush.bf16.msra.mxu0 %v1321
    %2651 = vmatpush.bf16.msra.mxu0 %v1317
    %2652 = vmatmul.bf16.gmra.mxu0 %v2578
    %v2653 = vpop.f32.mrf.mxu0
    %v2654 = vadd.f32 %v2641, %v2653
    %v2655 = vpop.f32.mrf.mxu0
    %2656 = vdwg.mxu0
    %2657 = vmatpush.bf16.msra.mxu0 %v1314
    %2658 = vmatpush.bf16.msra.mxu0 %v1310
    %2659 = vmatpush.bf16.msra.mxu0 %v1306
    %2660 = vmatpush.bf16.msra.mxu0 %v1302
    %2661 = vmatpush.bf16.msra.mxu0 %v1298
    %2662 = vmatpush.bf16.msra.mxu0 %v1294
    %2663 = vmatpush.bf16.msra.mxu0 %v1290
    %2664 = vmatpush.bf16.msra.mxu0 %v1286
    %2665 = vmatmul.bf16.gmra.mxu0 %v2458
    %v2666 = vpop.f32.mrf.mxu0
    %v2667 = vadd.f32 %v1086, %v2666
    %v2668 = vpop.f32.mrf.mxu0
    %2669 = vdwg.mxu0
    %2670 = vmatpush.bf16.msra.mxu0 %v1346
    %2671 = vmatpush.bf16.msra.mxu0 %v1342
    %2672 = vmatpush.bf16.msra.mxu0 %v1338
    %2673 = vmatpush.bf16.msra.mxu0 %v1334
    %2674 = vmatpush.bf16.msra.mxu0 %v1330
    %2675 = vmatpush.bf16.msra.mxu0 %v1326
    %2676 = vmatpush.bf16.msra.mxu0 %v1322
    %2677 = vmatpush.bf16.msra.mxu0 %v1318
    %2678 = vmatmul.bf16.gmra.mxu0 %v2578
    %v2679 = vpop.f32.mrf.mxu0
    %v2680 = vadd.f32 %v2667, %v2679
    %v2681 = vpop.f32.mrf.mxu0
    %2682 = vdwg.mxu0
    %v2683 = vxor.u32 %v2602, 2147483648
    %v2684 = vxor.u32 %v2628, 2147483648
    %v2685 = vxor.u32 %v2654, 2147483648
    %v2686 = vmul.f32 %v2683, 1.442695
    %v2687 = vpow.pop %v2686
    %v2688 = vmul.f32 %v2684, 1.442695
    %v2689 = vpow.pop %v2688
    %v2690 = vmul.f32 %v2685, 1.442695
    %v2691 = vpow.pop %v2690
    %v2692 = vadd.f32 %v2687, 1.0
    %v2693 = vadd.f32 %v2689, 1.0
    %v2694 = vadd.f32 %v2691, 1.0
    %v2695 = vrcp.pop %v2692
    %v2696 = vmul.f32 %v2692, %v2695
    %v2697 = vsub.f32 1.0, %v2696
    %v2698 = vmul.f32 %v2695, %v2697
    %v2699 = vadd.f32 %v2695, %v2698
    %vm2700 = vweird.f32 %v2692
    %vm2701 = vweird.f32 %v2695
    %vm2702 = vmor %vm2700, %vm2701
    %v2703 = vsel %vm2702, %v2695, %v2699
    %v2704 = vand.u32 2147483647, %v2692
    %vm2705 = vcmp.eq.f32.partialorder %v2704, 8.507059e+37
    %v2706 = vand.u32 %v2692, 2147483648
    %v2707 = vor.u32 1.1754944e-38, %v2706
    %v2708 = vsel %vm2705, %v2707, %v2703
    %v2709 = vmul.f32 1.0, %v2708
    %v2710 = vrcp.pop %v2693
    %v2711 = vmul.f32 %v2693, %v2710
    %v2712 = vsub.f32 1.0, %v2711
    %v2713 = vmul.f32 %v2710, %v2712
    %v2714 = vadd.f32 %v2710, %v2713
    %vm2715 = vweird.f32 %v2693
    %vm2716 = vweird.f32 %v2710
    %vm2717 = vmor %vm2715, %vm2716
    %v2718 = vsel %vm2717, %v2710, %v2714
    %v2719 = vand.u32 2147483647, %v2693
    %vm2720 = vcmp.eq.f32.partialorder %v2719, 8.507059e+37
    %v2721 = vand.u32 %v2693, 2147483648
    %v2722 = vor.u32 1.1754944e-38, %v2721
    %v2723 = vsel %vm2720, %v2722, %v2718
    %v2724 = vmul.f32 1.0, %v2723
    %v2725 = vrcp.pop %v2694
    %v2726 = vmul.f32 %v2694, %v2725
    %v2727 = vsub.f32 1.0, %v2726
    %v2728 = vmul.f32 %v2725, %v2727
    %v2729 = vadd.f32 %v2725, %v2728
    %vm2730 = vweird.f32 %v2694
    %vm2731 = vweird.f32 %v2725
    %vm2732 = vmor %vm2730, %vm2731
    %v2733 = vsel %vm2732, %v2725, %v2729
    %v2734 = vand.u32 2147483647, %v2694
    %vm2735 = vcmp.eq.f32.partialorder %v2734, 8.507059e+37
    %v2736 = vand.u32 %v2694, 2147483648
    %v2737 = vor.u32 1.1754944e-38, %v2736
    %v2738 = vsel %vm2735, %v2737, %v2733
    %v2739 = vmul.f32 1.0, %v2738
    %v2740 = vtanh.pop %v2680
    %v2741 = vmul.f32 %v2724, %v2451
    %v2742 = vmul.f32 %v2709, %v2740
    %v2743 = vadd.f32 %v2741, %v2742
    %v2744 = vtanh.pop %v2743
    %v2745 = vmul.f32 %v2739, %v2744
    %v2746 = vld [vmem:[#allocation3 + $0xc0] sm:$0xff]
    %v2747 = vld [vmem:[#allocation3 + $0xc8] sm:$0xff]
    %v2748 = vld [vmem:[#allocation3 + $0xd0] sm:$0xff]
    %v2749 = vld [vmem:[#allocation3 + $0xd8] sm:$0xff]
    %v2750 = vpack.c.bf16 %v2577, %v2577
    %2751 = vmatpush.bf16.msra.mxu0 %v802
    %2752 = vmatpush.bf16.msra.mxu0 %v798
    %2753 = vmatpush.bf16.msra.mxu0 %v794
    %2754 = vmatpush.bf16.msra.mxu0 %v790
    %2755 = vmatpush.bf16.msra.mxu0 %v786
    %2756 = vmatpush.bf16.msra.mxu0 %v782
    %2757 = vmatpush.bf16.msra.mxu0 %v778
    %2758 = vmatpush.bf16.msra.mxu0 %v774
    %2759 = vmatmul.bf16.gmra.mxu0 %v2750
    %v2760 = vpop.f32.mrf.mxu0
    %v2761 = vadd.f32 0.0, %v2760
    %v2762 = vpop.f32.mrf.mxu0
    %2763 = vdwg.mxu0
    %2764 = vmatpush.bf16.msra.mxu0 %v803
    %2765 = vmatpush.bf16.msra.mxu0 %v799
    %2766 = vmatpush.bf16.msra.mxu0 %v795
    %2767 = vmatpush.bf16.msra.mxu0 %v791
    %2768 = vmatpush.bf16.msra.mxu0 %v787
    %2769 = vmatpush.bf16.msra.mxu0 %v783
    %2770 = vmatpush.bf16.msra.mxu0 %v779
    %2771 = vmatpush.bf16.msra.mxu0 %v775
    %2772 = vmatmul.bf16.gmra.mxu0 %v2750
    %v2773 = vpop.f32.mrf.mxu0
    %v2774 = vadd.f32 0.0, %v2773
    %v2775 = vpop.f32.mrf.mxu0
    %2776 = vdwg.mxu0
    %2777 = vmatpush.bf16.msra.mxu0 %v804
    %2778 = vmatpush.bf16.msra.mxu0 %v800
    %2779 = vmatpush.bf16.msra.mxu0 %v796
    %2780 = vmatpush.bf16.msra.mxu0 %v792
    %2781 = vmatpush.bf16.msra.mxu0 %v788
    %2782 = vmatpush.bf16.msra.mxu0 %v784
    %2783 = vmatpush.bf16.msra.mxu0 %v780
    %2784 = vmatpush.bf16.msra.mxu0 %v776
    %2785 = vmatmul.bf16.gmra.mxu0 %v2750
    %v2786 = vpop.f32.mrf.mxu0
    %v2787 = vadd.f32 0.0, %v2786
    %v2788 = vpop.f32.mrf.mxu0
    %2789 = vdwg.mxu0
    %2790 = vmatpush.bf16.msra.mxu0 %v805
    %2791 = vmatpush.bf16.msra.mxu0 %v801
    %2792 = vmatpush.bf16.msra.mxu0 %v797
    %2793 = vmatpush.bf16.msra.mxu0 %v793
    %2794 = vmatpush.bf16.msra.mxu0 %v789
    %2795 = vmatpush.bf16.msra.mxu0 %v785
    %2796 = vmatpush.bf16.msra.mxu0 %v781
    %2797 = vmatpush.bf16.msra.mxu0 %v777
    %2798 = vmatmul.bf16.gmra.mxu0 %v2750
    %v2799 = vpop.f32.mrf.mxu0
    %v2800 = vadd.f32 0.0, %v2799
    %v2801 = vpop.f32.mrf.mxu0
    %2802 = vdwg.mxu0
    %v2803 = vadd.f32 %v2746, %v2761
    %v2804 = vadd.f32 %v2747, %v2774
    %v2805 = vadd.f32 %v2748, %v2787
    %v2806 = vadd.f32 %v2749, %v2800
    %v2807 = vxor.u32 %v2803, 2147483648
    %v2808 = vxor.u32 %v2804, 2147483648
    %v2809 = vxor.u32 %v2805, 2147483648
    %v2810 = vmul.f32 %v2807, 1.442695
    %v2811 = vpow.pop %v2810
    %v2812 = vmul.f32 %v2808, 1.442695
    %v2813 = vpow.pop %v2812
    %v2814 = vmul.f32 %v2809, 1.442695
    %v2815 = vpow.pop %v2814
    %v2816 = vadd.f32 %v2811, 1.0
    %v2817 = vadd.f32 %v2813, 1.0
    %v2818 = vadd.f32 %v2815, 1.0
    %v2819 = vrcp.pop %v2816
    %v2820 = vmul.f32 %v2816, %v2819
    %v2821 = vsub.f32 1.0, %v2820
    %v2822 = vmul.f32 %v2819, %v2821
    %v2823 = vadd.f32 %v2819, %v2822
    %vm2824 = vweird.f32 %v2816
    %vm2825 = vweird.f32 %v2819
    %vm2826 = vmor %vm2824, %vm2825
    %v2827 = vsel %vm2826, %v2819, %v2823
    %v2828 = vand.u32 2147483647, %v2816
    %vm2829 = vcmp.eq.f32.partialorder %v2828, 8.507059e+37
    %v2830 = vand.u32 %v2816, 2147483648
    %v2831 = vor.u32 1.1754944e-38, %v2830
    %v2832 = vsel %vm2829, %v2831, %v2827
    %v2833 = vmul.f32 1.0, %v2832
    %v2834 = vrcp.pop %v2817
    %v2835 = vmul.f32 %v2817, %v2834
    %v2836 = vsub.f32 1.0, %v2835
    %v2837 = vmul.f32 %v2834, %v2836
    %v2838 = vadd.f32 %v2834, %v2837
    %vm2839 = vweird.f32 %v2817
    %vm2840 = vweird.f32 %v2834
    %vm2841 = vmor %vm2839, %vm2840
    %v2842 = vsel %vm2841, %v2834, %v2838
    %v2843 = vand.u32 2147483647, %v2817
    %vm2844 = vcmp.eq.f32.partialorder %v2843, 8.507059e+37
    %v2845 = vand.u32 %v2817, 2147483648
    %v2846 = vor.u32 1.1754944e-38, %v2845
    %v2847 = vsel %vm2844, %v2846, %v2842
    %v2848 = vmul.f32 1.0, %v2847
    %v2849 = vrcp.pop %v2818
    %v2850 = vmul.f32 %v2818, %v2849
    %v2851 = vsub.f32 1.0, %v2850
    %v2852 = vmul.f32 %v2849, %v2851
    %v2853 = vadd.f32 %v2849, %v2852
    %vm2854 = vweird.f32 %v2818
    %vm2855 = vweird.f32 %v2849
    %vm2856 = vmor %vm2854, %vm2855
    %v2857 = vsel %vm2856, %v2849, %v2853
    %v2858 = vand.u32 2147483647, %v2818
    %vm2859 = vcmp.eq.f32.partialorder %v2858, 8.507059e+37
    %v2860 = vand.u32 %v2818, 2147483648
    %v2861 = vor.u32 1.1754944e-38, %v2860
    %v2862 = vsel %vm2859, %v2861, %v2857
    %v2863 = vmul.f32 1.0, %v2862
    %v2864 = vtanh.pop %v2806
    %v2865 = vmul.f32 %v2848, %v2575
    %v2866 = vmul.f32 %v2833, %v2864
    %v2867 = vadd.f32 %v2865, %v2866
    %v2868 = vtanh.pop %v2867
    %v2869 = vmul.f32 %v2863, %v2868
    %v2870 = vpack.c.bf16 %v2745, %v2745
    %2871 = vmatpush.bf16.msra.mxu0 %v1311
    %2872 = vmatpush.bf16.msra.mxu0 %v1307
    %2873 = vmatpush.bf16.msra.mxu0 %v1303
    %2874 = vmatpush.bf16.msra.mxu0 %v1299
    %2875 = vmatpush.bf16.msra.mxu0 %v1295
    %2876 = vmatpush.bf16.msra.mxu0 %v1291
    %2877 = vmatpush.bf16.msra.mxu0 %v1287
    %2878 = vmatpush.bf16.msra.mxu0 %v1283
    %2879 = vmatmul.bf16.gmra.mxu0 %v2750
    %v2880 = vpop.f32.mrf.mxu0
    %v2881 = vadd.f32 %v1083, %v2880
    %v2882 = vpop.f32.mrf.mxu0
    %2883 = vdwg.mxu0
    %2884 = vmatpush.bf16.msra.mxu0 %v1343
    %2885 = vmatpush.bf16.msra.mxu0 %v1339
    %2886 = vmatpush.bf16.msra.mxu0 %v1335
    %2887 = vmatpush.bf16.msra.mxu0 %v1331
    %2888 = vmatpush.bf16.msra.mxu0 %v1327
    %2889 = vmatpush.bf16.msra.mxu0 %v1323
    %2890 = vmatpush.bf16.msra.mxu0 %v1319
    %2891 = vmatpush.bf16.msra.mxu0 %v1315
    %2892 = vmatmul.bf16.gmra.mxu0 %v2870
    %v2893 = vpop.f32.mrf.mxu0
    %v2894 = vadd.f32 %v2881, %v2893
    %v2895 = vpop.f32.mrf.mxu0
    %2896 = vdwg.mxu0
    %2897 = vmatpush.bf16.msra.mxu0 %v1312
    %2898 = vmatpush.bf16.msra.mxu0 %v1308
    %2899 = vmatpush.bf16.msra.mxu0 %v1304
    %2900 = vmatpush.bf16.msra.mxu0 %v1300
    %2901 = vmatpush.bf16.msra.mxu0 %v1296
    %2902 = vmatpush.bf16.msra.mxu0 %v1292
    %2903 = vmatpush.bf16.msra.mxu0 %v1288
    %2904 = vmatpush.bf16.msra.mxu0 %v1284
    %2905 = vmatmul.bf16.gmra.mxu0 %v2750
    %v2906 = vpop.f32.mrf.mxu0
    %v2907 = vadd.f32 %v1084, %v2906
    %v2908 = vpop.f32.mrf.mxu0
    %2909 = vdwg.mxu0
    %2910 = vmatpush.bf16.msra.mxu0 %v1344
    %2911 = vmatpush.bf16.msra.mxu0 %v1340
    %2912 = vmatpush.bf16.msra.mxu0 %v1336
    %2913 = vmatpush.bf16.msra.mxu0 %v1332
    %2914 = vmatpush.bf16.msra.mxu0 %v1328
    %2915 = vmatpush.bf16.msra.mxu0 %v1324
    %2916 = vmatpush.bf16.msra.mxu0 %v1320
    %2917 = vmatpush.bf16.msra.mxu0 %v1316
    %2918 = vmatmul.bf16.gmra.mxu0 %v2870
    %v2919 = vpop.f32.mrf.mxu0
    %v2920 = vadd.f32 %v2907, %v2919
    %v2921 = vpop.f32.mrf.mxu0
    %2922 = vdwg.mxu0
    %2923 = vmatpush.bf16.msra.mxu0 %v1313
    %2924 = vmatpush.bf16.msra.mxu0 %v1309
    %2925 = vmatpush.bf16.msra.mxu0 %v1305
    %2926 = vmatpush.bf16.msra.mxu0 %v1301
    %2927 = vmatpush.bf16.msra.mxu0 %v1297
    %2928 = vmatpush.bf16.msra.mxu0 %v1293
    %2929 = vmatpush.bf16.msra.mxu0 %v1289
    %2930 = vmatpush.bf16.msra.mxu0 %v1285
    %2931 = vmatmul.bf16.gmra.mxu0 %v2750
    %v2932 = vpop.f32.mrf.mxu0
    %v2933 = vadd.f32 %v1085, %v2932
    %v2934 = vpop.f32.mrf.mxu0
    %2935 = vdwg.mxu0
    %2936 = vmatpush.bf16.msra.mxu0 %v1345
    %2937 = vmatpush.bf16.msra.mxu0 %v1341
    %2938 = vmatpush.bf16.msra.mxu0 %v1337
    %2939 = vmatpush.bf16.msra.mxu0 %v1333
    %2940 = vmatpush.bf16.msra.mxu0 %v1329
    %2941 = vmatpush.bf16.msra.mxu0 %v1325
    %2942 = vmatpush.bf16.msra.mxu0 %v1321
    %2943 = vmatpush.bf16.msra.mxu0 %v1317
    %2944 = vmatmul.bf16.gmra.mxu0 %v2870
    %v2945 = vpop.f32.mrf.mxu0
    %v2946 = vadd.f32 %v2933, %v2945
    %v2947 = vpop.f32.mrf.mxu0
    %2948 = vdwg.mxu0
    %2949 = vmatpush.bf16.msra.mxu0 %v1314
    %2950 = vmatpush.bf16.msra.mxu0 %v1310
    %2951 = vmatpush.bf16.msra.mxu0 %v1306
    %2952 = vmatpush.bf16.msra.mxu0 %v1302
    %2953 = vmatpush.bf16.msra.mxu0 %v1298
    %2954 = vmatpush.bf16.msra.mxu0 %v1294
    %2955 = vmatpush.bf16.msra.mxu0 %v1290
    %2956 = vmatpush.bf16.msra.mxu0 %v1286
    %2957 = vmatmul.bf16.gmra.mxu0 %v2750
    %v2958 = vpop.f32.mrf.mxu0
    %v2959 = vadd.f32 %v1086, %v2958
    %v2960 = vpop.f32.mrf.mxu0
    %2961 = vdwg.mxu0
    %2962 = vmatpush.bf16.msra.mxu0 %v1346
    %2963 = vmatpush.bf16.msra.mxu0 %v1342
    %2964 = vmatpush.bf16.msra.mxu0 %v1338
    %2965 = vmatpush.bf16.msra.mxu0 %v1334
    %2966 = vmatpush.bf16.msra.mxu0 %v1330
    %2967 = vmatpush.bf16.msra.mxu0 %v1326
    %2968 = vmatpush.bf16.msra.mxu0 %v1322
    %2969 = vmatpush.bf16.msra.mxu0 %v1318
    %2970 = vmatmul.bf16.gmra.mxu0 %v2870
    %v2971 = vpop.f32.mrf.mxu0
    %v2972 = vadd.f32 %v2959, %v2971
    %v2973 = vpop.f32.mrf.mxu0
    %2974 = vdwg.mxu0
    %v2975 = vxor.u32 %v2894, 2147483648
    %v2976 = vxor.u32 %v2920, 2147483648
    %v2977 = vxor.u32 %v2946, 2147483648
    %v2978 = vmul.f32 %v2975, 1.442695
    %v2979 = vpow.pop %v2978
    %v2980 = vmul.f32 %v2976, 1.442695
    %v2981 = vpow.pop %v2980
    %v2982 = vmul.f32 %v2977, 1.442695
    %v2983 = vpow.pop %v2982
    %v2984 = vadd.f32 %v2979, 1.0
    %v2985 = vadd.f32 %v2981, 1.0
    %v2986 = vadd.f32 %v2983, 1.0
    %v2987 = vrcp.pop %v2984
    %v2988 = vmul.f32 %v2984, %v2987
    %v2989 = vsub.f32 1.0, %v2988
    %v2990 = vmul.f32 %v2987, %v2989
    %v2991 = vadd.f32 %v2987, %v2990
    %vm2992 = vweird.f32 %v2984
    %vm2993 = vweird.f32 %v2987
    %vm2994 = vmor %vm2992, %vm2993
    %v2995 = vsel %vm2994, %v2987, %v2991
    %v2996 = vand.u32 2147483647, %v2984
    %vm2997 = vcmp.eq.f32.partialorder %v2996, 8.507059e+37
    %v2998 = vand.u32 %v2984, 2147483648
    %v2999 = vor.u32 1.1754944e-38, %v2998
    %v3000 = vsel %vm2997, %v2999, %v2995
    %v3001 = vmul.f32 1.0, %v3000
    %v3002 = vrcp.pop %v2985
    %v3003 = vmul.f32 %v2985, %v3002
    %v3004 = vsub.f32 1.0, %v3003
    %v3005 = vmul.f32 %v3002, %v3004
    %v3006 = vadd.f32 %v3002, %v3005
    %vm3007 = vweird.f32 %v2985
    %vm3008 = vweird.f32 %v3002
    %vm3009 = vmor %vm3007, %vm3008
    %v3010 = vsel %vm3009, %v3002, %v3006
    %v3011 = vand.u32 2147483647, %v2985
    %vm3012 = vcmp.eq.f32.partialorder %v3011, 8.507059e+37
    %v3013 = vand.u32 %v2985, 2147483648
    %v3014 = vor.u32 1.1754944e-38, %v3013
    %v3015 = vsel %vm3012, %v3014, %v3010
    %v3016 = vmul.f32 1.0, %v3015
    %v3017 = vrcp.pop %v2986
    %v3018 = vmul.f32 %v2986, %v3017
    %v3019 = vsub.f32 1.0, %v3018
    %v3020 = vmul.f32 %v3017, %v3019
    %v3021 = vadd.f32 %v3017, %v3020
    %vm3022 = vweird.f32 %v2986
    %vm3023 = vweird.f32 %v3017
    %vm3024 = vmor %vm3022, %vm3023
    %v3025 = vsel %vm3024, %v3017, %v3021
    %v3026 = vand.u32 2147483647, %v2986
    %vm3027 = vcmp.eq.f32.partialorder %v3026, 8.507059e+37
    %v3028 = vand.u32 %v2986, 2147483648
    %v3029 = vor.u32 1.1754944e-38, %v3028
    %v3030 = vsel %vm3027, %v3029, %v3025
    %v3031 = vmul.f32 1.0, %v3030
    %v3032 = vtanh.pop %v2972
    %v3033 = vmul.f32 %v3016, %v2743
    %v3034 = vmul.f32 %v3001, %v3032
    %v3035 = vadd.f32 %v3033, %v3034
    %v3036 = vtanh.pop %v3035
    %v3037 = vmul.f32 %v3031, %v3036
    %v3038 = vld [vmem:[#allocation3 + $0xe0] sm:$0xff]
    %v3039 = vld [vmem:[#allocation3 + $0xe8] sm:$0xff]
    %v3040 = vld [vmem:[#allocation3 + $0xf0] sm:$0xff]
    %v3041 = vld [vmem:[#allocation3 + $0xf8] sm:$0xff]
    %v3042 = vpack.c.bf16 %v2869, %v2869
    %3043 = vmatpush.bf16.msra.mxu0 %v802
    %3044 = vmatpush.bf16.msra.mxu0 %v798
    %3045 = vmatpush.bf16.msra.mxu0 %v794
    %3046 = vmatpush.bf16.msra.mxu0 %v790
    %3047 = vmatpush.bf16.msra.mxu0 %v786
    %3048 = vmatpush.bf16.msra.mxu0 %v782
    %3049 = vmatpush.bf16.msra.mxu0 %v778
    %3050 = vmatpush.bf16.msra.mxu0 %v774
    %3051 = vmatmul.bf16.gmra.mxu0 %v3042
    %v3052 = vpop.f32.mrf.mxu0
    %v3053 = vadd.f32 0.0, %v3052
    %v3054 = vpop.f32.mrf.mxu0
    %3055 = vdwg.mxu0
    %3056 = vmatpush.bf16.msra.mxu0 %v803
    %3057 = vmatpush.bf16.msra.mxu0 %v799
    %3058 = vmatpush.bf16.msra.mxu0 %v795
    %3059 = vmatpush.bf16.msra.mxu0 %v791
    %3060 = vmatpush.bf16.msra.mxu0 %v787
    %3061 = vmatpush.bf16.msra.mxu0 %v783
    %3062 = vmatpush.bf16.msra.mxu0 %v779
    %3063 = vmatpush.bf16.msra.mxu0 %v775
    %3064 = vmatmul.bf16.gmra.mxu0 %v3042
    %v3065 = vpop.f32.mrf.mxu0
    %v3066 = vadd.f32 0.0, %v3065
    %v3067 = vpop.f32.mrf.mxu0
    %3068 = vdwg.mxu0
    %3069 = vmatpush.bf16.msra.mxu0 %v804
    %3070 = vmatpush.bf16.msra.mxu0 %v800
    %3071 = vmatpush.bf16.msra.mxu0 %v796
    %3072 = vmatpush.bf16.msra.mxu0 %v792
    %3073 = vmatpush.bf16.msra.mxu0 %v788
    %3074 = vmatpush.bf16.msra.mxu0 %v784
    %3075 = vmatpush.bf16.msra.mxu0 %v780
    %3076 = vmatpush.bf16.msra.mxu0 %v776
    %3077 = vmatmul.bf16.gmra.mxu0 %v3042
    %v3078 = vpop.f32.mrf.mxu0
    %v3079 = vadd.f32 0.0, %v3078
    %v3080 = vpop.f32.mrf.mxu0
    %3081 = vdwg.mxu0
    %3082 = vmatpush.bf16.msra.mxu0 %v805
    %3083 = vmatpush.bf16.msra.mxu0 %v801
    %3084 = vmatpush.bf16.msra.mxu0 %v797
    %3085 = vmatpush.bf16.msra.mxu0 %v793
    %3086 = vmatpush.bf16.msra.mxu0 %v789
    %3087 = vmatpush.bf16.msra.mxu0 %v785
    %3088 = vmatpush.bf16.msra.mxu0 %v781
    %3089 = vmatpush.bf16.msra.mxu0 %v777
    %3090 = vmatmul.bf16.gmra.mxu0 %v3042
    %v3091 = vpop.f32.mrf.mxu0
    %v3092 = vadd.f32 0.0, %v3091
    %v3093 = vpop.f32.mrf.mxu0
    %3094 = vdwg.mxu0
    %v3095 = vadd.f32 %v3038, %v3053
    %v3096 = vadd.f32 %v3039, %v3066
    %v3097 = vadd.f32 %v3040, %v3079
    %v3098 = vadd.f32 %v3041, %v3092
    %v3099 = vxor.u32 %v3095, 2147483648
    %v3100 = vxor.u32 %v3096, 2147483648
    %v3101 = vxor.u32 %v3097, 2147483648
    %v3102 = vmul.f32 %v3099, 1.442695
    %v3103 = vpow.pop %v3102
    %v3104 = vmul.f32 %v3100, 1.442695
    %v3105 = vpow.pop %v3104
    %v3106 = vmul.f32 %v3101, 1.442695
    %v3107 = vpow.pop %v3106
    %v3108 = vadd.f32 %v3103, 1.0
    %v3109 = vadd.f32 %v3105, 1.0
    %v3110 = vadd.f32 %v3107, 1.0
    %v3111 = vrcp.pop %v3108
    %v3112 = vmul.f32 %v3108, %v3111
    %v3113 = vsub.f32 1.0, %v3112
    %v3114 = vmul.f32 %v3111, %v3113
    %v3115 = vadd.f32 %v3111, %v3114
    %vm3116 = vweird.f32 %v3108
    %vm3117 = vweird.f32 %v3111
    %vm3118 = vmor %vm3116, %vm3117
    %v3119 = vsel %vm3118, %v3111, %v3115
    %v3120 = vand.u32 2147483647, %v3108
    %vm3121 = vcmp.eq.f32.partialorder %v3120, 8.507059e+37
    %v3122 = vand.u32 %v3108, 2147483648
    %v3123 = vor.u32 1.1754944e-38, %v3122
    %v3124 = vsel %vm3121, %v3123, %v3119
    %v3125 = vmul.f32 1.0, %v3124
    %v3126 = vrcp.pop %v3109
    %v3127 = vmul.f32 %v3109, %v3126
    %v3128 = vsub.f32 1.0, %v3127
    %v3129 = vmul.f32 %v3126, %v3128
    %v3130 = vadd.f32 %v3126, %v3129
    %vm3131 = vweird.f32 %v3109
    %vm3132 = vweird.f32 %v3126
    %vm3133 = vmor %vm3131, %vm3132
    %v3134 = vsel %vm3133, %v3126, %v3130
    %v3135 = vand.u32 2147483647, %v3109
    %vm3136 = vcmp.eq.f32.partialorder %v3135, 8.507059e+37
    %v3137 = vand.u32 %v3109, 2147483648
    %v3138 = vor.u32 1.1754944e-38, %v3137
    %v3139 = vsel %vm3136, %v3138, %v3134
    %v3140 = vmul.f32 1.0, %v3139
    %v3141 = vrcp.pop %v3110
    %v3142 = vmul.f32 %v3110, %v3141
    %v3143 = vsub.f32 1.0, %v3142
    %v3144 = vmul.f32 %v3141, %v3143
    %v3145 = vadd.f32 %v3141, %v3144
    %vm3146 = vweird.f32 %v3110
    %vm3147 = vweird.f32 %v3141
    %vm3148 = vmor %vm3146, %vm3147
    %v3149 = vsel %vm3148, %v3141, %v3145
    %v3150 = vand.u32 2147483647, %v3110
    %vm3151 = vcmp.eq.f32.partialorder %v3150, 8.507059e+37
    %v3152 = vand.u32 %v3110, 2147483648
    %v3153 = vor.u32 1.1754944e-38, %v3152
    %v3154 = vsel %vm3151, %v3153, %v3149
    %v3155 = vmul.f32 1.0, %v3154
    %v3156 = vtanh.pop %v3098
    %v3157 = vmul.f32 %v3140, %v2867
    %v3158 = vmul.f32 %v3125, %v3156
    %v3159 = vadd.f32 %v3157, %v3158
    %v3160 = vtanh.pop %v3159
    %v3161 = vmul.f32 %v3155, %v3160
    %v3162 = vpack.c.bf16 %v3037, %v3037
    %3163 = vmatpush.bf16.msra.mxu0 %v1311
    %3164 = vmatpush.bf16.msra.mxu0 %v1307
    %3165 = vmatpush.bf16.msra.mxu0 %v1303
    %3166 = vmatpush.bf16.msra.mxu0 %v1299
    %3167 = vmatpush.bf16.msra.mxu0 %v1295
    %3168 = vmatpush.bf16.msra.mxu0 %v1291
    %3169 = vmatpush.bf16.msra.mxu0 %v1287
    %3170 = vmatpush.bf16.msra.mxu0 %v1283
    %3171 = vmatmul.bf16.gmra.mxu0 %v3042
    %v3172 = vpop.f32.mrf.mxu0
    %v3173 = vadd.f32 %v1083, %v3172
    %v3174 = vpop.f32.mrf.mxu0
    %3175 = vdwg.mxu0
    %3176 = vmatpush.bf16.msra.mxu0 %v1343
    %3177 = vmatpush.bf16.msra.mxu0 %v1339
    %3178 = vmatpush.bf16.msra.mxu0 %v1335
    %3179 = vmatpush.bf16.msra.mxu0 %v1331
    %3180 = vmatpush.bf16.msra.mxu0 %v1327
    %3181 = vmatpush.bf16.msra.mxu0 %v1323
    %3182 = vmatpush.bf16.msra.mxu0 %v1319
    %3183 = vmatpush.bf16.msra.mxu0 %v1315
    %3184 = vmatmul.bf16.gmra.mxu0 %v3162
    %v3185 = vpop.f32.mrf.mxu0
    %v3186 = vadd.f32 %v3173, %v3185
    %v3187 = vpop.f32.mrf.mxu0
    %3188 = vdwg.mxu0
    %3189 = vmatpush.bf16.msra.mxu0 %v1312
    %3190 = vmatpush.bf16.msra.mxu0 %v1308
    %3191 = vmatpush.bf16.msra.mxu0 %v1304
    %3192 = vmatpush.bf16.msra.mxu0 %v1300
    %3193 = vmatpush.bf16.msra.mxu0 %v1296
    %3194 = vmatpush.bf16.msra.mxu0 %v1292
    %3195 = vmatpush.bf16.msra.mxu0 %v1288
    %3196 = vmatpush.bf16.msra.mxu0 %v1284
    %3197 = vmatmul.bf16.gmra.mxu0 %v3042
    %v3198 = vpop.f32.mrf.mxu0
    %v3199 = vadd.f32 %v1084, %v3198
    %v3200 = vpop.f32.mrf.mxu0
    %3201 = vdwg.mxu0
    %3202 = vmatpush.bf16.msra.mxu0 %v1344
    %3203 = vmatpush.bf16.msra.mxu0 %v1340
    %3204 = vmatpush.bf16.msra.mxu0 %v1336
    %3205 = vmatpush.bf16.msra.mxu0 %v1332
    %3206 = vmatpush.bf16.msra.mxu0 %v1328
    %3207 = vmatpush.bf16.msra.mxu0 %v1324
    %3208 = vmatpush.bf16.msra.mxu0 %v1320
    %3209 = vmatpush.bf16.msra.mxu0 %v1316
    %3210 = vmatmul.bf16.gmra.mxu0 %v3162
    %v3211 = vpop.f32.mrf.mxu0
    %v3212 = vadd.f32 %v3199, %v3211
    %v3213 = vpop.f32.mrf.mxu0
    %3214 = vdwg.mxu0
    %3215 = vmatpush.bf16.msra.mxu0 %v1313
    %3216 = vmatpush.bf16.msra.mxu0 %v1309
    %3217 = vmatpush.bf16.msra.mxu0 %v1305
    %3218 = vmatpush.bf16.msra.mxu0 %v1301
    %3219 = vmatpush.bf16.msra.mxu0 %v1297
    %3220 = vmatpush.bf16.msra.mxu0 %v1293
    %3221 = vmatpush.bf16.msra.mxu0 %v1289
    %3222 = vmatpush.bf16.msra.mxu0 %v1285
    %3223 = vmatmul.bf16.gmra.mxu0 %v3042
    %v3224 = vpop.f32.mrf.mxu0
    %v3225 = vadd.f32 %v1085, %v3224
    %v3226 = vpop.f32.mrf.mxu0
    %3227 = vdwg.mxu0
    %3228 = vmatpush.bf16.msra.mxu0 %v1345
    %3229 = vmatpush.bf16.msra.mxu0 %v1341
    %3230 = vmatpush.bf16.msra.mxu0 %v1337
    %3231 = vmatpush.bf16.msra.mxu0 %v1333
    %3232 = vmatpush.bf16.msra.mxu0 %v1329
    %3233 = vmatpush.bf16.msra.mxu0 %v1325
    %3234 = vmatpush.bf16.msra.mxu0 %v1321
    %3235 = vmatpush.bf16.msra.mxu0 %v1317
    %3236 = vmatmul.bf16.gmra.mxu0 %v3162
    %v3237 = vpop.f32.mrf.mxu0
    %v3238 = vadd.f32 %v3225, %v3237
    %v3239 = vpop.f32.mrf.mxu0
    %3240 = vdwg.mxu0
    %3241 = vmatpush.bf16.msra.mxu0 %v1314
    %3242 = vmatpush.bf16.msra.mxu0 %v1310
    %3243 = vmatpush.bf16.msra.mxu0 %v1306
    %3244 = vmatpush.bf16.msra.mxu0 %v1302
    %3245 = vmatpush.bf16.msra.mxu0 %v1298
    %3246 = vmatpush.bf16.msra.mxu0 %v1294
    %3247 = vmatpush.bf16.msra.mxu0 %v1290
    %3248 = vmatpush.bf16.msra.mxu0 %v1286
    %3249 = vmatmul.bf16.gmra.mxu0 %v3042
    %v3250 = vpop.f32.mrf.mxu0
    %v3251 = vadd.f32 %v1086, %v3250
    %v3252 = vpop.f32.mrf.mxu0
    %3253 = vdwg.mxu0
    %3254 = vmatpush.bf16.msra.mxu0 %v1346
    %3255 = vmatpush.bf16.msra.mxu0 %v1342
    %3256 = vmatpush.bf16.msra.mxu0 %v1338
    %3257 = vmatpush.bf16.msra.mxu0 %v1334
    %3258 = vmatpush.bf16.msra.mxu0 %v1330
    %3259 = vmatpush.bf16.msra.mxu0 %v1326
    %3260 = vmatpush.bf16.msra.mxu0 %v1322
    %3261 = vmatpush.bf16.msra.mxu0 %v1318
    %3262 = vmatmul.bf16.gmra.mxu0 %v3162
    %v3263 = vpop.f32.mrf.mxu0
    %v3264 = vadd.f32 %v3251, %v3263
    %v3265 = vpop.f32.mrf.mxu0
    %3266 = vdwg.mxu0
    %v3267 = vxor.u32 %v3186, 2147483648
    %v3268 = vxor.u32 %v3212, 2147483648
    %v3269 = vxor.u32 %v3238, 2147483648
    %v3270 = vmul.f32 %v3267, 1.442695
    %v3271 = vpow.pop %v3270
    %v3272 = vmul.f32 %v3268, 1.442695
    %v3273 = vpow.pop %v3272
    %v3274 = vmul.f32 %v3269, 1.442695
    %v3275 = vpow.pop %v3274
    %v3276 = vadd.f32 %v3271, 1.0
    %v3277 = vadd.f32 %v3273, 1.0
    %v3278 = vadd.f32 %v3275, 1.0
    %v3279 = vrcp.pop %v3276
    %v3280 = vmul.f32 %v3276, %v3279
    %v3281 = vsub.f32 1.0, %v3280
    %v3282 = vmul.f32 %v3279, %v3281
    %v3283 = vadd.f32 %v3279, %v3282
    %vm3284 = vweird.f32 %v3276
    %vm3285 = vweird.f32 %v3279
    %vm3286 = vmor %vm3284, %vm3285
    %v3287 = vsel %vm3286, %v3279, %v3283
    %v3288 = vand.u32 2147483647, %v3276
    %vm3289 = vcmp.eq.f32.partialorder %v3288, 8.507059e+37
    %v3290 = vand.u32 %v3276, 2147483648
    %v3291 = vor.u32 1.1754944e-38, %v3290
    %v3292 = vsel %vm3289, %v3291, %v3287
    %v3293 = vmul.f32 1.0, %v3292
    %v3294 = vrcp.pop %v3277
    %v3295 = vmul.f32 %v3277, %v3294
    %v3296 = vsub.f32 1.0, %v3295
    %v3297 = vmul.f32 %v3294, %v3296
    %v3298 = vadd.f32 %v3294, %v3297
    %vm3299 = vweird.f32 %v3277
    %vm3300 = vweird.f32 %v3294
    %vm3301 = vmor %vm3299, %vm3300
    %v3302 = vsel %vm3301, %v3294, %v3298
    %v3303 = vand.u32 2147483647, %v3277
    %vm3304 = vcmp.eq.f32.partialorder %v3303, 8.507059e+37
    %v3305 = vand.u32 %v3277, 2147483648
    %v3306 = vor.u32 1.1754944e-38, %v3305
    %v3307 = vsel %vm3304, %v3306, %v3302
    %v3308 = vmul.f32 1.0, %v3307
    %v3309 = vrcp.pop %v3278
    %v3310 = vmul.f32 %v3278, %v3309
    %v3311 = vsub.f32 1.0, %v3310
    %v3312 = vmul.f32 %v3309, %v3311
    %v3313 = vadd.f32 %v3309, %v3312
    %vm3314 = vweird.f32 %v3278
    %vm3315 = vweird.f32 %v3309
    %vm3316 = vmor %vm3314, %vm3315
    %v3317 = vsel %vm3316, %v3309, %v3313
    %v3318 = vand.u32 2147483647, %v3278
    %vm3319 = vcmp.eq.f32.partialorder %v3318, 8.507059e+37
    %v3320 = vand.u32 %v3278, 2147483648
    %v3321 = vor.u32 1.1754944e-38, %v3320
    %v3322 = vsel %vm3319, %v3321, %v3317
    %v3323 = vmul.f32 1.0, %v3322
    %v3324 = vtanh.pop %v3264
    %v3325 = vmul.f32 %v3308, %v3035
    %v3326 = vmul.f32 %v3293, %v3324
    %v3327 = vadd.f32 %v3325, %v3326
    %v3328 = vtanh.pop %v3327
    %v3329 = vmul.f32 %v3323, %v3328
    %v3330 = vld [vmem:[#allocation3 + $0x100] sm:$0xff]
    %v3331 = vld [vmem:[#allocation3 + $0x108] sm:$0xff]
    %v3332 = vld [vmem:[#allocation3 + $0x110] sm:$0xff]
    %v3333 = vld [vmem:[#allocation3 + $0x118] sm:$0xff]
    %v3334 = vpack.c.bf16 %v3161, %v3161
    %3335 = vmatpush.bf16.msra.mxu0 %v802
    %3336 = vmatpush.bf16.msra.mxu0 %v798
    %3337 = vmatpush.bf16.msra.mxu0 %v794
    %3338 = vmatpush.bf16.msra.mxu0 %v790
    %3339 = vmatpush.bf16.msra.mxu0 %v786
    %3340 = vmatpush.bf16.msra.mxu0 %v782
    %3341 = vmatpush.bf16.msra.mxu0 %v778
    %3342 = vmatpush.bf16.msra.mxu0 %v774
    %3343 = vmatmul.bf16.gmra.mxu0 %v3334
    %v3344 = vpop.f32.mrf.mxu0
    %v3345 = vadd.f32 0.0, %v3344
    %v3346 = vpop.f32.mrf.mxu0
    %3347 = vdwg.mxu0
    %3348 = vmatpush.bf16.msra.mxu0 %v803
    %3349 = vmatpush.bf16.msra.mxu0 %v799
    %3350 = vmatpush.bf16.msra.mxu0 %v795
    %3351 = vmatpush.bf16.msra.mxu0 %v791
    %3352 = vmatpush.bf16.msra.mxu0 %v787
    %3353 = vmatpush.bf16.msra.mxu0 %v783
    %3354 = vmatpush.bf16.msra.mxu0 %v779
    %3355 = vmatpush.bf16.msra.mxu0 %v775
    %3356 = vmatmul.bf16.gmra.mxu0 %v3334
    %v3357 = vpop.f32.mrf.mxu0
    %v3358 = vadd.f32 0.0, %v3357
    %v3359 = vpop.f32.mrf.mxu0
    %3360 = vdwg.mxu0
    %3361 = vmatpush.bf16.msra.mxu0 %v804
    %3362 = vmatpush.bf16.msra.mxu0 %v800
    %3363 = vmatpush.bf16.msra.mxu0 %v796
    %3364 = vmatpush.bf16.msra.mxu0 %v792
    %3365 = vmatpush.bf16.msra.mxu0 %v788
    %3366 = vmatpush.bf16.msra.mxu0 %v784
    %3367 = vmatpush.bf16.msra.mxu0 %v780
    %3368 = vmatpush.bf16.msra.mxu0 %v776
    %3369 = vmatmul.bf16.gmra.mxu0 %v3334
    %v3370 = vpop.f32.mrf.mxu0
    %v3371 = vadd.f32 0.0, %v3370
    %v3372 = vpop.f32.mrf.mxu0
    %3373 = vdwg.mxu0
    %3374 = vmatpush.bf16.msra.mxu0 %v805
    %3375 = vmatpush.bf16.msra.mxu0 %v801
    %3376 = vmatpush.bf16.msra.mxu0 %v797
    %3377 = vmatpush.bf16.msra.mxu0 %v793
    %3378 = vmatpush.bf16.msra.mxu0 %v789
    %3379 = vmatpush.bf16.msra.mxu0 %v785
    %3380 = vmatpush.bf16.msra.mxu0 %v781
    %3381 = vmatpush.bf16.msra.mxu0 %v777
    %3382 = vmatmul.bf16.gmra.mxu0 %v3334
    %v3383 = vpop.f32.mrf.mxu0
    %v3384 = vadd.f32 0.0, %v3383
    %v3385 = vpop.f32.mrf.mxu0
    %3386 = vdwg.mxu0
    %v3387 = vadd.f32 %v3330, %v3345
    %v3388 = vadd.f32 %v3331, %v3358
    %v3389 = vadd.f32 %v3332, %v3371
    %v3390 = vadd.f32 %v3333, %v3384
    %v3391 = vxor.u32 %v3387, 2147483648
    %v3392 = vxor.u32 %v3388, 2147483648
    %v3393 = vxor.u32 %v3389, 2147483648
    %v3394 = vmul.f32 %v3391, 1.442695
    %v3395 = vpow.pop %v3394
    %v3396 = vmul.f32 %v3392, 1.442695
    %v3397 = vpow.pop %v3396
    %v3398 = vmul.f32 %v3393, 1.442695
    %v3399 = vpow.pop %v3398
    %v3400 = vadd.f32 %v3395, 1.0
    %v3401 = vadd.f32 %v3397, 1.0
    %v3402 = vadd.f32 %v3399, 1.0
    %v3403 = vrcp.pop %v3400
    %v3404 = vmul.f32 %v3400, %v3403
    %v3405 = vsub.f32 1.0, %v3404
    %v3406 = vmul.f32 %v3403, %v3405
    %v3407 = vadd.f32 %v3403, %v3406
    %vm3408 = vweird.f32 %v3400
    %vm3409 = vweird.f32 %v3403
    %vm3410 = vmor %vm3408, %vm3409
    %v3411 = vsel %vm3410, %v3403, %v3407
    %v3412 = vand.u32 2147483647, %v3400
    %vm3413 = vcmp.eq.f32.partialorder %v3412, 8.507059e+37
    %v3414 = vand.u32 %v3400, 2147483648
    %v3415 = vor.u32 1.1754944e-38, %v3414
    %v3416 = vsel %vm3413, %v3415, %v3411
    %v3417 = vmul.f32 1.0, %v3416
    %v3418 = vrcp.pop %v3401
    %v3419 = vmul.f32 %v3401, %v3418
    %v3420 = vsub.f32 1.0, %v3419
    %v3421 = vmul.f32 %v3418, %v3420
    %v3422 = vadd.f32 %v3418, %v3421
    %vm3423 = vweird.f32 %v3401
    %vm3424 = vweird.f32 %v3418
    %vm3425 = vmor %vm3423, %vm3424
    %v3426 = vsel %vm3425, %v3418, %v3422
    %v3427 = vand.u32 2147483647, %v3401
    %vm3428 = vcmp.eq.f32.partialorder %v3427, 8.507059e+37
    %v3429 = vand.u32 %v3401, 2147483648
    %v3430 = vor.u32 1.1754944e-38, %v3429
    %v3431 = vsel %vm3428, %v3430, %v3426
    %v3432 = vmul.f32 1.0, %v3431
    %v3433 = vrcp.pop %v3402
    %v3434 = vmul.f32 %v3402, %v3433
    %v3435 = vsub.f32 1.0, %v3434
    %v3436 = vmul.f32 %v3433, %v3435
    %v3437 = vadd.f32 %v3433, %v3436
    %vm3438 = vweird.f32 %v3402
    %vm3439 = vweird.f32 %v3433
    %vm3440 = vmor %vm3438, %vm3439
    %v3441 = vsel %vm3440, %v3433, %v3437
    %v3442 = vand.u32 2147483647, %v3402
    %vm3443 = vcmp.eq.f32.partialorder %v3442, 8.507059e+37
    %v3444 = vand.u32 %v3402, 2147483648
    %v3445 = vor.u32 1.1754944e-38, %v3444
    %v3446 = vsel %vm3443, %v3445, %v3441
    %v3447 = vmul.f32 1.0, %v3446
    %v3448 = vtanh.pop %v3390
    %v3449 = vmul.f32 %v3432, %v3159
    %v3450 = vmul.f32 %v3417, %v3448
    %v3451 = vadd.f32 %v3449, %v3450
    %v3452 = vtanh.pop %v3451
    %v3453 = vmul.f32 %v3447, %v3452
    %v3454 = vpack.c.bf16 %v3329, %v3329
    %3455 = vmatpush.bf16.msra.mxu0 %v1311
    %3456 = vmatpush.bf16.msra.mxu0 %v1307
    %3457 = vmatpush.bf16.msra.mxu0 %v1303
    %3458 = vmatpush.bf16.msra.mxu0 %v1299
    %3459 = vmatpush.bf16.msra.mxu0 %v1295
    %3460 = vmatpush.bf16.msra.mxu0 %v1291
    %3461 = vmatpush.bf16.msra.mxu0 %v1287
    %3462 = vmatpush.bf16.msra.mxu0 %v1283
    %3463 = vmatmul.bf16.gmra.mxu0 %v3334
    %v3464 = vpop.f32.mrf.mxu0
    %v3465 = vadd.f32 %v1083, %v3464
    %v3466 = vpop.f32.mrf.mxu0
    %3467 = vdwg.mxu0
    %3468 = vmatpush.bf16.msra.mxu0 %v1343
    %3469 = vmatpush.bf16.msra.mxu0 %v1339
    %3470 = vmatpush.bf16.msra.mxu0 %v1335
    %3471 = vmatpush.bf16.msra.mxu0 %v1331
    %3472 = vmatpush.bf16.msra.mxu0 %v1327
    %3473 = vmatpush.bf16.msra.mxu0 %v1323
    %3474 = vmatpush.bf16.msra.mxu0 %v1319
    %3475 = vmatpush.bf16.msra.mxu0 %v1315
    %3476 = vmatmul.bf16.gmra.mxu0 %v3454
    %v3477 = vpop.f32.mrf.mxu0
    %v3478 = vadd.f32 %v3465, %v3477
    %v3479 = vpop.f32.mrf.mxu0
    %3480 = vdwg.mxu0
    %3481 = vmatpush.bf16.msra.mxu0 %v1312
    %3482 = vmatpush.bf16.msra.mxu0 %v1308
    %3483 = vmatpush.bf16.msra.mxu0 %v1304
    %3484 = vmatpush.bf16.msra.mxu0 %v1300
    %3485 = vmatpush.bf16.msra.mxu0 %v1296
    %3486 = vmatpush.bf16.msra.mxu0 %v1292
    %3487 = vmatpush.bf16.msra.mxu0 %v1288
    %3488 = vmatpush.bf16.msra.mxu0 %v1284
    %3489 = vmatmul.bf16.gmra.mxu0 %v3334
    %v3490 = vpop.f32.mrf.mxu0
    %v3491 = vadd.f32 %v1084, %v3490
    %v3492 = vpop.f32.mrf.mxu0
    %3493 = vdwg.mxu0
    %3494 = vmatpush.bf16.msra.mxu0 %v1344
    %3495 = vmatpush.bf16.msra.mxu0 %v1340
    %3496 = vmatpush.bf16.msra.mxu0 %v1336
    %3497 = vmatpush.bf16.msra.mxu0 %v1332
    %3498 = vmatpush.bf16.msra.mxu0 %v1328
    %3499 = vmatpush.bf16.msra.mxu0 %v1324
    %3500 = vmatpush.bf16.msra.mxu0 %v1320
    %3501 = vmatpush.bf16.msra.mxu0 %v1316
    %3502 = vmatmul.bf16.gmra.mxu0 %v3454
    %v3503 = vpop.f32.mrf.mxu0
    %v3504 = vadd.f32 %v3491, %v3503
    %v3505 = vpop.f32.mrf.mxu0
    %3506 = vdwg.mxu0
    %3507 = vmatpush.bf16.msra.mxu0 %v1313
    %3508 = vmatpush.bf16.msra.mxu0 %v1309
    %3509 = vmatpush.bf16.msra.mxu0 %v1305
    %3510 = vmatpush.bf16.msra.mxu0 %v1301
    %3511 = vmatpush.bf16.msra.mxu0 %v1297
    %3512 = vmatpush.bf16.msra.mxu0 %v1293
    %3513 = vmatpush.bf16.msra.mxu0 %v1289
    %3514 = vmatpush.bf16.msra.mxu0 %v1285
    %3515 = vmatmul.bf16.gmra.mxu0 %v3334
    %v3516 = vpop.f32.mrf.mxu0
    %v3517 = vadd.f32 %v1085, %v3516
    %v3518 = vpop.f32.mrf.mxu0
    %3519 = vdwg.mxu0
    %3520 = vmatpush.bf16.msra.mxu0 %v1345
    %3521 = vmatpush.bf16.msra.mxu0 %v1341
    %3522 = vmatpush.bf16.msra.mxu0 %v1337
    %3523 = vmatpush.bf16.msra.mxu0 %v1333
    %3524 = vmatpush.bf16.msra.mxu0 %v1329
    %3525 = vmatpush.bf16.msra.mxu0 %v1325
    %3526 = vmatpush.bf16.msra.mxu0 %v1321
    %3527 = vmatpush.bf16.msra.mxu0 %v1317
    %3528 = vmatmul.bf16.gmra.mxu0 %v3454
    %v3529 = vpop.f32.mrf.mxu0
    %v3530 = vadd.f32 %v3517, %v3529
    %v3531 = vpop.f32.mrf.mxu0
    %3532 = vdwg.mxu0
    %3533 = vmatpush.bf16.msra.mxu0 %v1314
    %3534 = vmatpush.bf16.msra.mxu0 %v1310
    %3535 = vmatpush.bf16.msra.mxu0 %v1306
    %3536 = vmatpush.bf16.msra.mxu0 %v1302
    %3537 = vmatpush.bf16.msra.mxu0 %v1298
    %3538 = vmatpush.bf16.msra.mxu0 %v1294
    %3539 = vmatpush.bf16.msra.mxu0 %v1290
    %3540 = vmatpush.bf16.msra.mxu0 %v1286
    %3541 = vmatmul.bf16.gmra.mxu0 %v3334
    %v3542 = vpop.f32.mrf.mxu0
    %v3543 = vadd.f32 %v1086, %v3542
    %v3544 = vpop.f32.mrf.mxu0
    %3545 = vdwg.mxu0
    %3546 = vmatpush.bf16.msra.mxu0 %v1346
    %3547 = vmatpush.bf16.msra.mxu0 %v1342
    %3548 = vmatpush.bf16.msra.mxu0 %v1338
    %3549 = vmatpush.bf16.msra.mxu0 %v1334
    %3550 = vmatpush.bf16.msra.mxu0 %v1330
    %3551 = vmatpush.bf16.msra.mxu0 %v1326
    %3552 = vmatpush.bf16.msra.mxu0 %v1322
    %3553 = vmatpush.bf16.msra.mxu0 %v1318
    %3554 = vmatmul.bf16.gmra.mxu0 %v3454
    %v3555 = vpop.f32.mrf.mxu0
    %v3556 = vadd.f32 %v3543, %v3555
    %v3557 = vpop.f32.mrf.mxu0
    %3558 = vdwg.mxu0
    %v3559 = vxor.u32 %v3478, 2147483648
    %v3560 = vxor.u32 %v3504, 2147483648
    %v3561 = vxor.u32 %v3530, 2147483648
    %v3562 = vmul.f32 %v3559, 1.442695
    %v3563 = vpow.pop %v3562
    %v3564 = vmul.f32 %v3560, 1.442695
    %v3565 = vpow.pop %v3564
    %v3566 = vmul.f32 %v3561, 1.442695
    %v3567 = vpow.pop %v3566
    %v3568 = vadd.f32 %v3563, 1.0
    %v3569 = vadd.f32 %v3565, 1.0
    %v3570 = vadd.f32 %v3567, 1.0
    %v3571 = vrcp.pop %v3568
    %v3572 = vmul.f32 %v3568, %v3571
    %v3573 = vsub.f32 1.0, %v3572
    %v3574 = vmul.f32 %v3571, %v3573
    %v3575 = vadd.f32 %v3571, %v3574
    %vm3576 = vweird.f32 %v3568
    %vm3577 = vweird.f32 %v3571
    %vm3578 = vmor %vm3576, %vm3577
    %v3579 = vsel %vm3578, %v3571, %v3575
    %v3580 = vand.u32 2147483647, %v3568
    %vm3581 = vcmp.eq.f32.partialorder %v3580, 8.507059e+37
    %v3582 = vand.u32 %v3568, 2147483648
    %v3583 = vor.u32 1.1754944e-38, %v3582
    %v3584 = vsel %vm3581, %v3583, %v3579
    %v3585 = vmul.f32 1.0, %v3584
    %v3586 = vrcp.pop %v3569
    %v3587 = vmul.f32 %v3569, %v3586
    %v3588 = vsub.f32 1.0, %v3587
    %v3589 = vmul.f32 %v3586, %v3588
    %v3590 = vadd.f32 %v3586, %v3589
    %vm3591 = vweird.f32 %v3569
    %vm3592 = vweird.f32 %v3586
    %vm3593 = vmor %vm3591, %vm3592
    %v3594 = vsel %vm3593, %v3586, %v3590
    %v3595 = vand.u32 2147483647, %v3569
    %vm3596 = vcmp.eq.f32.partialorder %v3595, 8.507059e+37
    %v3597 = vand.u32 %v3569, 2147483648
    %v3598 = vor.u32 1.1754944e-38, %v3597
    %v3599 = vsel %vm3596, %v3598, %v3594
    %v3600 = vmul.f32 1.0, %v3599
    %v3601 = vrcp.pop %v3570
    %v3602 = vmul.f32 %v3570, %v3601
    %v3603 = vsub.f32 1.0, %v3602
    %v3604 = vmul.f32 %v3601, %v3603
    %v3605 = vadd.f32 %v3601, %v3604
    %vm3606 = vweird.f32 %v3570
    %vm3607 = vweird.f32 %v3601
    %vm3608 = vmor %vm3606, %vm3607
    %v3609 = vsel %vm3608, %v3601, %v3605
    %v3610 = vand.u32 2147483647, %v3570
    %vm3611 = vcmp.eq.f32.partialorder %v3610, 8.507059e+37
    %v3612 = vand.u32 %v3570, 2147483648
    %v3613 = vor.u32 1.1754944e-38, %v3612
    %v3614 = vsel %vm3611, %v3613, %v3609
    %v3615 = vmul.f32 1.0, %v3614
    %v3616 = vtanh.pop %v3556
    %v3617 = vmul.f32 %v3600, %v3327
    %v3618 = vmul.f32 %v3585, %v3616
    %v3619 = vadd.f32 %v3617, %v3618
    %v3620 = vtanh.pop %v3619
    %v3621 = vmul.f32 %v3615, %v3620
    %v3622 = vld [vmem:[#allocation3 + $0x120] sm:$0xff]
    %v3623 = vld [vmem:[#allocation3 + $0x128] sm:$0xff]
    %v3624 = vld [vmem:[#allocation3 + $0x130] sm:$0xff]
    %v3625 = vld [vmem:[#allocation3 + $0x138] sm:$0xff]
    %v3626 = vpack.c.bf16 %v3453, %v3453
    %3627 = vmatpush.bf16.msra.mxu0 %v802
    %3628 = vmatpush.bf16.msra.mxu0 %v798
    %3629 = vmatpush.bf16.msra.mxu0 %v794
    %3630 = vmatpush.bf16.msra.mxu0 %v790
    %3631 = vmatpush.bf16.msra.mxu0 %v786
    %3632 = vmatpush.bf16.msra.mxu0 %v782
    %3633 = vmatpush.bf16.msra.mxu0 %v778
    %3634 = vmatpush.bf16.msra.mxu0 %v774
    %3635 = vmatmul.bf16.gmra.mxu0 %v3626
    %v3636 = vpop.f32.mrf.mxu0
    %v3637 = vadd.f32 0.0, %v3636
    %v3638 = vpop.f32.mrf.mxu0
    %3639 = vdwg.mxu0
    %3640 = vmatpush.bf16.msra.mxu0 %v803
    %3641 = vmatpush.bf16.msra.mxu0 %v799
    %3642 = vmatpush.bf16.msra.mxu0 %v795
    %3643 = vmatpush.bf16.msra.mxu0 %v791
    %3644 = vmatpush.bf16.msra.mxu0 %v787
    %3645 = vmatpush.bf16.msra.mxu0 %v783
    %3646 = vmatpush.bf16.msra.mxu0 %v779
    %3647 = vmatpush.bf16.msra.mxu0 %v775
    %3648 = vmatmul.bf16.gmra.mxu0 %v3626
    %v3649 = vpop.f32.mrf.mxu0
    %v3650 = vadd.f32 0.0, %v3649
    %v3651 = vpop.f32.mrf.mxu0
    %3652 = vdwg.mxu0
    %3653 = vmatpush.bf16.msra.mxu0 %v804
    %3654 = vmatpush.bf16.msra.mxu0 %v800
    %3655 = vmatpush.bf16.msra.mxu0 %v796
    %3656 = vmatpush.bf16.msra.mxu0 %v792
    %3657 = vmatpush.bf16.msra.mxu0 %v788
    %3658 = vmatpush.bf16.msra.mxu0 %v784
    %3659 = vmatpush.bf16.msra.mxu0 %v780
    %3660 = vmatpush.bf16.msra.mxu0 %v776
    %3661 = vmatmul.bf16.gmra.mxu0 %v3626
    %v3662 = vpop.f32.mrf.mxu0
    %v3663 = vadd.f32 0.0, %v3662
    %v3664 = vpop.f32.mrf.mxu0
    %3665 = vdwg.mxu0
    %3666 = vmatpush.bf16.msra.mxu0 %v805
    %3667 = vmatpush.bf16.msra.mxu0 %v801
    %3668 = vmatpush.bf16.msra.mxu0 %v797
    %3669 = vmatpush.bf16.msra.mxu0 %v793
    %3670 = vmatpush.bf16.msra.mxu0 %v789
    %3671 = vmatpush.bf16.msra.mxu0 %v785
    %3672 = vmatpush.bf16.msra.mxu0 %v781
    %3673 = vmatpush.bf16.msra.mxu0 %v777
    %3674 = vmatmul.bf16.gmra.mxu0 %v3626
    %v3675 = vpop.f32.mrf.mxu0
    %v3676 = vadd.f32 0.0, %v3675
    %v3677 = vpop.f32.mrf.mxu0
    %3678 = vdwg.mxu0
    %v3679 = vadd.f32 %v3622, %v3637
    %v3680 = vadd.f32 %v3623, %v3650
    %v3681 = vadd.f32 %v3624, %v3663
    %v3682 = vadd.f32 %v3625, %v3676
    %v3683 = vxor.u32 %v3679, 2147483648
    %v3684 = vxor.u32 %v3680, 2147483648
    %v3685 = vxor.u32 %v3681, 2147483648
    %v3686 = vmul.f32 %v3683, 1.442695
    %v3687 = vpow.pop %v3686
    %v3688 = vmul.f32 %v3684, 1.442695
    %v3689 = vpow.pop %v3688
    %v3690 = vmul.f32 %v3685, 1.442695
    %v3691 = vpow.pop %v3690
    %v3692 = vadd.f32 %v3687, 1.0
    %v3693 = vadd.f32 %v3689, 1.0
    %v3694 = vadd.f32 %v3691, 1.0
    %v3695 = vrcp.pop %v3692
    %v3696 = vmul.f32 %v3692, %v3695
    %v3697 = vsub.f32 1.0, %v3696
    %v3698 = vmul.f32 %v3695, %v3697
    %v3699 = vadd.f32 %v3695, %v3698
    %vm3700 = vweird.f32 %v3692
    %vm3701 = vweird.f32 %v3695
    %vm3702 = vmor %vm3700, %vm3701
    %v3703 = vsel %vm3702, %v3695, %v3699
    %v3704 = vand.u32 2147483647, %v3692
    %vm3705 = vcmp.eq.f32.partialorder %v3704, 8.507059e+37
    %v3706 = vand.u32 %v3692, 2147483648
    %v3707 = vor.u32 1.1754944e-38, %v3706
    %v3708 = vsel %vm3705, %v3707, %v3703
    %v3709 = vmul.f32 1.0, %v3708
    %v3710 = vrcp.pop %v3693
    %v3711 = vmul.f32 %v3693, %v3710
    %v3712 = vsub.f32 1.0, %v3711
    %v3713 = vmul.f32 %v3710, %v3712
    %v3714 = vadd.f32 %v3710, %v3713
    %vm3715 = vweird.f32 %v3693
    %vm3716 = vweird.f32 %v3710
    %vm3717 = vmor %vm3715, %vm3716
    %v3718 = vsel %vm3717, %v3710, %v3714
    %v3719 = vand.u32 2147483647, %v3693
    %vm3720 = vcmp.eq.f32.partialorder %v3719, 8.507059e+37
    %v3721 = vand.u32 %v3693, 2147483648
    %v3722 = vor.u32 1.1754944e-38, %v3721
    %v3723 = vsel %vm3720, %v3722, %v3718
    %v3724 = vmul.f32 1.0, %v3723
    %v3725 = vrcp.pop %v3694
    %v3726 = vmul.f32 %v3694, %v3725
    %v3727 = vsub.f32 1.0, %v3726
    %v3728 = vmul.f32 %v3725, %v3727
    %v3729 = vadd.f32 %v3725, %v3728
    %vm3730 = vweird.f32 %v3694
    %vm3731 = vweird.f32 %v3725
    %vm3732 = vmor %vm3730, %vm3731
    %v3733 = vsel %vm3732, %v3725, %v3729
    %v3734 = vand.u32 2147483647, %v3694
    %vm3735 = vcmp.eq.f32.partialorder %v3734, 8.507059e+37
    %v3736 = vand.u32 %v3694, 2147483648
    %v3737 = vor.u32 1.1754944e-38, %v3736
    %v3738 = vsel %vm3735, %v3737, %v3733
    %v3739 = vmul.f32 1.0, %v3738
    %v3740 = vtanh.pop %v3682
    %v3741 = vmul.f32 %v3724, %v3451
    %v3742 = vmul.f32 %v3709, %v3740
    %v3743 = vadd.f32 %v3741, %v3742
    %v3744 = vtanh.pop %v3743
    %v3745 = vmul.f32 %v3739, %v3744
    %v3746 = vpack.c.bf16 %v3621, %v3621
    %3747 = vmatpush.bf16.msra.mxu0 %v1311
    %3748 = vmatpush.bf16.msra.mxu0 %v1307
    %3749 = vmatpush.bf16.msra.mxu0 %v1303
    %3750 = vmatpush.bf16.msra.mxu0 %v1299
    %3751 = vmatpush.bf16.msra.mxu0 %v1295
    %3752 = vmatpush.bf16.msra.mxu0 %v1291
    %3753 = vmatpush.bf16.msra.mxu0 %v1287
    %3754 = vmatpush.bf16.msra.mxu0 %v1283
    %3755 = vmatmul.bf16.gmra.mxu0 %v3626
    %v3756 = vpop.f32.mrf.mxu0
    %v3757 = vadd.f32 %v1083, %v3756
    %v3758 = vpop.f32.mrf.mxu0
    %3759 = vdwg.mxu0
    %3760 = vmatpush.bf16.msra.mxu0 %v1343
    %3761 = vmatpush.bf16.msra.mxu0 %v1339
    %3762 = vmatpush.bf16.msra.mxu0 %v1335
    %3763 = vmatpush.bf16.msra.mxu0 %v1331
    %3764 = vmatpush.bf16.msra.mxu0 %v1327
    %3765 = vmatpush.bf16.msra.mxu0 %v1323
    %3766 = vmatpush.bf16.msra.mxu0 %v1319
    %3767 = vmatpush.bf16.msra.mxu0 %v1315
    %3768 = vmatmul.bf16.gmra.mxu0 %v3746
    %v3769 = vpop.f32.mrf.mxu0
    %v3770 = vadd.f32 %v3757, %v3769
    %v3771 = vpop.f32.mrf.mxu0
    %3772 = vdwg.mxu0
    %3773 = vmatpush.bf16.msra.mxu0 %v1312
    %3774 = vmatpush.bf16.msra.mxu0 %v1308
    %3775 = vmatpush.bf16.msra.mxu0 %v1304
    %3776 = vmatpush.bf16.msra.mxu0 %v1300
    %3777 = vmatpush.bf16.msra.mxu0 %v1296
    %3778 = vmatpush.bf16.msra.mxu0 %v1292
    %3779 = vmatpush.bf16.msra.mxu0 %v1288
    %3780 = vmatpush.bf16.msra.mxu0 %v1284
    %3781 = vmatmul.bf16.gmra.mxu0 %v3626
    %v3782 = vpop.f32.mrf.mxu0
    %v3783 = vadd.f32 %v1084, %v3782
    %v3784 = vpop.f32.mrf.mxu0
    %3785 = vdwg.mxu0
    %3786 = vmatpush.bf16.msra.mxu0 %v1344
    %3787 = vmatpush.bf16.msra.mxu0 %v1340
    %3788 = vmatpush.bf16.msra.mxu0 %v1336
    %3789 = vmatpush.bf16.msra.mxu0 %v1332
    %3790 = vmatpush.bf16.msra.mxu0 %v1328
    %3791 = vmatpush.bf16.msra.mxu0 %v1324
    %3792 = vmatpush.bf16.msra.mxu0 %v1320
    %3793 = vmatpush.bf16.msra.mxu0 %v1316
    %3794 = vmatmul.bf16.gmra.mxu0 %v3746
    %v3795 = vpop.f32.mrf.mxu0
    %v3796 = vadd.f32 %v3783, %v3795
    %v3797 = vpop.f32.mrf.mxu0
    %3798 = vdwg.mxu0
    %3799 = vmatpush.bf16.msra.mxu0 %v1313
    %3800 = vmatpush.bf16.msra.mxu0 %v1309
    %3801 = vmatpush.bf16.msra.mxu0 %v1305
    %3802 = vmatpush.bf16.msra.mxu0 %v1301
    %3803 = vmatpush.bf16.msra.mxu0 %v1297
    %3804 = vmatpush.bf16.msra.mxu0 %v1293
    %3805 = vmatpush.bf16.msra.mxu0 %v1289
    %3806 = vmatpush.bf16.msra.mxu0 %v1285
    %3807 = vmatmul.bf16.gmra.mxu0 %v3626
    %v3808 = vpop.f32.mrf.mxu0
    %v3809 = vadd.f32 %v1085, %v3808
    %v3810 = vpop.f32.mrf.mxu0
    %3811 = vdwg.mxu0
    %3812 = vmatpush.bf16.msra.mxu0 %v1345
    %3813 = vmatpush.bf16.msra.mxu0 %v1341
    %3814 = vmatpush.bf16.msra.mxu0 %v1337
    %3815 = vmatpush.bf16.msra.mxu0 %v1333
    %3816 = vmatpush.bf16.msra.mxu0 %v1329
    %3817 = vmatpush.bf16.msra.mxu0 %v1325
    %3818 = vmatpush.bf16.msra.mxu0 %v1321
    %3819 = vmatpush.bf16.msra.mxu0 %v1317
    %3820 = vmatmul.bf16.gmra.mxu0 %v3746
    %v3821 = vpop.f32.mrf.mxu0
    %v3822 = vadd.f32 %v3809, %v3821
    %v3823 = vpop.f32.mrf.mxu0
    %3824 = vdwg.mxu0
    %3825 = vmatpush.bf16.msra.mxu0 %v1314
    %3826 = vmatpush.bf16.msra.mxu0 %v1310
    %3827 = vmatpush.bf16.msra.mxu0 %v1306
    %3828 = vmatpush.bf16.msra.mxu0 %v1302
    %3829 = vmatpush.bf16.msra.mxu0 %v1298
    %3830 = vmatpush.bf16.msra.mxu0 %v1294
    %3831 = vmatpush.bf16.msra.mxu0 %v1290
    %3832 = vmatpush.bf16.msra.mxu0 %v1286
    %3833 = vmatmul.bf16.gmra.mxu0 %v3626
    %v3834 = vpop.f32.mrf.mxu0
    %v3835 = vadd.f32 %v1086, %v3834
    %v3836 = vpop.f32.mrf.mxu0
    %3837 = vdwg.mxu0
    %3838 = vmatpush.bf16.msra.mxu0 %v1346
    %3839 = vmatpush.bf16.msra.mxu0 %v1342
    %3840 = vmatpush.bf16.msra.mxu0 %v1338
    %3841 = vmatpush.bf16.msra.mxu0 %v1334
    %3842 = vmatpush.bf16.msra.mxu0 %v1330
    %3843 = vmatpush.bf16.msra.mxu0 %v1326
    %3844 = vmatpush.bf16.msra.mxu0 %v1322
    %3845 = vmatpush.bf16.msra.mxu0 %v1318
    %3846 = vmatmul.bf16.gmra.mxu0 %v3746
    %v3847 = vpop.f32.mrf.mxu0
    %v3848 = vadd.f32 %v3835, %v3847
    %v3849 = vpop.f32.mrf.mxu0
    %3850 = vdwg.mxu0
    %v3851 = vxor.u32 %v3770, 2147483648
    %v3852 = vxor.u32 %v3796, 2147483648
    %v3853 = vxor.u32 %v3822, 2147483648
    %v3854 = vmul.f32 %v3851, 1.442695
    %v3855 = vpow.pop %v3854
    %v3856 = vmul.f32 %v3852, 1.442695
    %v3857 = vpow.pop %v3856
    %v3858 = vmul.f32 %v3853, 1.442695
    %v3859 = vpow.pop %v3858
    %v3860 = vadd.f32 %v3855, 1.0
    %v3861 = vadd.f32 %v3857, 1.0
    %v3862 = vadd.f32 %v3859, 1.0
    %v3863 = vrcp.pop %v3860
    %v3864 = vmul.f32 %v3860, %v3863
    %v3865 = vsub.f32 1.0, %v3864
    %v3866 = vmul.f32 %v3863, %v3865
    %v3867 = vadd.f32 %v3863, %v3866
    %vm3868 = vweird.f32 %v3860
    %vm3869 = vweird.f32 %v3863
    %vm3870 = vmor %vm3868, %vm3869
    %v3871 = vsel %vm3870, %v3863, %v3867
    %v3872 = vand.u32 2147483647, %v3860
    %vm3873 = vcmp.eq.f32.partialorder %v3872, 8.507059e+37
    %v3874 = vand.u32 %v3860, 2147483648
    %v3875 = vor.u32 1.1754944e-38, %v3874
    %v3876 = vsel %vm3873, %v3875, %v3871
    %v3877 = vmul.f32 1.0, %v3876
    %v3878 = vrcp.pop %v3861
    %v3879 = vmul.f32 %v3861, %v3878
    %v3880 = vsub.f32 1.0, %v3879
    %v3881 = vmul.f32 %v3878, %v3880
    %v3882 = vadd.f32 %v3878, %v3881
    %vm3883 = vweird.f32 %v3861
    %vm3884 = vweird.f32 %v3878
    %vm3885 = vmor %vm3883, %vm3884
    %v3886 = vsel %vm3885, %v3878, %v3882
    %v3887 = vand.u32 2147483647, %v3861
    %vm3888 = vcmp.eq.f32.partialorder %v3887, 8.507059e+37
    %v3889 = vand.u32 %v3861, 2147483648
    %v3890 = vor.u32 1.1754944e-38, %v3889
    %v3891 = vsel %vm3888, %v3890, %v3886
    %v3892 = vmul.f32 1.0, %v3891
    %v3893 = vrcp.pop %v3862
    %v3894 = vmul.f32 %v3862, %v3893
    %v3895 = vsub.f32 1.0, %v3894
    %v3896 = vmul.f32 %v3893, %v3895
    %v3897 = vadd.f32 %v3893, %v3896
    %vm3898 = vweird.f32 %v3862
    %vm3899 = vweird.f32 %v3893
    %vm3900 = vmor %vm3898, %vm3899
    %v3901 = vsel %vm3900, %v3893, %v3897
    %v3902 = vand.u32 2147483647, %v3862
    %vm3903 = vcmp.eq.f32.partialorder %v3902, 8.507059e+37
    %v3904 = vand.u32 %v3862, 2147483648
    %v3905 = vor.u32 1.1754944e-38, %v3904
    %v3906 = vsel %vm3903, %v3905, %v3901
    %v3907 = vmul.f32 1.0, %v3906
    %v3908 = vtanh.pop %v3848
    %v3909 = vmul.f32 %v3892, %v3619
    %v3910 = vmul.f32 %v3877, %v3908
    %v3911 = vadd.f32 %v3909, %v3910
    %v3912 = vtanh.pop %v3911
    %v3913 = vmul.f32 %v3907, %v3912
    %v3914 = vld [vmem:[#allocation3 + $0x140] sm:$0xff]
    %v3915 = vld [vmem:[#allocation3 + $0x148] sm:$0xff]
    %v3916 = vld [vmem:[#allocation3 + $0x150] sm:$0xff]
    %v3917 = vld [vmem:[#allocation3 + $0x158] sm:$0xff]
    %v3918 = vpack.c.bf16 %v3745, %v3745
    %3919 = vmatpush.bf16.msra.mxu0 %v802
    %3920 = vmatpush.bf16.msra.mxu0 %v798
    %3921 = vmatpush.bf16.msra.mxu0 %v794
    %3922 = vmatpush.bf16.msra.mxu0 %v790
    %3923 = vmatpush.bf16.msra.mxu0 %v786
    %3924 = vmatpush.bf16.msra.mxu0 %v782
    %3925 = vmatpush.bf16.msra.mxu0 %v778
    %3926 = vmatpush.bf16.msra.mxu0 %v774
    %3927 = vmatmul.bf16.gmra.mxu0 %v3918
    %v3928 = vpop.f32.mrf.mxu0
    %v3929 = vadd.f32 0.0, %v3928
    %v3930 = vpop.f32.mrf.mxu0
    %3931 = vdwg.mxu0
    %3932 = vmatpush.bf16.msra.mxu0 %v803
    %3933 = vmatpush.bf16.msra.mxu0 %v799
    %3934 = vmatpush.bf16.msra.mxu0 %v795
    %3935 = vmatpush.bf16.msra.mxu0 %v791
    %3936 = vmatpush.bf16.msra.mxu0 %v787
    %3937 = vmatpush.bf16.msra.mxu0 %v783
    %3938 = vmatpush.bf16.msra.mxu0 %v779
    %3939 = vmatpush.bf16.msra.mxu0 %v775
    %3940 = vmatmul.bf16.gmra.mxu0 %v3918
    %v3941 = vpop.f32.mrf.mxu0
    %v3942 = vadd.f32 0.0, %v3941
    %v3943 = vpop.f32.mrf.mxu0
    %3944 = vdwg.mxu0
    %3945 = vmatpush.bf16.msra.mxu0 %v804
    %3946 = vmatpush.bf16.msra.mxu0 %v800
    %3947 = vmatpush.bf16.msra.mxu0 %v796
    %3948 = vmatpush.bf16.msra.mxu0 %v792
    %3949 = vmatpush.bf16.msra.mxu0 %v788
    %3950 = vmatpush.bf16.msra.mxu0 %v784
    %3951 = vmatpush.bf16.msra.mxu0 %v780
    %3952 = vmatpush.bf16.msra.mxu0 %v776
    %3953 = vmatmul.bf16.gmra.mxu0 %v3918
    %v3954 = vpop.f32.mrf.mxu0
    %v3955 = vadd.f32 0.0, %v3954
    %v3956 = vpop.f32.mrf.mxu0
    %3957 = vdwg.mxu0
    %3958 = vmatpush.bf16.msra.mxu0 %v805
    %3959 = vmatpush.bf16.msra.mxu0 %v801
    %3960 = vmatpush.bf16.msra.mxu0 %v797
    %3961 = vmatpush.bf16.msra.mxu0 %v793
    %3962 = vmatpush.bf16.msra.mxu0 %v789
    %3963 = vmatpush.bf16.msra.mxu0 %v785
    %3964 = vmatpush.bf16.msra.mxu0 %v781
    %3965 = vmatpush.bf16.msra.mxu0 %v777
    %3966 = vmatmul.bf16.gmra.mxu0 %v3918
    %v3967 = vpop.f32.mrf.mxu0
    %v3968 = vadd.f32 0.0, %v3967
    %v3969 = vpop.f32.mrf.mxu0
    %3970 = vdwg.mxu0
    %v3971 = vadd.f32 %v3914, %v3929
    %v3972 = vadd.f32 %v3915, %v3942
    %v3973 = vadd.f32 %v3916, %v3955
    %v3974 = vadd.f32 %v3917, %v3968
    %v3975 = vxor.u32 %v3971, 2147483648
    %v3976 = vxor.u32 %v3972, 2147483648
    %v3977 = vxor.u32 %v3973, 2147483648
    %v3978 = vmul.f32 %v3975, 1.442695
    %v3979 = vpow.pop %v3978
    %v3980 = vmul.f32 %v3976, 1.442695
    %v3981 = vpow.pop %v3980
    %v3982 = vmul.f32 %v3977, 1.442695
    %v3983 = vpow.pop %v3982
    %v3984 = vadd.f32 %v3979, 1.0
    %v3985 = vadd.f32 %v3981, 1.0
    %v3986 = vadd.f32 %v3983, 1.0
    %v3987 = vrcp.pop %v3984
    %v3988 = vmul.f32 %v3984, %v3987
    %v3989 = vsub.f32 1.0, %v3988
    %v3990 = vmul.f32 %v3987, %v3989
    %v3991 = vadd.f32 %v3987, %v3990
    %vm3992 = vweird.f32 %v3984
    %vm3993 = vweird.f32 %v3987
    %vm3994 = vmor %vm3992, %vm3993
    %v3995 = vsel %vm3994, %v3987, %v3991
    %v3996 = vand.u32 2147483647, %v3984
    %vm3997 = vcmp.eq.f32.partialorder %v3996, 8.507059e+37
    %v3998 = vand.u32 %v3984, 2147483648
    %v3999 = vor.u32 1.1754944e-38, %v3998
    %v4000 = vsel %vm3997, %v3999, %v3995
    %v4001 = vmul.f32 1.0, %v4000
    %v4002 = vrcp.pop %v3985
    %v4003 = vmul.f32 %v3985, %v4002
    %v4004 = vsub.f32 1.0, %v4003
    %v4005 = vmul.f32 %v4002, %v4004
    %v4006 = vadd.f32 %v4002, %v4005
    %vm4007 = vweird.f32 %v3985
    %vm4008 = vweird.f32 %v4002
    %vm4009 = vmor %vm4007, %vm4008
    %v4010 = vsel %vm4009, %v4002, %v4006
    %v4011 = vand.u32 2147483647, %v3985
    %vm4012 = vcmp.eq.f32.partialorder %v4011, 8.507059e+37
    %v4013 = vand.u32 %v3985, 2147483648
    %v4014 = vor.u32 1.1754944e-38, %v4013
    %v4015 = vsel %vm4012, %v4014, %v4010
    %v4016 = vmul.f32 1.0, %v4015
    %v4017 = vrcp.pop %v3986
    %v4018 = vmul.f32 %v3986, %v4017
    %v4019 = vsub.f32 1.0, %v4018
    %v4020 = vmul.f32 %v4017, %v4019
    %v4021 = vadd.f32 %v4017, %v4020
    %vm4022 = vweird.f32 %v3986
    %vm4023 = vweird.f32 %v4017
    %vm4024 = vmor %vm4022, %vm4023
    %v4025 = vsel %vm4024, %v4017, %v4021
    %v4026 = vand.u32 2147483647, %v3986
    %vm4027 = vcmp.eq.f32.partialorder %v4026, 8.507059e+37
    %v4028 = vand.u32 %v3986, 2147483648
    %v4029 = vor.u32 1.1754944e-38, %v4028
    %v4030 = vsel %vm4027, %v4029, %v4025
    %v4031 = vmul.f32 1.0, %v4030
    %v4032 = vtanh.pop %v3974
    %v4033 = vmul.f32 %v4016, %v3743
    %v4034 = vmul.f32 %v4001, %v4032
    %v4035 = vadd.f32 %v4033, %v4034
    %v4036 = vtanh.pop %v4035
    %v4037 = vmul.f32 %v4031, %v4036
    %v4038 = vpack.c.bf16 %v3913, %v3913
    %4039 = vmatpush.bf16.msra.mxu0 %v1311
    %4040 = vmatpush.bf16.msra.mxu0 %v1307
    %4041 = vmatpush.bf16.msra.mxu0 %v1303
    %4042 = vmatpush.bf16.msra.mxu0 %v1299
    %4043 = vmatpush.bf16.msra.mxu0 %v1295
    %4044 = vmatpush.bf16.msra.mxu0 %v1291
    %4045 = vmatpush.bf16.msra.mxu0 %v1287
    %4046 = vmatpush.bf16.msra.mxu0 %v1283
    %4047 = vmatmul.bf16.gmra.mxu0 %v3918
    %v4048 = vpop.f32.mrf.mxu0
    %v4049 = vadd.f32 %v1083, %v4048
    %v4050 = vpop.f32.mrf.mxu0
    %4051 = vdwg.mxu0
    %4052 = vmatpush.bf16.msra.mxu0 %v1343
    %4053 = vmatpush.bf16.msra.mxu0 %v1339
    %4054 = vmatpush.bf16.msra.mxu0 %v1335
    %4055 = vmatpush.bf16.msra.mxu0 %v1331
    %4056 = vmatpush.bf16.msra.mxu0 %v1327
    %4057 = vmatpush.bf16.msra.mxu0 %v1323
    %4058 = vmatpush.bf16.msra.mxu0 %v1319
    %4059 = vmatpush.bf16.msra.mxu0 %v1315
    %4060 = vmatmul.bf16.gmra.mxu0 %v4038
    %v4061 = vpop.f32.mrf.mxu0
    %v4062 = vadd.f32 %v4049, %v4061
    %v4063 = vpop.f32.mrf.mxu0
    %4064 = vdwg.mxu0
    %4065 = vmatpush.bf16.msra.mxu0 %v1312
    %4066 = vmatpush.bf16.msra.mxu0 %v1308
    %4067 = vmatpush.bf16.msra.mxu0 %v1304
    %4068 = vmatpush.bf16.msra.mxu0 %v1300
    %4069 = vmatpush.bf16.msra.mxu0 %v1296
    %4070 = vmatpush.bf16.msra.mxu0 %v1292
    %4071 = vmatpush.bf16.msra.mxu0 %v1288
    %4072 = vmatpush.bf16.msra.mxu0 %v1284
    %4073 = vmatmul.bf16.gmra.mxu0 %v3918
    %v4074 = vpop.f32.mrf.mxu0
    %v4075 = vadd.f32 %v1084, %v4074
    %v4076 = vpop.f32.mrf.mxu0
    %4077 = vdwg.mxu0
    %4078 = vmatpush.bf16.msra.mxu0 %v1344
    %4079 = vmatpush.bf16.msra.mxu0 %v1340
    %4080 = vmatpush.bf16.msra.mxu0 %v1336
    %4081 = vmatpush.bf16.msra.mxu0 %v1332
    %4082 = vmatpush.bf16.msra.mxu0 %v1328
    %4083 = vmatpush.bf16.msra.mxu0 %v1324
    %4084 = vmatpush.bf16.msra.mxu0 %v1320
    %4085 = vmatpush.bf16.msra.mxu0 %v1316
    %4086 = vmatmul.bf16.gmra.mxu0 %v4038
    %v4087 = vpop.f32.mrf.mxu0
    %v4088 = vadd.f32 %v4075, %v4087
    %v4089 = vpop.f32.mrf.mxu0
    %4090 = vdwg.mxu0
    %4091 = vmatpush.bf16.msra.mxu0 %v1313
    %4092 = vmatpush.bf16.msra.mxu0 %v1309
    %4093 = vmatpush.bf16.msra.mxu0 %v1305
    %4094 = vmatpush.bf16.msra.mxu0 %v1301
    %4095 = vmatpush.bf16.msra.mxu0 %v1297
    %4096 = vmatpush.bf16.msra.mxu0 %v1293
    %4097 = vmatpush.bf16.msra.mxu0 %v1289
    %4098 = vmatpush.bf16.msra.mxu0 %v1285
    %4099 = vmatmul.bf16.gmra.mxu0 %v3918
    %v4100 = vpop.f32.mrf.mxu0
    %v4101 = vadd.f32 %v1085, %v4100
    %v4102 = vpop.f32.mrf.mxu0
    %4103 = vdwg.mxu0
    %4104 = vmatpush.bf16.msra.mxu0 %v1345
    %4105 = vmatpush.bf16.msra.mxu0 %v1341
    %4106 = vmatpush.bf16.msra.mxu0 %v1337
    %4107 = vmatpush.bf16.msra.mxu0 %v1333
    %4108 = vmatpush.bf16.msra.mxu0 %v1329
    %4109 = vmatpush.bf16.msra.mxu0 %v1325
    %4110 = vmatpush.bf16.msra.mxu0 %v1321
    %4111 = vmatpush.bf16.msra.mxu0 %v1317
    %4112 = vmatmul.bf16.gmra.mxu0 %v4038
    %v4113 = vpop.f32.mrf.mxu0
    %v4114 = vadd.f32 %v4101, %v4113
    %v4115 = vpop.f32.mrf.mxu0
    %4116 = vdwg.mxu0
    %4117 = vmatpush.bf16.msra.mxu0 %v1314
    %4118 = vmatpush.bf16.msra.mxu0 %v1310
    %4119 = vmatpush.bf16.msra.mxu0 %v1306
    %4120 = vmatpush.bf16.msra.mxu0 %v1302
    %4121 = vmatpush.bf16.msra.mxu0 %v1298
    %4122 = vmatpush.bf16.msra.mxu0 %v1294
    %4123 = vmatpush.bf16.msra.mxu0 %v1290
    %4124 = vmatpush.bf16.msra.mxu0 %v1286
    %4125 = vmatmul.bf16.gmra.mxu0 %v3918
    %v4126 = vpop.f32.mrf.mxu0
    %v4127 = vadd.f32 %v1086, %v4126
    %v4128 = vpop.f32.mrf.mxu0
    %4129 = vdwg.mxu0
    %4130 = vmatpush.bf16.msra.mxu0 %v1346
    %4131 = vmatpush.bf16.msra.mxu0 %v1342
    %4132 = vmatpush.bf16.msra.mxu0 %v1338
    %4133 = vmatpush.bf16.msra.mxu0 %v1334
    %4134 = vmatpush.bf16.msra.mxu0 %v1330
    %4135 = vmatpush.bf16.msra.mxu0 %v1326
    %4136 = vmatpush.bf16.msra.mxu0 %v1322
    %4137 = vmatpush.bf16.msra.mxu0 %v1318
    %4138 = vmatmul.bf16.gmra.mxu0 %v4038
    %v4139 = vpop.f32.mrf.mxu0
    %v4140 = vadd.f32 %v4127, %v4139
    %v4141 = vpop.f32.mrf.mxu0
    %4142 = vdwg.mxu0
    %v4143 = vxor.u32 %v4062, 2147483648
    %v4144 = vxor.u32 %v4088, 2147483648
    %v4145 = vxor.u32 %v4114, 2147483648
    %v4146 = vmul.f32 %v4143, 1.442695
    %v4147 = vpow.pop %v4146
    %v4148 = vmul.f32 %v4144, 1.442695
    %v4149 = vpow.pop %v4148
    %v4150 = vmul.f32 %v4145, 1.442695
    %v4151 = vpow.pop %v4150
    %v4152 = vadd.f32 %v4147, 1.0
    %v4153 = vadd.f32 %v4149, 1.0
    %v4154 = vadd.f32 %v4151, 1.0
    %v4155 = vrcp.pop %v4152
    %v4156 = vmul.f32 %v4152, %v4155
    %v4157 = vsub.f32 1.0, %v4156
    %v4158 = vmul.f32 %v4155, %v4157
    %v4159 = vadd.f32 %v4155, %v4158
    %vm4160 = vweird.f32 %v4152
    %vm4161 = vweird.f32 %v4155
    %vm4162 = vmor %vm4160, %vm4161
    %v4163 = vsel %vm4162, %v4155, %v4159
    %v4164 = vand.u32 2147483647, %v4152
    %vm4165 = vcmp.eq.f32.partialorder %v4164, 8.507059e+37
    %v4166 = vand.u32 %v4152, 2147483648
    %v4167 = vor.u32 1.1754944e-38, %v4166
    %v4168 = vsel %vm4165, %v4167, %v4163
    %v4169 = vmul.f32 1.0, %v4168
    %v4170 = vrcp.pop %v4153
    %v4171 = vmul.f32 %v4153, %v4170
    %v4172 = vsub.f32 1.0, %v4171
    %v4173 = vmul.f32 %v4170, %v4172
    %v4174 = vadd.f32 %v4170, %v4173
    %vm4175 = vweird.f32 %v4153
    %vm4176 = vweird.f32 %v4170
    %vm4177 = vmor %vm4175, %vm4176
    %v4178 = vsel %vm4177, %v4170, %v4174
    %v4179 = vand.u32 2147483647, %v4153
    %vm4180 = vcmp.eq.f32.partialorder %v4179, 8.507059e+37
    %v4181 = vand.u32 %v4153, 2147483648
    %v4182 = vor.u32 1.1754944e-38, %v4181
    %v4183 = vsel %vm4180, %v4182, %v4178
    %v4184 = vmul.f32 1.0, %v4183
    %v4185 = vrcp.pop %v4154
    %v4186 = vmul.f32 %v4154, %v4185
    %v4187 = vsub.f32 1.0, %v4186
    %v4188 = vmul.f32 %v4185, %v4187
    %v4189 = vadd.f32 %v4185, %v4188
    %vm4190 = vweird.f32 %v4154
    %vm4191 = vweird.f32 %v4185
    %vm4192 = vmor %vm4190, %vm4191
    %v4193 = vsel %vm4192, %v4185, %v4189
    %v4194 = vand.u32 2147483647, %v4154
    %vm4195 = vcmp.eq.f32.partialorder %v4194, 8.507059e+37
    %v4196 = vand.u32 %v4154, 2147483648
    %v4197 = vor.u32 1.1754944e-38, %v4196
    %v4198 = vsel %vm4195, %v4197, %v4193
    %v4199 = vmul.f32 1.0, %v4198
    %v4200 = vtanh.pop %v4140
    %v4201 = vmul.f32 %v4184, %v3911
    %v4202 = vmul.f32 %v4169, %v4200
    %v4203 = vadd.f32 %v4201, %v4202
    %v4204 = vtanh.pop %v4203
    %v4205 = vmul.f32 %v4199, %v4204
    %v4206 = vld [vmem:[#allocation3 + $0x160] sm:$0xff]
    %v4207 = vld [vmem:[#allocation3 + $0x168] sm:$0xff]
    %v4208 = vld [vmem:[#allocation3 + $0x170] sm:$0xff]
    %v4209 = vld [vmem:[#allocation3 + $0x178] sm:$0xff]
    %v4210 = vpack.c.bf16 %v4037, %v4037
    %4211 = vmatpush.bf16.msra.mxu0 %v802
    %4212 = vmatpush.bf16.msra.mxu0 %v798
    %4213 = vmatpush.bf16.msra.mxu0 %v794
    %4214 = vmatpush.bf16.msra.mxu0 %v790
    %4215 = vmatpush.bf16.msra.mxu0 %v786
    %4216 = vmatpush.bf16.msra.mxu0 %v782
    %4217 = vmatpush.bf16.msra.mxu0 %v778
    %4218 = vmatpush.bf16.msra.mxu0 %v774
    %4219 = vmatmul.bf16.gmra.mxu0 %v4210
    %v4220 = vpop.f32.mrf.mxu0
    %v4221 = vadd.f32 0.0, %v4220
    %v4222 = vpop.f32.mrf.mxu0
    %4223 = vdwg.mxu0
    %4224 = vmatpush.bf16.msra.mxu0 %v803
    %4225 = vmatpush.bf16.msra.mxu0 %v799
    %4226 = vmatpush.bf16.msra.mxu0 %v795
    %4227 = vmatpush.bf16.msra.mxu0 %v791
    %4228 = vmatpush.bf16.msra.mxu0 %v787
    %4229 = vmatpush.bf16.msra.mxu0 %v783
    %4230 = vmatpush.bf16.msra.mxu0 %v779
    %4231 = vmatpush.bf16.msra.mxu0 %v775
    %4232 = vmatmul.bf16.gmra.mxu0 %v4210
    %v4233 = vpop.f32.mrf.mxu0
    %v4234 = vadd.f32 0.0, %v4233
    %v4235 = vpop.f32.mrf.mxu0
    %4236 = vdwg.mxu0
    %4237 = vmatpush.bf16.msra.mxu0 %v804
    %4238 = vmatpush.bf16.msra.mxu0 %v800
    %4239 = vmatpush.bf16.msra.mxu0 %v796
    %4240 = vmatpush.bf16.msra.mxu0 %v792
    %4241 = vmatpush.bf16.msra.mxu0 %v788
    %4242 = vmatpush.bf16.msra.mxu0 %v784
    %4243 = vmatpush.bf16.msra.mxu0 %v780
    %4244 = vmatpush.bf16.msra.mxu0 %v776
    %4245 = vmatmul.bf16.gmra.mxu0 %v4210
    %v4246 = vpop.f32.mrf.mxu0
    %v4247 = vadd.f32 0.0, %v4246
    %v4248 = vpop.f32.mrf.mxu0
    %4249 = vdwg.mxu0
    %4250 = vmatpush.bf16.msra.mxu0 %v805
    %4251 = vmatpush.bf16.msra.mxu0 %v801
    %4252 = vmatpush.bf16.msra.mxu0 %v797
    %4253 = vmatpush.bf16.msra.mxu0 %v793
    %4254 = vmatpush.bf16.msra.mxu0 %v789
    %4255 = vmatpush.bf16.msra.mxu0 %v785
    %4256 = vmatpush.bf16.msra.mxu0 %v781
    %4257 = vmatpush.bf16.msra.mxu0 %v777
    %4258 = vmatmul.bf16.gmra.mxu0 %v4210
    %v4259 = vpop.f32.mrf.mxu0
    %v4260 = vadd.f32 0.0, %v4259
    %v4261 = vpop.f32.mrf.mxu0
    %4262 = vdwg.mxu0
    %v4263 = vadd.f32 %v4206, %v4221
    %v4264 = vadd.f32 %v4207, %v4234
    %v4265 = vadd.f32 %v4208, %v4247
    %v4266 = vadd.f32 %v4209, %v4260
    %v4267 = vxor.u32 %v4263, 2147483648
    %v4268 = vxor.u32 %v4264, 2147483648
    %v4269 = vxor.u32 %v4265, 2147483648
    %v4270 = vmul.f32 %v4267, 1.442695
    %v4271 = vpow.pop %v4270
    %v4272 = vmul.f32 %v4268, 1.442695
    %v4273 = vpow.pop %v4272
    %v4274 = vmul.f32 %v4269, 1.442695
    %v4275 = vpow.pop %v4274
    %v4276 = vadd.f32 %v4271, 1.0
    %v4277 = vadd.f32 %v4273, 1.0
    %v4278 = vadd.f32 %v4275, 1.0
    %v4279 = vrcp.pop %v4276
    %v4280 = vmul.f32 %v4276, %v4279
    %v4281 = vsub.f32 1.0, %v4280
    %v4282 = vmul.f32 %v4279, %v4281
    %v4283 = vadd.f32 %v4279, %v4282
    %vm4284 = vweird.f32 %v4276
    %vm4285 = vweird.f32 %v4279
    %vm4286 = vmor %vm4284, %vm4285
    %v4287 = vsel %vm4286, %v4279, %v4283
    %v4288 = vand.u32 2147483647, %v4276
    %vm4289 = vcmp.eq.f32.partialorder %v4288, 8.507059e+37
    %v4290 = vand.u32 %v4276, 2147483648
    %v4291 = vor.u32 1.1754944e-38, %v4290
    %v4292 = vsel %vm4289, %v4291, %v4287
    %v4293 = vmul.f32 1.0, %v4292
    %v4294 = vrcp.pop %v4277
    %v4295 = vmul.f32 %v4277, %v4294
    %v4296 = vsub.f32 1.0, %v4295
    %v4297 = vmul.f32 %v4294, %v4296
    %v4298 = vadd.f32 %v4294, %v4297
    %vm4299 = vweird.f32 %v4277
    %vm4300 = vweird.f32 %v4294
    %vm4301 = vmor %vm4299, %vm4300
    %v4302 = vsel %vm4301, %v4294, %v4298
    %v4303 = vand.u32 2147483647, %v4277
    %vm4304 = vcmp.eq.f32.partialorder %v4303, 8.507059e+37
    %v4305 = vand.u32 %v4277, 2147483648
    %v4306 = vor.u32 1.1754944e-38, %v4305
    %v4307 = vsel %vm4304, %v4306, %v4302
    %v4308 = vmul.f32 1.0, %v4307
    %v4309 = vrcp.pop %v4278
    %v4310 = vmul.f32 %v4278, %v4309
    %v4311 = vsub.f32 1.0, %v4310
    %v4312 = vmul.f32 %v4309, %v4311
    %v4313 = vadd.f32 %v4309, %v4312
    %vm4314 = vweird.f32 %v4278
    %vm4315 = vweird.f32 %v4309
    %vm4316 = vmor %vm4314, %vm4315
    %v4317 = vsel %vm4316, %v4309, %v4313
    %v4318 = vand.u32 2147483647, %v4278
    %vm4319 = vcmp.eq.f32.partialorder %v4318, 8.507059e+37
    %v4320 = vand.u32 %v4278, 2147483648
    %v4321 = vor.u32 1.1754944e-38, %v4320
    %v4322 = vsel %vm4319, %v4321, %v4317
    %v4323 = vmul.f32 1.0, %v4322
    %v4324 = vtanh.pop %v4266
    %v4325 = vmul.f32 %v4308, %v4035
    %v4326 = vmul.f32 %v4293, %v4324
    %v4327 = vadd.f32 %v4325, %v4326
    %v4328 = vtanh.pop %v4327
    %v4329 = vmul.f32 %v4323, %v4328
    %v4330 = vpack.c.bf16 %v4205, %v4205
    %4331 = vmatpush.bf16.msra.mxu0 %v1311
    %4332 = vmatpush.bf16.msra.mxu0 %v1307
    %4333 = vmatpush.bf16.msra.mxu0 %v1303
    %4334 = vmatpush.bf16.msra.mxu0 %v1299
    %4335 = vmatpush.bf16.msra.mxu0 %v1295
    %4336 = vmatpush.bf16.msra.mxu0 %v1291
    %4337 = vmatpush.bf16.msra.mxu0 %v1287
    %4338 = vmatpush.bf16.msra.mxu0 %v1283
    %4339 = vmatmul.bf16.gmra.mxu0 %v4210
    %v4340 = vpop.f32.mrf.mxu0
    %v4341 = vadd.f32 %v1083, %v4340
    %v4342 = vpop.f32.mrf.mxu0
    %4343 = vdwg.mxu0
    %4344 = vmatpush.bf16.msra.mxu0 %v1343
    %4345 = vmatpush.bf16.msra.mxu0 %v1339
    %4346 = vmatpush.bf16.msra.mxu0 %v1335
    %4347 = vmatpush.bf16.msra.mxu0 %v1331
    %4348 = vmatpush.bf16.msra.mxu0 %v1327
    %4349 = vmatpush.bf16.msra.mxu0 %v1323
    %4350 = vmatpush.bf16.msra.mxu0 %v1319
    %4351 = vmatpush.bf16.msra.mxu0 %v1315
    %4352 = vmatmul.bf16.gmra.mxu0 %v4330
    %v4353 = vpop.f32.mrf.mxu0
    %v4354 = vadd.f32 %v4341, %v4353
    %v4355 = vpop.f32.mrf.mxu0
    %4356 = vdwg.mxu0
    %4357 = vmatpush.bf16.msra.mxu0 %v1312
    %4358 = vmatpush.bf16.msra.mxu0 %v1308
    %4359 = vmatpush.bf16.msra.mxu0 %v1304
    %4360 = vmatpush.bf16.msra.mxu0 %v1300
    %4361 = vmatpush.bf16.msra.mxu0 %v1296
    %4362 = vmatpush.bf16.msra.mxu0 %v1292
    %4363 = vmatpush.bf16.msra.mxu0 %v1288
    %4364 = vmatpush.bf16.msra.mxu0 %v1284
    %4365 = vmatmul.bf16.gmra.mxu0 %v4210
    %v4366 = vpop.f32.mrf.mxu0
    %v4367 = vadd.f32 %v1084, %v4366
    %v4368 = vpop.f32.mrf.mxu0
    %4369 = vdwg.mxu0
    %4370 = vmatpush.bf16.msra.mxu0 %v1344
    %4371 = vmatpush.bf16.msra.mxu0 %v1340
    %4372 = vmatpush.bf16.msra.mxu0 %v1336
    %4373 = vmatpush.bf16.msra.mxu0 %v1332
    %4374 = vmatpush.bf16.msra.mxu0 %v1328
    %4375 = vmatpush.bf16.msra.mxu0 %v1324
    %4376 = vmatpush.bf16.msra.mxu0 %v1320
    %4377 = vmatpush.bf16.msra.mxu0 %v1316
    %4378 = vmatmul.bf16.gmra.mxu0 %v4330
    %v4379 = vpop.f32.mrf.mxu0
    %v4380 = vadd.f32 %v4367, %v4379
    %v4381 = vpop.f32.mrf.mxu0
    %4382 = vdwg.mxu0
    %4383 = vmatpush.bf16.msra.mxu0 %v1313
    %4384 = vmatpush.bf16.msra.mxu0 %v1309
    %4385 = vmatpush.bf16.msra.mxu0 %v1305
    %4386 = vmatpush.bf16.msra.mxu0 %v1301
    %4387 = vmatpush.bf16.msra.mxu0 %v1297
    %4388 = vmatpush.bf16.msra.mxu0 %v1293
    %4389 = vmatpush.bf16.msra.mxu0 %v1289
    %4390 = vmatpush.bf16.msra.mxu0 %v1285
    %4391 = vmatmul.bf16.gmra.mxu0 %v4210
    %v4392 = vpop.f32.mrf.mxu0
    %v4393 = vadd.f32 %v1085, %v4392
    %v4394 = vpop.f32.mrf.mxu0
    %4395 = vdwg.mxu0
    %4396 = vmatpush.bf16.msra.mxu0 %v1345
    %4397 = vmatpush.bf16.msra.mxu0 %v1341
    %4398 = vmatpush.bf16.msra.mxu0 %v1337
    %4399 = vmatpush.bf16.msra.mxu0 %v1333
    %4400 = vmatpush.bf16.msra.mxu0 %v1329
    %4401 = vmatpush.bf16.msra.mxu0 %v1325
    %4402 = vmatpush.bf16.msra.mxu0 %v1321
    %4403 = vmatpush.bf16.msra.mxu0 %v1317
    %4404 = vmatmul.bf16.gmra.mxu0 %v4330
    %v4405 = vpop.f32.mrf.mxu0
    %v4406 = vadd.f32 %v4393, %v4405
    %v4407 = vpop.f32.mrf.mxu0
    %4408 = vdwg.mxu0
    %4409 = vmatpush.bf16.msra.mxu0 %v1314
    %4410 = vmatpush.bf16.msra.mxu0 %v1310
    %4411 = vmatpush.bf16.msra.mxu0 %v1306
    %4412 = vmatpush.bf16.msra.mxu0 %v1302
    %4413 = vmatpush.bf16.msra.mxu0 %v1298
    %4414 = vmatpush.bf16.msra.mxu0 %v1294
    %4415 = vmatpush.bf16.msra.mxu0 %v1290
    %4416 = vmatpush.bf16.msra.mxu0 %v1286
    %4417 = vmatmul.bf16.gmra.mxu0 %v4210
    %v4418 = vpop.f32.mrf.mxu0
    %v4419 = vadd.f32 %v1086, %v4418
    %v4420 = vpop.f32.mrf.mxu0
    %4421 = vdwg.mxu0
    %4422 = vmatpush.bf16.msra.mxu0 %v1346
    %4423 = vmatpush.bf16.msra.mxu0 %v1342
    %4424 = vmatpush.bf16.msra.mxu0 %v1338
    %4425 = vmatpush.bf16.msra.mxu0 %v1334
    %4426 = vmatpush.bf16.msra.mxu0 %v1330
    %4427 = vmatpush.bf16.msra.mxu0 %v1326
    %4428 = vmatpush.bf16.msra.mxu0 %v1322
    %4429 = vmatpush.bf16.msra.mxu0 %v1318
    %4430 = vmatmul.bf16.gmra.mxu0 %v4330
    %v4431 = vpop.f32.mrf.mxu0
    %v4432 = vadd.f32 %v4419, %v4431
    %v4433 = vpop.f32.mrf.mxu0
    %4434 = vdwg.mxu0
    %v4435 = vxor.u32 %v4354, 2147483648
    %v4436 = vxor.u32 %v4380, 2147483648
    %v4437 = vxor.u32 %v4406, 2147483648
    %v4438 = vmul.f32 %v4435, 1.442695
    %v4439 = vpow.pop %v4438
    %v4440 = vmul.f32 %v4436, 1.442695
    %v4441 = vpow.pop %v4440
    %v4442 = vmul.f32 %v4437, 1.442695
    %v4443 = vpow.pop %v4442
    %v4444 = vadd.f32 %v4439, 1.0
    %v4445 = vadd.f32 %v4441, 1.0
    %v4446 = vadd.f32 %v4443, 1.0
    %v4447 = vrcp.pop %v4444
    %v4448 = vmul.f32 %v4444, %v4447
    %v4449 = vsub.f32 1.0, %v4448
    %v4450 = vmul.f32 %v4447, %v4449
    %v4451 = vadd.f32 %v4447, %v4450
    %vm4452 = vweird.f32 %v4444
    %vm4453 = vweird.f32 %v4447
    %vm4454 = vmor %vm4452, %vm4453
    %v4455 = vsel %vm4454, %v4447, %v4451
    %v4456 = vand.u32 2147483647, %v4444
    %vm4457 = vcmp.eq.f32.partialorder %v4456, 8.507059e+37
    %v4458 = vand.u32 %v4444, 2147483648
    %v4459 = vor.u32 1.1754944e-38, %v4458
    %v4460 = vsel %vm4457, %v4459, %v4455
    %v4461 = vmul.f32 1.0, %v4460
    %v4462 = vrcp.pop %v4445
    %v4463 = vmul.f32 %v4445, %v4462
    %v4464 = vsub.f32 1.0, %v4463
    %v4465 = vmul.f32 %v4462, %v4464
    %v4466 = vadd.f32 %v4462, %v4465
    %vm4467 = vweird.f32 %v4445
    %vm4468 = vweird.f32 %v4462
    %vm4469 = vmor %vm4467, %vm4468
    %v4470 = vsel %vm4469, %v4462, %v4466
    %v4471 = vand.u32 2147483647, %v4445
    %vm4472 = vcmp.eq.f32.partialorder %v4471, 8.507059e+37
    %v4473 = vand.u32 %v4445, 2147483648
    %v4474 = vor.u32 1.1754944e-38, %v4473
    %v4475 = vsel %vm4472, %v4474, %v4470
    %v4476 = vmul.f32 1.0, %v4475
    %v4477 = vrcp.pop %v4446
    %v4478 = vmul.f32 %v4446, %v4477
    %v4479 = vsub.f32 1.0, %v4478
    %v4480 = vmul.f32 %v4477, %v4479
    %v4481 = vadd.f32 %v4477, %v4480
    %vm4482 = vweird.f32 %v4446
    %vm4483 = vweird.f32 %v4477
    %vm4484 = vmor %vm4482, %vm4483
    %v4485 = vsel %vm4484, %v4477, %v4481
    %v4486 = vand.u32 2147483647, %v4446
    %vm4487 = vcmp.eq.f32.partialorder %v4486, 8.507059e+37
    %v4488 = vand.u32 %v4446, 2147483648
    %v4489 = vor.u32 1.1754944e-38, %v4488
    %v4490 = vsel %vm4487, %v4489, %v4485
    %v4491 = vmul.f32 1.0, %v4490
    %v4492 = vtanh.pop %v4432
    %v4493 = vmul.f32 %v4476, %v4203
    %v4494 = vmul.f32 %v4461, %v4492
    %v4495 = vadd.f32 %v4493, %v4494
    %v4496 = vtanh.pop %v4495
    %v4497 = vmul.f32 %v4491, %v4496
    %v4498 = vpack.c.bf16 %v4329, %v4329
    %v4499 = vpack.c.bf16 %v4497, %v4497
    %4500 = vmatpush.bf16.msra.mxu0 %v1311
    %4501 = vmatpush.bf16.msra.mxu0 %v1307
    %4502 = vmatpush.bf16.msra.mxu0 %v1303
    %4503 = vmatpush.bf16.msra.mxu0 %v1299
    %4504 = vmatpush.bf16.msra.mxu0 %v1295
    %4505 = vmatpush.bf16.msra.mxu0 %v1291
    %4506 = vmatpush.bf16.msra.mxu0 %v1287
    %4507 = vmatpush.bf16.msra.mxu0 %v1283
    %4508 = vmatmul.bf16.gmra.mxu0 %v4498
    %v4509 = vpop.f32.mrf.mxu0
    %v4510 = vadd.f32 %v1083, %v4509
    %v4511 = vpop.f32.mrf.mxu0
    %4512 = vdwg.mxu0
    %4513 = vmatpush.bf16.msra.mxu0 %v1343
    %4514 = vmatpush.bf16.msra.mxu0 %v1339
    %4515 = vmatpush.bf16.msra.mxu0 %v1335
    %4516 = vmatpush.bf16.msra.mxu0 %v1331
    %4517 = vmatpush.bf16.msra.mxu0 %v1327
    %4518 = vmatpush.bf16.msra.mxu0 %v1323
    %4519 = vmatpush.bf16.msra.mxu0 %v1319
    %4520 = vmatpush.bf16.msra.mxu0 %v1315
    %4521 = vmatmul.bf16.gmra.mxu0 %v4499
    %v4522 = vpop.f32.mrf.mxu0
    %v4523 = vadd.f32 %v4510, %v4522
    %v4524 = vpop.f32.mrf.mxu0
    %4525 = vdwg.mxu0
    %4526 = vmatpush.bf16.msra.mxu0 %v1312
    %4527 = vmatpush.bf16.msra.mxu0 %v1308
    %4528 = vmatpush.bf16.msra.mxu0 %v1304
    %4529 = vmatpush.bf16.msra.mxu0 %v1300
    %4530 = vmatpush.bf16.msra.mxu0 %v1296
    %4531 = vmatpush.bf16.msra.mxu0 %v1292
    %4532 = vmatpush.bf16.msra.mxu0 %v1288
    %4533 = vmatpush.bf16.msra.mxu0 %v1284
    %4534 = vmatmul.bf16.gmra.mxu0 %v4498
    %v4535 = vpop.f32.mrf.mxu0
    %v4536 = vadd.f32 %v1084, %v4535
    %v4537 = vpop.f32.mrf.mxu0
    %4538 = vdwg.mxu0
    %4539 = vmatpush.bf16.msra.mxu0 %v1344
    %4540 = vmatpush.bf16.msra.mxu0 %v1340
    %4541 = vmatpush.bf16.msra.mxu0 %v1336
    %4542 = vmatpush.bf16.msra.mxu0 %v1332
    %4543 = vmatpush.bf16.msra.mxu0 %v1328
    %4544 = vmatpush.bf16.msra.mxu0 %v1324
    %4545 = vmatpush.bf16.msra.mxu0 %v1320
    %4546 = vmatpush.bf16.msra.mxu0 %v1316
    %4547 = vmatmul.bf16.gmra.mxu0 %v4499
    %v4548 = vpop.f32.mrf.mxu0
    %v4549 = vadd.f32 %v4536, %v4548
    %v4550 = vpop.f32.mrf.mxu0
    %4551 = vdwg.mxu0
    %4552 = vmatpush.bf16.msra.mxu0 %v1313
    %4553 = vmatpush.bf16.msra.mxu0 %v1309
    %4554 = vmatpush.bf16.msra.mxu0 %v1305
    %4555 = vmatpush.bf16.msra.mxu0 %v1301
    %4556 = vmatpush.bf16.msra.mxu0 %v1297
    %4557 = vmatpush.bf16.msra.mxu0 %v1293
    %4558 = vmatpush.bf16.msra.mxu0 %v1289
    %4559 = vmatpush.bf16.msra.mxu0 %v1285
    %4560 = vmatmul.bf16.gmra.mxu0 %v4498
    %v4561 = vpop.f32.mrf.mxu0
    %v4562 = vadd.f32 %v1085, %v4561
    %v4563 = vpop.f32.mrf.mxu0
    %4564 = vdwg.mxu0
    %4565 = vmatpush.bf16.msra.mxu0 %v1345
    %4566 = vmatpush.bf16.msra.mxu0 %v1341
    %4567 = vmatpush.bf16.msra.mxu0 %v1337
    %4568 = vmatpush.bf16.msra.mxu0 %v1333
    %4569 = vmatpush.bf16.msra.mxu0 %v1329
    %4570 = vmatpush.bf16.msra.mxu0 %v1325
    %4571 = vmatpush.bf16.msra.mxu0 %v1321
    %4572 = vmatpush.bf16.msra.mxu0 %v1317
    %4573 = vmatmul.bf16.gmra.mxu0 %v4499
    %v4574 = vpop.f32.mrf.mxu0
    %v4575 = vadd.f32 %v4562, %v4574
    %v4576 = vpop.f32.mrf.mxu0
    %4577 = vdwg.mxu0
    %4578 = vmatpush.bf16.msra.mxu0 %v1314
    %4579 = vmatpush.bf16.msra.mxu0 %v1310
    %4580 = vmatpush.bf16.msra.mxu0 %v1306
    %4581 = vmatpush.bf16.msra.mxu0 %v1302
    %4582 = vmatpush.bf16.msra.mxu0 %v1298
    %4583 = vmatpush.bf16.msra.mxu0 %v1294
    %4584 = vmatpush.bf16.msra.mxu0 %v1290
    %4585 = vmatpush.bf16.msra.mxu0 %v1286
    %4586 = vmatmul.bf16.gmra.mxu0 %v4498
    %v4587 = vpop.f32.mrf.mxu0
    %v4588 = vadd.f32 %v1086, %v4587
    %v4589 = vpop.f32.mrf.mxu0
    %4590 = vdwg.mxu0
    %4591 = vmatpush.bf16.msra.mxu0 %v1346
    %4592 = vmatpush.bf16.msra.mxu0 %v1342
    %4593 = vmatpush.bf16.msra.mxu0 %v1338
    %4594 = vmatpush.bf16.msra.mxu0 %v1334
    %4595 = vmatpush.bf16.msra.mxu0 %v1330
    %4596 = vmatpush.bf16.msra.mxu0 %v1326
    %4597 = vmatpush.bf16.msra.mxu0 %v1322
    %4598 = vmatpush.bf16.msra.mxu0 %v1318
    %4599 = vmatmul.bf16.gmra.mxu0 %v4499
    %v4600 = vpop.f32.mrf.mxu0
    %v4601 = vadd.f32 %v4588, %v4600
    %v4602 = vpop.f32.mrf.mxu0
    %4603 = vdwg.mxu0
    %v4604 = vxor.u32 %v4523, 2147483648
    %v4605 = vxor.u32 %v4549, 2147483648
    %v4606 = vxor.u32 %v4575, 2147483648
    %v4607 = vmul.f32 %v4604, 1.442695
    %v4608 = vpow.pop %v4607
    %v4609 = vmul.f32 %v4605, 1.442695
    %v4610 = vpow.pop %v4609
    %v4611 = vmul.f32 %v4606, 1.442695
    %v4612 = vpow.pop %v4611
    %v4613 = vadd.f32 %v4608, 1.0
    %v4614 = vadd.f32 %v4610, 1.0
    %v4615 = vadd.f32 %v4612, 1.0
    %v4616 = vrcp.pop %v4613
    %v4617 = vmul.f32 %v4613, %v4616
    %v4618 = vsub.f32 1.0, %v4617
    %v4619 = vmul.f32 %v4616, %v4618
    %v4620 = vadd.f32 %v4616, %v4619
    %vm4621 = vweird.f32 %v4613
    %vm4622 = vweird.f32 %v4616
    %vm4623 = vmor %vm4621, %vm4622
    %v4624 = vsel %vm4623, %v4616, %v4620
    %v4625 = vand.u32 2147483647, %v4613
    %vm4626 = vcmp.eq.f32.partialorder %v4625, 8.507059e+37
    %v4627 = vand.u32 %v4613, 2147483648
    %v4628 = vor.u32 1.1754944e-38, %v4627
    %v4629 = vsel %vm4626, %v4628, %v4624
    %v4630 = vmul.f32 1.0, %v4629
    %v4631 = vrcp.pop %v4614
    %v4632 = vmul.f32 %v4614, %v4631
    %v4633 = vsub.f32 1.0, %v4632
    %v4634 = vmul.f32 %v4631, %v4633
    %v4635 = vadd.f32 %v4631, %v4634
    %vm4636 = vweird.f32 %v4614
    %vm4637 = vweird.f32 %v4631
    %vm4638 = vmor %vm4636, %vm4637
    %v4639 = vsel %vm4638, %v4631, %v4635
    %v4640 = vand.u32 2147483647, %v4614
    %vm4641 = vcmp.eq.f32.partialorder %v4640, 8.507059e+37
    %v4642 = vand.u32 %v4614, 2147483648
    %v4643 = vor.u32 1.1754944e-38, %v4642
    %v4644 = vsel %vm4641, %v4643, %v4639
    %v4645 = vmul.f32 1.0, %v4644
    %v4646 = vrcp.pop %v4615
    %v4647 = vmul.f32 %v4615, %v4646
    %v4648 = vsub.f32 1.0, %v4647
    %v4649 = vmul.f32 %v4646, %v4648
    %v4650 = vadd.f32 %v4646, %v4649
    %vm4651 = vweird.f32 %v4615
    %vm4652 = vweird.f32 %v4646
    %vm4653 = vmor %vm4651, %vm4652
    %v4654 = vsel %vm4653, %v4646, %v4650
    %v4655 = vand.u32 2147483647, %v4615
    %vm4656 = vcmp.eq.f32.partialorder %v4655, 8.507059e+37
    %v4657 = vand.u32 %v4615, 2147483648
    %v4658 = vor.u32 1.1754944e-38, %v4657
    %v4659 = vsel %vm4656, %v4658, %v4654
    %v4660 = vmul.f32 1.0, %v4659
    %v4661 = vtanh.pop %v4601
    %v4662 = vmul.f32 %v4645, %v4495
    %v4663 = vmul.f32 %v4630, %v4661
    %v4664 = vadd.f32 %v4662, %v4663
    %v4665 = vtanh.pop %v4664
    %v4666 = vmul.f32 %v4660, %v4665
    %v4667 = vld [vmem:[#allocation11] sm:$0xff]
    %v4668 = vld [vmem:[#allocation11 + $0x8] sm:$0xff]
    %v4669 = vld [vmem:[#allocation11 + $0x10] sm:$0xff]
    %v4670 = vld [vmem:[#allocation11 + $0x18] sm:$0xff]
    %v4671 = vld [vmem:[#allocation11 + $0x20] sm:$0xff]
    %v4672 = vld [vmem:[#allocation11 + $0x28] sm:$0xff]
    %v4673 = vld [vmem:[#allocation11 + $0x30] sm:$0xff]
    %v4674 = vld [vmem:[#allocation11 + $0x38] sm:$0xff]
    %v4675 = vld [vmem:[#allocation11 + $0x40] sm:$0xff]
    %v4676 = vld [vmem:[#allocation11 + $0x48] sm:$0xff]
    %v4677 = vld [vmem:[#allocation11 + $0x50] sm:$0xff]
    %v4678 = vld [vmem:[#allocation11 + $0x58] sm:$0xff]
    %v4679 = vld [vmem:[#allocation11 + $0x60] sm:$0xff]
    %v4680 = vld [vmem:[#allocation11 + $0x68] sm:$0xff]
    %v4681 = vld [vmem:[#allocation11 + $0x70] sm:$0xff]
    %v4682 = vld [vmem:[#allocation11 + $0x78] sm:$0xff]
    %v4683 = vld [vmem:[#allocation11 + $0x80] sm:$0xff]
    %v4684 = vld [vmem:[#allocation11 + $0x88] sm:$0xff]
    %v4685 = vld [vmem:[#allocation11 + $0x90] sm:$0xff]
    %v4686 = vld [vmem:[#allocation11 + $0x98] sm:$0xff]
    %v4687 = vld [vmem:[#allocation11 + $0xa0] sm:$0xff]
    %v4688 = vld [vmem:[#allocation11 + $0xa8] sm:$0xff]
    %v4689 = vld [vmem:[#allocation11 + $0xb0] sm:$0xff]
    %v4690 = vld [vmem:[#allocation11 + $0xb8] sm:$0xff]
    %v4691 = vld [vmem:[#allocation11 + $0xc0] sm:$0xff]
    %v4692 = vld [vmem:[#allocation11 + $0xc8] sm:$0xff]
    %v4693 = vld [vmem:[#allocation11 + $0xd0] sm:$0xff]
    %v4694 = vld [vmem:[#allocation11 + $0xd8] sm:$0xff]
    %v4695 = vld [vmem:[#allocation11 + $0xe0] sm:$0xff]
    %v4696 = vld [vmem:[#allocation11 + $0xe8] sm:$0xff]
    %v4697 = vld [vmem:[#allocation11 + $0xf0] sm:$0xff]
    %v4698 = vld [vmem:[#allocation11 + $0xf8] sm:$0xff]
    %v4699 = vld [vmem:[#allocation11 + $0x100] sm:$0xff]
    %v4700 = vld [vmem:[#allocation11 + $0x108] sm:$0xff]
    %v4701 = vld [vmem:[#allocation11 + $0x110] sm:$0xff]
    %v4702 = vld [vmem:[#allocation11 + $0x118] sm:$0xff]
    %v4703 = vld [vmem:[#allocation11 + $0x120] sm:$0xff]
    %v4704 = vld [vmem:[#allocation11 + $0x128] sm:$0xff]
    %v4705 = vld [vmem:[#allocation11 + $0x130] sm:$0xff]
    %v4706 = vld [vmem:[#allocation11 + $0x138] sm:$0xff]
    %v4707 = vld [vmem:[#allocation11 + $0x140] sm:$0xff]
    %v4708 = vld [vmem:[#allocation11 + $0x148] sm:$0xff]
    %v4709 = vld [vmem:[#allocation11 + $0x150] sm:$0xff]
    %v4710 = vld [vmem:[#allocation11 + $0x158] sm:$0xff]
    %v4711 = vld [vmem:[#allocation11 + $0x160] sm:$0xff]
    %v4712 = vld [vmem:[#allocation11 + $0x168] sm:$0xff]
    %v4713 = vld [vmem:[#allocation11 + $0x170] sm:$0xff]
    %v4714 = vld [vmem:[#allocation11 + $0x178] sm:$0xff]
    %v4715 = vld [vmem:[#allocation11 + $0x180] sm:$0xff]
    %v4716 = vld [vmem:[#allocation11 + $0x188] sm:$0xff]
    %v4717 = vld [vmem:[#allocation11 + $0x190] sm:$0xff]
    %v4718 = vld [vmem:[#allocation11 + $0x198] sm:$0xff]
    %v4719 = vld [vmem:[#allocation11 + $0x1a0] sm:$0xff]
    %v4720 = vld [vmem:[#allocation11 + $0x1a8] sm:$0xff]
    %v4721 = vld [vmem:[#allocation11 + $0x1b0] sm:$0xff]
    %v4722 = vld [vmem:[#allocation11 + $0x1b8] sm:$0xff]
    %v4723 = vld [vmem:[#allocation11 + $0x1c0] sm:$0xff]
    %v4724 = vld [vmem:[#allocation11 + $0x1c8] sm:$0xff]
    %v4725 = vld [vmem:[#allocation11 + $0x1d0] sm:$0xff]
    %v4726 = vld [vmem:[#allocation11 + $0x1d8] sm:$0xff]
    %v4727 = vld [vmem:[#allocation11 + $0x1e0] sm:$0xff]
    %v4728 = vld [vmem:[#allocation11 + $0x1e8] sm:$0xff]
    %v4729 = vld [vmem:[#allocation11 + $0x1f0] sm:$0xff]
    %v4730 = vld [vmem:[#allocation11 + $0x1f8] sm:$0xff]
    %s4731 = sld [smem:[#allocation4]]
    %v4732 = vstv %s4731
    %4733 = vmatpush.msra.mxu0 %v4682
    %4734 = vmatpush.msra.mxu0 %v4681
    %4735 = vmatpush.msra.mxu0 %v4680
    %4736 = vmatpush.msra.mxu0 %v4679
    %4737 = vmatpush.msra.mxu0 %v4678
    %4738 = vmatpush.msra.mxu0 %v4677
    %4739 = vmatpush.msra.mxu0 %v4676
    %4740 = vmatpush.msra.mxu0 %v4675
    %4741 = vmatpush.msra.mxu0 %v4674
    %4742 = vmatpush.msra.mxu0 %v4673
    %4743 = vmatpush.msra.mxu0 %v4672
    %4744 = vmatpush.msra.mxu0 %v4671
    %4745 = vmatpush.msra.mxu0 %v4670
    %4746 = vmatpush.msra.mxu0 %v4669
    %4747 = vmatpush.msra.mxu0 %v4668
    %4748 = vmatpush.msra.mxu0 %v4667
    %4749 = vmatmul.f32.gmra.mxu0 %v3913
    %v4750 = vpop.f32.mrf.mxu0
    %v4751 = vadd.f32 %v4732, %v4750
    %4752 = vdwg.mxu0
    %4753 = vmatpush.msra.mxu0 %v4698
    %4754 = vmatpush.msra.mxu0 %v4697
    %4755 = vmatpush.msra.mxu0 %v4696
    %4756 = vmatpush.msra.mxu0 %v4695
    %4757 = vmatpush.msra.mxu0 %v4694
    %4758 = vmatpush.msra.mxu0 %v4693
    %4759 = vmatpush.msra.mxu0 %v4692
    %4760 = vmatpush.msra.mxu0 %v4691
    %4761 = vmatpush.msra.mxu0 %v4690
    %4762 = vmatpush.msra.mxu0 %v4689
    %4763 = vmatpush.msra.mxu0 %v4688
    %4764 = vmatpush.msra.mxu0 %v4687
    %4765 = vmatpush.msra.mxu0 %v4686
    %4766 = vmatpush.msra.mxu0 %v4685
    %4767 = vmatpush.msra.mxu0 %v4684
    %4768 = vmatpush.msra.mxu0 %v4683
    %4769 = vmatmul.f32.gmra.mxu0 %v4205
    %v4770 = vpop.f32.mrf.mxu0
    %v4771 = vadd.f32 %v4751, %v4770
    %4772 = vdwg.mxu0
    %4773 = vmatpush.msra.mxu0 %v4714
    %4774 = vmatpush.msra.mxu0 %v4713
    %4775 = vmatpush.msra.mxu0 %v4712
    %4776 = vmatpush.msra.mxu0 %v4711
    %4777 = vmatpush.msra.mxu0 %v4710
    %4778 = vmatpush.msra.mxu0 %v4709
    %4779 = vmatpush.msra.mxu0 %v4708
    %4780 = vmatpush.msra.mxu0 %v4707
    %4781 = vmatpush.msra.mxu0 %v4706
    %4782 = vmatpush.msra.mxu0 %v4705
    %4783 = vmatpush.msra.mxu0 %v4704
    %4784 = vmatpush.msra.mxu0 %v4703
    %4785 = vmatpush.msra.mxu0 %v4702
    %4786 = vmatpush.msra.mxu0 %v4701
    %4787 = vmatpush.msra.mxu0 %v4700
    %4788 = vmatpush.msra.mxu0 %v4699
    %4789 = vmatmul.f32.gmra.mxu0 %v4497
    %v4790 = vpop.f32.mrf.mxu0
    %v4791 = vadd.f32 %v4771, %v4790
    %4792 = vdwg.mxu0
    %4793 = vmatpush.msra.mxu0 %v4730
    %4794 = vmatpush.msra.mxu0 %v4729
    %4795 = vmatpush.msra.mxu0 %v4728
    %4796 = vmatpush.msra.mxu0 %v4727
    %4797 = vmatpush.msra.mxu0 %v4726
    %4798 = vmatpush.msra.mxu0 %v4725
    %4799 = vmatpush.msra.mxu0 %v4724
    %4800 = vmatpush.msra.mxu0 %v4723
    %4801 = vmatpush.msra.mxu0 %v4722
    %4802 = vmatpush.msra.mxu0 %v4721
    %4803 = vmatpush.msra.mxu0 %v4720
    %4804 = vmatpush.msra.mxu0 %v4719
    %4805 = vmatpush.msra.mxu0 %v4718
    %4806 = vmatpush.msra.mxu0 %v4717
    %4807 = vmatpush.msra.mxu0 %v4716
    %4808 = vmatpush.msra.mxu0 %v4715
    %4809 = vmatmul.f32.gmra.mxu0 %v4666
    %v4810 = vpop.f32.mrf.mxu0
    %v4811 = vadd.f32 %v4791, %v4810
    %4812 = vdwg.mxu0
    %4813 = vst [vmem:[#allocation13] sm:$0xff] %v4811
    // Predicated region
    $region50: #{tpu_custom_call.1} parent=1 // pred_check
      _
    $region51: #{tpu_custom_call.1} parent=1 // pred_check_branch
      %4815 = sbr.rel (0) target = $region53
    $region52: #{tpu_custom_call.1} parent=1 // pred_region
      %4817 = vsyncadd [#allocation7], 0
      %s4819 = sshll.u32 [#allocation13], 4
      %s4820 = int_to_ptr.vmem [resolvable:$true] %s4819
      %s4821 = sshll.u32 %s8, 4
      %s4822 = int_to_ptr.hbm [resolvable:$true] %s4821
      %4824 = dma.vmem_to_hbm [thread:$0]  %s4820, 128, %s4822, [#allocation7]
    $region53: #{tpu_custom_call.1} parent=1 // pred_fallthru
      _
    // Predicated region
    $region54: #{tpu_custom_call.1} parent=1 // pred_check
      _
    $region55: #{tpu_custom_call.1} parent=1 // pred_check_branch
      %4826 = sbr.rel (0) target = $region57
    $region56: #{tpu_custom_call.1} parent=1 // pred_region
      %4828 = dma.done [#allocation7], 128
    $region57: #{tpu_custom_call.1} parent=1 // pred_fallthru
      _
    %4829 = vsyncpa [#allocation6], 1
    %4830 = vsyncpa [#allocation9], 1
    %4831 = vsyncpa [#allocation12], 1
    %4832 = vsyncpa [#allocation7], 1

</llo_original>
